<compile_context>
chip_gen: v6e
topology: v6e:2x2x1
jax: 0.10.0
libtpu: 0.0.40
codegen_flags: <defaults>
</compile_context>

<pallas_src>
import functools

import jax
import jax.numpy as jnp
import numpy as np
from jax.experimental import pallas as pl
from jax.experimental.pallas import tpu as pltpu

LN_EPS = 1e-12                    # HF BertConfig.layer_norm_eps
GELU_C = 0.7978845608028654       # sqrt(2/pi)


def _layer_norm(x, gamma, beta):
    """f32 LayerNorm over the last axis (shared by kernel and reference)."""
    mean = jnp.mean(x, axis=-1, keepdims=True)
    var = jnp.mean((x - mean) ** 2, axis=-1, keepdims=True)
    return (x - mean) * jax.lax.rsqrt(var + LN_EPS) * gamma + beta


def _gelu_tanh(x):
    """tanh-approx GELU (EUP-friendly; reference uses the same formula)."""
    return 0.5 * x * (1.0 + jnp.tanh(GELU_C * (x + 0.044715 * x * x * x)))


# ------------------------------------------------------------------ kernel ----

def _encoder_kernel(emb_ref, bias_ref, emb_g_ref, emb_b_ref,
                    wqkv_ref, bqkv_ref, wo_ref, bo_ref,
                    ln1g_ref, ln1b_ref,
                    wi_ref, bi_ref, w2_ref, b2_ref,
                    ln2g_ref, ln2b_ref,
                    out_ref, x_sc, ctx_sc,
                    *, batch, seq_len, num_heads):
    """One grid step == one encoder layer; activations carried in VMEM scratch."""
    layer = pl.program_id(0)

    # Layer-0 prologue: embedding LayerNorm (replaces the standalone call).
    @pl.when(layer == 0)
    def _():
        x_sc[...] = _layer_norm(emb_ref[...], emb_g_ref[...], emb_b_ref[...])

    x = x_sc[...]                                   # [B*L, H] f32, VMEM-resident
    BL, H = x.shape
    dh = H // num_heads

    # Fused QKV projection over the whole [B*L, H] slab (M = B*L).
    # The 1/sqrt(dh) attention scale is already folded into the Q columns.
    qkv = jnp.dot(x.astype(jnp.bfloat16), wqkv_ref[0],
                  preferred_element_type=jnp.float32) + bqkv_ref[0]     # [BL, 3H]
    q = qkv[:, :H]
    k = qkv[:, H:2 * H]
    v = qkv[:, 2 * H:]

    bias = bias_ref[...]                            # [B, Lpad] f32 (lane-dense load)

    for b in range(batch):                          # static unroll over batch
        rows = slice(b * seq_len, (b + 1) * seq_len)
        # Hoisted key-side bias broadcast (emitted once, not per head).
        bias_mat = jnp.broadcast_to(bias[b:b + 1, :seq_len], (seq_len, seq_len))
        for h in range(num_heads):                  # static unroll over heads
            cols = slice(h * dh, (h + 1) * dh)
            qh = q[rows, cols].astype(jnp.bfloat16)       # [L, dh]
            kh = k[rows, cols].astype(jnp.bfloat16)       # [L, dh]
            vh = v[rows, cols].astype(jnp.bfloat16)       # [L, dh]

            # NT matmul: contract the dh axis directly, no explicit K transpose.
            s = jax.lax.dot_general(
                qh, kh, dimension_numbers=(((1,), (1,)), ((), ())),
                preferred_element_type=jnp.float32) + bias_mat          # [L, L]

            m = jnp.max(s, axis=-1, keepdims=True)        # f32 softmax
            e = jnp.exp(s - m)
            p = e * pl.reciprocal(jnp.sum(e, axis=-1, keepdims=True), approx=True)

            # Write this head's context into its 128-lane slice of the scratch.
            ctx_sc[rows, cols] = jnp.dot(p.astype(jnp.bfloat16), vh,
                                         preferred_element_type=jnp.float32)

    # Single full-depth (K = H) output projection over the whole slab.
    attn = jnp.dot(ctx_sc[...].astype(jnp.bfloat16), wo_ref[0],
                   preferred_element_type=jnp.float32) + bo_ref[0]      # [BL, H]

    # Residual + LayerNorm 1 (f32).
    y = _layer_norm(x + attn, ln1g_ref[0], ln1b_ref[0])

    # Feed-forward (tanh GELU, EUP).
    h1 = jnp.dot(y.astype(jnp.bfloat16), wi_ref[0],
                 preferred_element_type=jnp.float32) + bi_ref[0]        # [BL, I]
    h1 = _gelu_tanh(h1)
    h2 = jnp.dot(h1.astype(jnp.bfloat16), w2_ref[0],
                 preferred_element_type=jnp.float32) + b2_ref[0]        # [BL, H]

    # Residual + LayerNorm 2 -> next layer's input (stays in VMEM).
    x_new = _layer_norm(y + h2, ln2g_ref[0], ln2b_ref[0])
    x_sc[...] = x_new

    @pl.when(layer == pl.num_programs(0) - 1)
    def _():
        out_ref[...] = x_new


# ---------------------------------------------------------------- wrappers ----

def _const_spec(a):
    """Full-array block, constant index map (same block every layer step)."""
    nd = a.ndim
    return pl.BlockSpec(a.shape, lambda l, _nd=nd: (0,) * _nd)


def _layer_spec(a):
    """Layer-indexed block: one layer's slice of a [NL, ...] stacked array."""
    nd = a.ndim
    return pl.BlockSpec((1,) + a.shape[1:],
                        lambda l, _nd=nd: (l,) + (0,) * (_nd - 1))


def _encoder_stack(emb, bias, params, num_heads, batch, seq_len):
    BL, H = emb.shape
    NL = params["w_qkv"].shape[0]

    kernel = functools.partial(_encoder_kernel, batch=batch,
                               seq_len=seq_len, num_heads=num_heads)

    layer_args = (params["w_qkv"], params["b_qkv"], params["w_o"], params["b_o"],
                  params["ln1_g"], params["ln1_b"],
                  params["w_in"], params["b_in"], params["w_out"], params["b_out"],
                  params["ln2_g"], params["ln2_b"])

    return pl.pallas_call(
        kernel,
        out_shape=jax.ShapeDtypeStruct((BL, H), jnp.float32),
        grid=(NL,),
        in_specs=([_const_spec(emb), _const_spec(bias),
                   _const_spec(params["emb_ln_g"]), _const_spec(params["emb_ln_b"])]
                  + [_layer_spec(a) for a in layer_args]),
        out_specs=pl.BlockSpec((BL, H), lambda l: (0, 0)),
        scratch_shapes=[pltpu.VMEM((BL, H), jnp.float32),   # activation carry
                        pltpu.VMEM((BL, H), jnp.float32)],  # per-head ctx assembly
        compiler_params=pltpu.CompilerParams(
            dimension_semantics=("arbitrary",)),            # layers are sequential
    )(emb, bias, params["emb_ln_g"], params["emb_ln_b"], *layer_args)


def hf_text_encoder_forward(token_ids, attention_mask, params, return_cls_only=False):
    """HFTextEncoder.forward: returns [B, L, H] or the [CLS] vector [B, H]."""
    B, L = token_ids.shape
    H = params["word_emb"].shape[-1]

    # Embedding gather stays in plain JAX (data-dependent gather; see TODO above).
    emb = (params["word_emb"][token_ids]
           + params["pos_emb"][None, :L, :]
           + params["type_emb"][0][None, None, :]).astype(jnp.float32)   # token_type 0
    emb = emb.reshape(B * L, H)

    # Additive key-side mask (0 real / -1e9 pad), padded to a 128-lane slab.
    Lp = ((L + 127) // 128) * 128
    bias = jnp.zeros((B, Lp), jnp.float32)
    bias = bias.at[:, :L].set((attention_mask.astype(jnp.float32) - 1.0) * 1e9)

    out = _encoder_stack(emb, bias, params, params["num_heads"], B, L)
    out = out.reshape(B, L, H)
    if return_cls_only:
        return out[:, 0, :]                                  # last_hidden[:, 0, :]
    return out


# ------------------------------------------------------------------- params ---

def init_params(key, vocab, max_len, hidden, num_heads, intermediate, num_layers):
    """BERT-style init; per-layer weights stacked along [NL]; MXU weights in bf16.

    The attention scale 1/sqrt(dh) is folded into the Q columns of w_qkv/b_qkv.
    """
    std = 0.02
    dh = hidden // num_heads
    scale = 1.0 / float(dh) ** 0.5

    k_emb, k_layers = jax.random.split(key)
    ke = jax.random.split(k_emb, 3)

    def one_layer(kl):
        ks = jax.random.split(kl, 12)
        w_qkv = std * jax.random.normal(ks[0], (hidden, 3 * hidden), jnp.float32)
        b_qkv = std * jax.random.normal(ks[1], (1, 3 * hidden), jnp.float32)
        w_qkv = w_qkv.at[:, :hidden].multiply(scale)          # fold 1/sqrt(dh)
        b_qkv = b_qkv.at[:, :hidden].multiply(scale)
        return {
            "w_qkv": w_qkv.astype(jnp.bfloat16),
            "b_qkv": b_qkv,
            "w_o":   (std * jax.random.normal(ks[2], (hidden, hidden))).astype(jnp.bfloat16),
            "b_o":   std * jax.random.normal(ks[3], (1, hidden), jnp.float32),
            "ln1_g": 1.0 + 0.05 * jax.random.normal(ks[4], (1, hidden), jnp.float32),
            "ln1_b": std * jax.random.normal(ks[5], (1, hidden), jnp.float32),
            "w_in":  (std * jax.random.normal(ks[6], (hidden, intermediate))).astype(jnp.bfloat16),
            "b_in":  std * jax.random.normal(ks[7], (1, intermediate), jnp.float32),
            "w_out": (std * jax.random.normal(ks[8], (intermediate, hidden))).astype(jnp.bfloat16),
            "b_out": std * jax.random.normal(ks[9], (1, hidden), jnp.float32),
            "ln2_g": 1.0 + 0.05 * jax.random.normal(ks[10], (1, hidden), jnp.float32),
            "ln2_b": std * jax.random.normal(ks[11], (1, hidden), jnp.float32),
        }

    layers = [one_layer(kl) for kl in jax.random.split(k_layers, num_layers)]
    stacked = {name: jnp.stack([lp[name] for lp in layers]) for name in layers[0]}

    params = {
        "num_heads": num_heads,
        "word_emb": std * jax.random.normal(ke[0], (vocab, hidden), jnp.float32),
        "pos_emb":  std * jax.random.normal(ke[1], (max_len, hidden), jnp.float32),
        "type_emb": std * jax.random.normal(ke[2], (2, hidden), jnp.float32),
        "emb_ln_g": jnp.ones((1, hidden), jnp.float32),
        "emb_ln_b": jnp.zeros((1, hidden), jnp.float32),
    }
    params.update(stacked)
    return params


# ---------------------------------------------------------------- reference ---

def reference_forward(token_ids, attention_mask, params, return_cls_only=False):
    """Pure-JAX reference using the same bf16-operand / f32-accumulate math."""
    B, L = token_ids.shape
    H = params["word_emb"].shape[-1]
    nh = params["num_heads"]
    dh = H // nh
    NL = params["w_qkv"].shape[0]

    x = _layer_norm(params["word_emb"][token_ids]
                    + params["pos_emb"][None, :L, :]
                    + params["type_emb"][0][None, None, :],
                    params["emb_ln_g"], params["emb_ln_b"])
    bias = ((attention_mask.astype(jnp.float32) - 1.0) * 1e9)[:, None, None, :]  # [B,1,1,L]

    for l in range(NL):
        qkv = jnp.dot(x.astype(jnp.bfloat16), params["w_qkv"][l],
                      preferred_element_type=jnp.float32) + params["b_qkv"][l]
        q, k, v = qkv[..., :H], qkv[..., H:2 * H], qkv[..., 2 * H:]
        q = q.reshape(B, L, nh, dh).transpose(0, 2, 1, 3).astype(jnp.bfloat16)
        k = k.reshape(B, L, nh, dh).transpose(0, 2, 1, 3).astype(jnp.bfloat16)
        v = v.reshape(B, L, nh, dh).transpose(0, 2, 1, 3).astype(jnp.bfloat16)
        s = jnp.einsum('bhqd,bhkd->bhqk', q, k,
                       preferred_element_type=jnp.float32) + bias       # scale folded
        m = jnp.max(s, axis=-1, keepdims=True)
        e = jnp.exp(s - m)
        p = e / jnp.sum(e, axis=-1, keepdims=True)
        ctx = jnp.einsum('bhqk,bhkd->bhqd', p.astype(jnp.bfloat16), v,
                         preferred_element_type=jnp.float32)
        ctx = ctx.transpose(0, 2, 1, 3).reshape(B, L, H)
        attn = jnp.dot(ctx.astype(jnp.bfloat16), params["w_o"][l],
                       preferred_element_type=jnp.float32) + params["b_o"][l]
        y = _layer_norm(x + attn, params["ln1_g"][l], params["ln1_b"][l])
        h1 = jnp.dot(y.astype(jnp.bfloat16), params["w_in"][l],
                     preferred_element_type=jnp.float32) + params["b_in"][l]
        h1 = _gelu_tanh(h1)
        h2 = jnp.dot(h1.astype(jnp.bfloat16), params["w_out"][l],
                     preferred_element_type=jnp.float32) + params["b_out"][l]
        x = _layer_norm(y + h2, params["ln2_g"][l], params["ln2_b"][l])

    return x[:, 0, :] if return_cls_only else x


# --------------------------------------------------------------------- main ---

if __name__ == "__main__":
    # Small BERT-like config with lane-dense feature dims.
    B, L, H, NH, I, V, NL, MAXLEN = 2, 16, 128, 4, 512, 512, 2, 64

    key = jax.random.PRNGKey(0)
    k_ids, k_params = jax.random.split(key)

    token_ids = jax.random.randint(k_ids, (B, L), 0, V, dtype=jnp.int32)
    # Tokenizer padding=True -> attention mask; second sequence has 4 pad tokens.
    attention_mask = jnp.ones((B, L), jnp.int32).at[1, L - 4:].set(0)

    params = init_params(k_params, V, MAXLEN, H, NH, I, NL)

    last_hidden = hf_text_encoder_forward(token_ids, attention_mask, params,
                                          return_cls_only=False)
    last_hidden = jax.block_until_ready(last_hidden)
    cls_emb = hf_text_encoder_forward(token_ids, attention_mask, params,
                                      return_cls_only=True)
    cls_emb = jax.block_until_ready(cls_emb)

    ref_hidden = reference_forward(token_ids, attention_mask, params)
    # Kernel and reference share the same bf16/f32 math (folded scale, tanh GELU);
    # tolerance covers accumulation order + approximate-reciprocal softmax only.
    np.testing.assert_allclose(np.asarray(last_hidden), np.asarray(ref_hidden),
                               rtol=5e-3, atol=5e-3)
    np.testing.assert_allclose(np.asarray(cls_emb), np.asarray(ref_hidden[:, 0, :]),
                               rtol=5e-3, atol=5e-3)
    assert last_hidden.shape == (B, L, H) and cls_emb.shape == (B, H)
    print("KERNEL_OK")
</pallas_src>

<mosaic_0001>
module attributes {stable_mosaic.version = 11 : i64} {
  func.func @_encoder_kernel(%arg0: i32, %arg1: memref<32x128xf32, #tpu.memory_space<vmem>>, %arg2: memref<2x128xf32, #tpu.memory_space<vmem>>, %arg3: memref<1x128xf32, #tpu.memory_space<vmem>>, %arg4: memref<1x128xf32, #tpu.memory_space<vmem>>, %arg5: memref<1x128x384xbf16, #tpu.memory_space<vmem>>, %arg6: memref<1x1x384xf32, #tpu.memory_space<vmem>>, %arg7: memref<1x128x128xbf16, #tpu.memory_space<vmem>>, %arg8: memref<1x1x128xf32, #tpu.memory_space<vmem>>, %arg9: memref<1x1x128xf32, #tpu.memory_space<vmem>>, %arg10: memref<1x1x128xf32, #tpu.memory_space<vmem>>, %arg11: memref<1x128x512xbf16, #tpu.memory_space<vmem>>, %arg12: memref<1x1x512xf32, #tpu.memory_space<vmem>>, %arg13: memref<1x512x128xbf16, #tpu.memory_space<vmem>>, %arg14: memref<1x1x128xf32, #tpu.memory_space<vmem>>, %arg15: memref<1x1x128xf32, #tpu.memory_space<vmem>>, %arg16: memref<1x1x128xf32, #tpu.memory_space<vmem>>, %arg17: memref<32x128xf32, #tpu.memory_space<vmem>>, %arg18: memref<32x128xf32, #tpu.memory_space<vmem>>, %arg19: memref<32x128xf32, #tpu.memory_space<vmem>>) attributes {dimension_semantics = [#tpu.dimension_semantics<arbitrary>], iteration_bounds = array<i64: 2>, scalar_prefetch = 0 : i64, scratch_operands = 2 : i64, tpu.core_type = #tpu.core_type<tc>, window_params = [{pipeline_mode = #tpu.pipeline_mode<synchronous>, transform_indices = @transform_0, window_bounds = array<i64: 32, 128>}, {pipeline_mode = #tpu.pipeline_mode<synchronous>, transform_indices = @transform_1, window_bounds = array<i64: 2, 128>}, {pipeline_mode = #tpu.pipeline_mode<synchronous>, transform_indices = @transform_2, window_bounds = array<i64: 1, 128>}, {pipeline_mode = #tpu.pipeline_mode<synchronous>, transform_indices = @transform_3, window_bounds = array<i64: 1, 128>}, {transform_indices = @transform_4, window_bounds = array<i64: 1, 128, 384>}, {transform_indices = @transform_5, window_bounds = array<i64: 1, 1, 384>}, {transform_indices = @transform_6, window_bounds = array<i64: 1, 128, 128>}, {transform_indices = @transform_7, window_bounds = array<i64: 1, 1, 128>}, {transform_indices = @transform_8, window_bounds = array<i64: 1, 1, 128>}, {transform_indices = @transform_9, window_bounds = array<i64: 1, 1, 128>}, {transform_indices = @transform_10, window_bounds = array<i64: 1, 128, 512>}, {transform_indices = @transform_11, window_bounds = array<i64: 1, 1, 512>}, {transform_indices = @transform_12, window_bounds = array<i64: 1, 512, 128>}, {transform_indices = @transform_13, window_bounds = array<i64: 1, 1, 128>}, {transform_indices = @transform_14, window_bounds = array<i64: 1, 1, 128>}, {transform_indices = @transform_15, window_bounds = array<i64: 1, 1, 128>}, {pipeline_mode = #tpu.pipeline_mode<synchronous>, transform_indices = @transform_16, window_bounds = array<i64: 32, 128>}]} {
    %c0_i32 = arith.constant 0 : i32
    %0 = arith.cmpi eq, %arg0, %c0_i32 : i32
    %1 = arith.extui %0 : i1 to i32
    %c0_i32_0 = arith.constant 0 : i32
    %2 = arith.cmpi ne, %1, %c0_i32_0 : i32
    scf.if %2 {
      %c0_106 = arith.constant 0 : index
      %c0_107 = arith.constant 0 : index
      %286 = vector.load %arg1[%c0_106, %c0_107] : memref<32x128xf32, #tpu.memory_space<vmem>>, vector<32x128xf32>
      %c0_108 = arith.constant 0 : index
      %c0_109 = arith.constant 0 : index
      %287 = vector.load %arg3[%c0_108, %c0_109] : memref<1x128xf32, #tpu.memory_space<vmem>>, vector<1x128xf32>
      %c0_110 = arith.constant 0 : index
      %c0_111 = arith.constant 0 : index
      %288 = vector.load %arg4[%c0_110, %c0_111] : memref<1x128xf32, #tpu.memory_space<vmem>>, vector<1x128xf32>
      %cst_112 = arith.constant dense<0.000000e+00> : vector<32xf32>
      %289 = vector.multi_reduction <add>, %286, %cst_112 [1] : vector<32x128xf32> to vector<32xf32>
      %290 = vector.shape_cast %289 : vector<32xf32> to vector<32x1xf32>
      %cst_113 = arith.constant 1.280000e+02 : f32
      %291 = vector.broadcast %cst_113 : f32 to vector<32x1xf32>
      %292 = arith.divf %290, %291 : vector<32x1xf32>
      %293 = vector.broadcast %292 : vector<32x1xf32> to vector<32x128xf32>
      %294 = arith.subf %286, %293 : vector<32x128xf32>
      %295 = arith.mulf %294, %294 : vector<32x128xf32>
      %cst_114 = arith.constant dense<0.000000e+00> : vector<32xf32>
      %296 = vector.multi_reduction <add>, %295, %cst_114 [1] : vector<32x128xf32> to vector<32xf32>
      %297 = vector.shape_cast %296 : vector<32xf32> to vector<32x1xf32>
      %cst_115 = arith.constant 1.280000e+02 : f32
      %298 = vector.broadcast %cst_115 : f32 to vector<32x1xf32>
      %299 = arith.divf %297, %298 : vector<32x1xf32>
      %300 = vector.broadcast %292 : vector<32x1xf32> to vector<32x128xf32>
      %301 = arith.subf %286, %300 : vector<32x128xf32>
      %cst_116 = arith.constant 9.99999996E-13 : f32
      %302 = vector.broadcast %cst_116 : f32 to vector<32x1xf32>
      %303 = arith.addf %299, %302 : vector<32x1xf32>
      %304 = math.rsqrt %303 : vector<32x1xf32>
      %305 = vector.broadcast %304 : vector<32x1xf32> to vector<32x128xf32>
      %306 = arith.mulf %301, %305 : vector<32x128xf32>
      %307 = vector.broadcast %287 : vector<1x128xf32> to vector<32x128xf32>
      %308 = arith.mulf %306, %307 : vector<32x128xf32>
      %309 = vector.broadcast %288 : vector<1x128xf32> to vector<32x128xf32>
      %310 = arith.addf %308, %309 : vector<32x128xf32>
      %c0_117 = arith.constant 0 : index
      %c0_118 = arith.constant 0 : index
      %311 = vector.load %arg18[%c0_117, %c0_118] : memref<32x128xf32, #tpu.memory_space<vmem>>, vector<32x128xf32>
      tpu.vector_store %arg18[%c0_117, %c0_118], %310 {strides = array<i32>} : memref<32x128xf32, #tpu.memory_space<vmem>>, vector<32x128xf32>,
    } else {
    }
    %c0 = arith.constant 0 : index
    %c0_1 = arith.constant 0 : index
    %3 = vector.load %arg18[%c0, %c0_1] : memref<32x128xf32, #tpu.memory_space<vmem>>, vector<32x128xf32>
    %4 = arith.truncf %3 : vector<32x128xf32> to vector<32x128xbf16>
    %c0_2 = arith.constant 0 : index
    %c0_3 = arith.constant 0 : index
    %c0_4 = arith.constant 0 : index
    %5 = vector.load %arg5[%c0_2, %c0_3, %c0_4] : memref<1x128x384xbf16, #tpu.memory_space<vmem>>, vector<1x128x384xbf16>
    %6 = vector.shape_cast %5 : vector<1x128x384xbf16> to vector<128x384xbf16>
    %cst = arith.constant dense<0.000000e+00> : vector<32x384xf32>
    %7 = tpu.matmul %4, %6, %cst {dimension_numbers = #tpu.dot_dimension_numbers<[1], [0], [0], [1], [0, 0, 1, 1], [], []>} : vector<32x128xbf16>, vector<128x384xbf16>, vector<32x384xf32> -> vector<32x384xf32>
    %c0_5 = arith.constant 0 : index
    %c0_6 = arith.constant 0 : index
    %c0_7 = arith.constant 0 : index
    %8 = vector.load %arg6[%c0_5, %c0_6, %c0_7] : memref<1x1x384xf32, #tpu.memory_space<vmem>>, vector<1x1x384xf32>
    %9 = vector.shape_cast %8 : vector<1x1x384xf32> to vector<1x384xf32>
    %10 = vector.broadcast %9 : vector<1x384xf32> to vector<32x384xf32>
    %11 = arith.addf %7, %10 : vector<32x384xf32>
    %12 = vector.extract_strided_slice %11 {offsets = [0, 0], sizes = [32, 128], strides = [1, 1]} : vector<32x384xf32> to vector<32x128xf32>
    %13 = vector.extract_strided_slice %11 {offsets = [0, 128], sizes = [32, 128], strides = [1, 1]} : vector<32x384xf32> to vector<32x128xf32>
    %14 = vector.extract_strided_slice %11 {offsets = [0, 256], sizes = [32, 128], strides = [1, 1]} : vector<32x384xf32> to vector<32x128xf32>
    %c0_8 = arith.constant 0 : index
    %c0_9 = arith.constant 0 : index
    %15 = vector.load %arg2[%c0_8, %c0_9] : memref<2x128xf32, #tpu.memory_space<vmem>>, vector<2x128xf32>
    %16 = vector.extract_strided_slice %15 {offsets = [0, 0], sizes = [1, 16], strides = [1, 1]} : vector<2x128xf32> to vector<1x16xf32>
    %17 = vector.shape_cast %16 : vector<1x16xf32> to vector<1x16xf32>
    %18 = vector.broadcast %17 : vector<1x16xf32> to vector<16x16xf32>
    %19 = vector.extract_strided_slice %12 {offsets = [0, 0], sizes = [16, 32], strides = [1, 1]} : vector<32x128xf32> to vector<16x32xf32>
    %20 = arith.truncf %19 : vector<16x32xf32> to vector<16x32xbf16>
    %21 = vector.extract_strided_slice %13 {offsets = [0, 0], sizes = [16, 32], strides = [1, 1]} : vector<32x128xf32> to vector<16x32xf32>
    %22 = arith.truncf %21 : vector<16x32xf32> to vector<16x32xbf16>
    %23 = vector.extract_strided_slice %14 {offsets = [0, 0], sizes = [16, 32], strides = [1, 1]} : vector<32x128xf32> to vector<16x32xf32>
    %24 = arith.truncf %23 : vector<16x32xf32> to vector<16x32xbf16>
    %cst_10 = arith.constant dense<0.000000e+00> : vector<16x16xf32>
    %25 = tpu.matmul %20, %22, %cst_10 {dimension_numbers = #tpu.dot_dimension_numbers<[1], [1], [0], [0], [0, 0, 1, 0], [], []>} : vector<16x32xbf16>, vector<16x32xbf16>, vector<16x16xf32> -> vector<16x16xf32>
    %26 = arith.addf %25, %18 : vector<16x16xf32>
    %cst_11 = arith.constant dense<0xFF800000> : vector<16xf32>
    %27 = vector.multi_reduction <maximumf>, %26, %cst_11 [1] : vector<16x16xf32> to vector<16xf32>
    %28 = vector.shape_cast %27 : vector<16xf32> to vector<16x1xf32>
    %29 = vector.broadcast %28 : vector<16x1xf32> to vector<16x16xf32>
    %30 = arith.subf %26, %29 : vector<16x16xf32>
    %31 = math.exp %30 : vector<16x16xf32>
    %cst_12 = arith.constant dense<0.000000e+00> : vector<16xf32>
    %32 = vector.multi_reduction <add>, %31, %cst_12 [1] : vector<16x16xf32> to vector<16xf32>
    %33 = vector.shape_cast %32 : vector<16xf32> to vector<16x1xf32>
    %34 = tpu.reciprocal %33 {approx = true} : vector<16x1xf32> -> vector<16x1xf32>
    %35 = vector.broadcast %34 : vector<16x1xf32> to vector<16x16xf32>
    %36 = arith.mulf %31, %35 : vector<16x16xf32>
    %37 = arith.truncf %36 : vector<16x16xf32> to vector<16x16xbf16>
    %cst_13 = arith.constant dense<0.000000e+00> : vector<16x32xf32>
    %38 = tpu.matmul %37, %24, %cst_13 {dimension_numbers = #tpu.dot_dimension_numbers<[1], [0], [0], [1], [0, 0, 1, 1], [], []>} : vector<16x16xbf16>, vector<16x32xbf16>, vector<16x32xf32> -> vector<16x32xf32>
    %c0_14 = arith.constant 0 : index
    %c0_15 = arith.constant 0 : index
    %39 = vector.load %arg19[%c0_14, %c0_15] : memref<32x128xf32, #tpu.memory_space<vmem>>, vector<16x32xf32>
    tpu.vector_store %arg19[%c0_14, %c0_15], %38 {strides = array<i32>} : memref<32x128xf32, #tpu.memory_space<vmem>>, vector<16x32xf32>,
    %40 = vector.extract_strided_slice %12 {offsets = [0, 32], sizes = [16, 32], strides = [1, 1]} : vector<32x128xf32> to vector<16x32xf32>
    %41 = arith.truncf %40 : vector<16x32xf32> to vector<16x32xbf16>
    %42 = vector.extract_strided_slice %13 {offsets = [0, 32], sizes = [16, 32], strides = [1, 1]} : vector<32x128xf32> to vector<16x32xf32>
    %43 = arith.truncf %42 : vector<16x32xf32> to vector<16x32xbf16>
    %44 = vector.extract_strided_slice %14 {offsets = [0, 32], sizes = [16, 32], strides = [1, 1]} : vector<32x128xf32> to vector<16x32xf32>
    %45 = arith.truncf %44 : vector<16x32xf32> to vector<16x32xbf16>
    %cst_16 = arith.constant dense<0.000000e+00> : vector<16x16xf32>
    %46 = tpu.matmul %41, %43, %cst_16 {dimension_numbers = #tpu.dot_dimension_numbers<[1], [1], [0], [0], [0, 0, 1, 0], [], []>} : vector<16x32xbf16>, vector<16x32xbf16>, vector<16x16xf32> -> vector<16x16xf32>
    %47 = arith.addf %46, %18 : vector<16x16xf32>
    %cst_17 = arith.constant dense<0xFF800000> : vector<16xf32>
    %48 = vector.multi_reduction <maximumf>, %47, %cst_17 [1] : vector<16x16xf32> to vector<16xf32>
    %49 = vector.shape_cast %48 : vector<16xf32> to vector<16x1xf32>
    %50 = vector.broadcast %49 : vector<16x1xf32> to vector<16x16xf32>
    %51 = arith.subf %47, %50 : vector<16x16xf32>
    %52 = math.exp %51 : vector<16x16xf32>
    %cst_18 = arith.constant dense<0.000000e+00> : vector<16xf32>
    %53 = vector.multi_reduction <add>, %52, %cst_18 [1] : vector<16x16xf32> to vector<16xf32>
    %54 = vector.shape_cast %53 : vector<16xf32> to vector<16x1xf32>
    %55 = tpu.reciprocal %54 {approx = true} : vector<16x1xf32> -> vector<16x1xf32>
    %56 = vector.broadcast %55 : vector<16x1xf32> to vector<16x16xf32>
    %57 = arith.mulf %52, %56 : vector<16x16xf32>
    %58 = arith.truncf %57 : vector<16x16xf32> to vector<16x16xbf16>
    %cst_19 = arith.constant dense<0.000000e+00> : vector<16x32xf32>
    %59 = tpu.matmul %58, %45, %cst_19 {dimension_numbers = #tpu.dot_dimension_numbers<[1], [0], [0], [1], [0, 0, 1, 1], [], []>} : vector<16x16xbf16>, vector<16x32xbf16>, vector<16x32xf32> -> vector<16x32xf32>
    %c0_20 = arith.constant 0 : index
    %c32 = arith.constant 32 : index
    %60 = vector.load %arg19[%c0_20, %c32] : memref<32x128xf32, #tpu.memory_space<vmem>>, vector<16x32xf32>
    tpu.vector_store %arg19[%c0_20, %c32], %59 {strides = array<i32>} : memref<32x128xf32, #tpu.memory_space<vmem>>, vector<16x32xf32>,
    %61 = vector.extract_strided_slice %12 {offsets = [0, 64], sizes = [16, 32], strides = [1, 1]} : vector<32x128xf32> to vector<16x32xf32>
    %62 = arith.truncf %61 : vector<16x32xf32> to vector<16x32xbf16>
    %63 = vector.extract_strided_slice %13 {offsets = [0, 64], sizes = [16, 32], strides = [1, 1]} : vector<32x128xf32> to vector<16x32xf32>
    %64 = arith.truncf %63 : vector<16x32xf32> to vector<16x32xbf16>
    %65 = vector.extract_strided_slice %14 {offsets = [0, 64], sizes = [16, 32], strides = [1, 1]} : vector<32x128xf32> to vector<16x32xf32>
    %66 = arith.truncf %65 : vector<16x32xf32> to vector<16x32xbf16>
    %cst_21 = arith.constant dense<0.000000e+00> : vector<16x16xf32>
    %67 = tpu.matmul %62, %64, %cst_21 {dimension_numbers = #tpu.dot_dimension_numbers<[1], [1], [0], [0], [0, 0, 1, 0], [], []>} : vector<16x32xbf16>, vector<16x32xbf16>, vector<16x16xf32> -> vector<16x16xf32>
    %68 = arith.addf %67, %18 : vector<16x16xf32>
    %cst_22 = arith.constant dense<0xFF800000> : vector<16xf32>
    %69 = vector.multi_reduction <maximumf>, %68, %cst_22 [1] : vector<16x16xf32> to vector<16xf32>
    %70 = vector.shape_cast %69 : vector<16xf32> to vector<16x1xf32>
    %71 = vector.broadcast %70 : vector<16x1xf32> to vector<16x16xf32>
    %72 = arith.subf %68, %71 : vector<16x16xf32>
    %73 = math.exp %72 : vector<16x16xf32>
    %cst_23 = arith.constant dense<0.000000e+00> : vector<16xf32>
    %74 = vector.multi_reduction <add>, %73, %cst_23 [1] : vector<16x16xf32> to vector<16xf32>
    %75 = vector.shape_cast %74 : vector<16xf32> to vector<16x1xf32>
    %76 = tpu.reciprocal %75 {approx = true} : vector<16x1xf32> -> vector<16x1xf32>
    %77 = vector.broadcast %76 : vector<16x1xf32> to vector<16x16xf32>
    %78 = arith.mulf %73, %77 : vector<16x16xf32>
    %79 = arith.truncf %78 : vector<16x16xf32> to vector<16x16xbf16>
    %cst_24 = arith.constant dense<0.000000e+00> : vector<16x32xf32>
    %80 = tpu.matmul %79, %66, %cst_24 {dimension_numbers = #tpu.dot_dimension_numbers<[1], [0], [0], [1], [0, 0, 1, 1], [], []>} : vector<16x16xbf16>, vector<16x32xbf16>, vector<16x32xf32> -> vector<16x32xf32>
    %c0_25 = arith.constant 0 : index
    %c64 = arith.constant 64 : index
    %81 = vector.load %arg19[%c0_25, %c64] : memref<32x128xf32, #tpu.memory_space<vmem>>, vector<16x32xf32>
    tpu.vector_store %arg19[%c0_25, %c64], %80 {strides = array<i32>} : memref<32x128xf32, #tpu.memory_space<vmem>>, vector<16x32xf32>,
    %82 = vector.extract_strided_slice %12 {offsets = [0, 96], sizes = [16, 32], strides = [1, 1]} : vector<32x128xf32> to vector<16x32xf32>
    %83 = arith.truncf %82 : vector<16x32xf32> to vector<16x32xbf16>
    %84 = vector.extract_strided_slice %13 {offsets = [0, 96], sizes = [16, 32], strides = [1, 1]} : vector<32x128xf32> to vector<16x32xf32>
    %85 = arith.truncf %84 : vector<16x32xf32> to vector<16x32xbf16>
    %86 = vector.extract_strided_slice %14 {offsets = [0, 96], sizes = [16, 32], strides = [1, 1]} : vector<32x128xf32> to vector<16x32xf32>
    %87 = arith.truncf %86 : vector<16x32xf32> to vector<16x32xbf16>
    %cst_26 = arith.constant dense<0.000000e+00> : vector<16x16xf32>
    %88 = tpu.matmul %83, %85, %cst_26 {dimension_numbers = #tpu.dot_dimension_numbers<[1], [1], [0], [0], [0, 0, 1, 0], [], []>} : vector<16x32xbf16>, vector<16x32xbf16>, vector<16x16xf32> -> vector<16x16xf32>
    %89 = arith.addf %88, %18 : vector<16x16xf32>
    %cst_27 = arith.constant dense<0xFF800000> : vector<16xf32>
    %90 = vector.multi_reduction <maximumf>, %89, %cst_27 [1] : vector<16x16xf32> to vector<16xf32>
    %91 = vector.shape_cast %90 : vector<16xf32> to vector<16x1xf32>
    %92 = vector.broadcast %91 : vector<16x1xf32> to vector<16x16xf32>
    %93 = arith.subf %89, %92 : vector<16x16xf32>
    %94 = math.exp %93 : vector<16x16xf32>
    %cst_28 = arith.constant dense<0.000000e+00> : vector<16xf32>
    %95 = vector.multi_reduction <add>, %94, %cst_28 [1] : vector<16x16xf32> to vector<16xf32>
    %96 = vector.shape_cast %95 : vector<16xf32> to vector<16x1xf32>
    %97 = tpu.reciprocal %96 {approx = true} : vector<16x1xf32> -> vector<16x1xf32>
    %98 = vector.broadcast %97 : vector<16x1xf32> to vector<16x16xf32>
    %99 = arith.mulf %94, %98 : vector<16x16xf32>
    %100 = arith.truncf %99 : vector<16x16xf32> to vector<16x16xbf16>
    %cst_29 = arith.constant dense<0.000000e+00> : vector<16x32xf32>
    %101 = tpu.matmul %100, %87, %cst_29 {dimension_numbers = #tpu.dot_dimension_numbers<[1], [0], [0], [1], [0, 0, 1, 1], [], []>} : vector<16x16xbf16>, vector<16x32xbf16>, vector<16x32xf32> -> vector<16x32xf32>
    %c0_30 = arith.constant 0 : index
    %c96 = arith.constant 96 : index
    %102 = vector.load %arg19[%c0_30, %c96] : memref<32x128xf32, #tpu.memory_space<vmem>>, vector<16x32xf32>
    tpu.vector_store %arg19[%c0_30, %c96], %101 {strides = array<i32>} : memref<32x128xf32, #tpu.memory_space<vmem>>, vector<16x32xf32>,
    %103 = vector.extract_strided_slice %15 {offsets = [1, 0], sizes = [1, 16], strides = [1, 1]} : vector<2x128xf32> to vector<1x16xf32>
    %104 = vector.shape_cast %103 : vector<1x16xf32> to vector<1x16xf32>
    %105 = vector.broadcast %104 : vector<1x16xf32> to vector<16x16xf32>
    %106 = vector.extract_strided_slice %12 {offsets = [16, 0], sizes = [16, 32], strides = [1, 1]} : vector<32x128xf32> to vector<16x32xf32>
    %107 = arith.truncf %106 : vector<16x32xf32> to vector<16x32xbf16>
    %108 = vector.extract_strided_slice %13 {offsets = [16, 0], sizes = [16, 32], strides = [1, 1]} : vector<32x128xf32> to vector<16x32xf32>
    %109 = arith.truncf %108 : vector<16x32xf32> to vector<16x32xbf16>
    %110 = vector.extract_strided_slice %14 {offsets = [16, 0], sizes = [16, 32], strides = [1, 1]} : vector<32x128xf32> to vector<16x32xf32>
    %111 = arith.truncf %110 : vector<16x32xf32> to vector<16x32xbf16>
    %cst_31 = arith.constant dense<0.000000e+00> : vector<16x16xf32>
    %112 = tpu.matmul %107, %109, %cst_31 {dimension_numbers = #tpu.dot_dimension_numbers<[1], [1], [0], [0], [0, 0, 1, 0], [], []>} : vector<16x32xbf16>, vector<16x32xbf16>, vector<16x16xf32> -> vector<16x16xf32>
    %113 = arith.addf %112, %105 : vector<16x16xf32>
    %cst_32 = arith.constant dense<0xFF800000> : vector<16xf32>
    %114 = vector.multi_reduction <maximumf>, %113, %cst_32 [1] : vector<16x16xf32> to vector<16xf32>
    %115 = vector.shape_cast %114 : vector<16xf32> to vector<16x1xf32>
    %116 = vector.broadcast %115 : vector<16x1xf32> to vector<16x16xf32>
    %117 = arith.subf %113, %116 : vector<16x16xf32>
    %118 = math.exp %117 : vector<16x16xf32>
    %cst_33 = arith.constant dense<0.000000e+00> : vector<16xf32>
    %119 = vector.multi_reduction <add>, %118, %cst_33 [1] : vector<16x16xf32> to vector<16xf32>
    %120 = vector.shape_cast %119 : vector<16xf32> to vector<16x1xf32>
    %121 = tpu.reciprocal %120 {approx = true} : vector<16x1xf32> -> vector<16x1xf32>
    %122 = vector.broadcast %121 : vector<16x1xf32> to vector<16x16xf32>
    %123 = arith.mulf %118, %122 : vector<16x16xf32>
    %124 = arith.truncf %123 : vector<16x16xf32> to vector<16x16xbf16>
    %cst_34 = arith.constant dense<0.000000e+00> : vector<16x32xf32>
    %125 = tpu.matmul %124, %111, %cst_34 {dimension_numbers = #tpu.dot_dimension_numbers<[1], [0], [0], [1], [0, 0, 1, 1], [], []>} : vector<16x16xbf16>, vector<16x32xbf16>, vector<16x32xf32> -> vector<16x32xf32>
    %c16 = arith.constant 16 : index
    %c0_35 = arith.constant 0 : index
    %126 = vector.load %arg19[%c16, %c0_35] : memref<32x128xf32, #tpu.memory_space<vmem>>, vector<16x32xf32>
    tpu.vector_store %arg19[%c16, %c0_35], %125 {strides = array<i32>} : memref<32x128xf32, #tpu.memory_space<vmem>>, vector<16x32xf32>,
    %127 = vector.extract_strided_slice %12 {offsets = [16, 32], sizes = [16, 32], strides = [1, 1]} : vector<32x128xf32> to vector<16x32xf32>
    %128 = arith.truncf %127 : vector<16x32xf32> to vector<16x32xbf16>
    %129 = vector.extract_strided_slice %13 {offsets = [16, 32], sizes = [16, 32], strides = [1, 1]} : vector<32x128xf32> to vector<16x32xf32>
    %130 = arith.truncf %129 : vector<16x32xf32> to vector<16x32xbf16>
    %131 = vector.extract_strided_slice %14 {offsets = [16, 32], sizes = [16, 32], strides = [1, 1]} : vector<32x128xf32> to vector<16x32xf32>
    %132 = arith.truncf %131 : vector<16x32xf32> to vector<16x32xbf16>
    %cst_36 = arith.constant dense<0.000000e+00> : vector<16x16xf32>
    %133 = tpu.matmul %128, %130, %cst_36 {dimension_numbers = #tpu.dot_dimension_numbers<[1], [1], [0], [0], [0, 0, 1, 0], [], []>} : vector<16x32xbf16>, vector<16x32xbf16>, vector<16x16xf32> -> vector<16x16xf32>
    %134 = arith.addf %133, %105 : vector<16x16xf32>
    %cst_37 = arith.constant dense<0xFF800000> : vector<16xf32>
    %135 = vector.multi_reduction <maximumf>, %134, %cst_37 [1] : vector<16x16xf32> to vector<16xf32>
    %136 = vector.shape_cast %135 : vector<16xf32> to vector<16x1xf32>
    %137 = vector.broadcast %136 : vector<16x1xf32> to vector<16x16xf32>
    %138 = arith.subf %134, %137 : vector<16x16xf32>
    %139 = math.exp %138 : vector<16x16xf32>
    %cst_38 = arith.constant dense<0.000000e+00> : vector<16xf32>
    %140 = vector.multi_reduction <add>, %139, %cst_38 [1] : vector<16x16xf32> to vector<16xf32>
    %141 = vector.shape_cast %140 : vector<16xf32> to vector<16x1xf32>
    %142 = tpu.reciprocal %141 {approx = true} : vector<16x1xf32> -> vector<16x1xf32>
    %143 = vector.broadcast %142 : vector<16x1xf32> to vector<16x16xf32>
    %144 = arith.mulf %139, %143 : vector<16x16xf32>
    %145 = arith.truncf %144 : vector<16x16xf32> to vector<16x16xbf16>
    %cst_39 = arith.constant dense<0.000000e+00> : vector<16x32xf32>
    %146 = tpu.matmul %145, %132, %cst_39 {dimension_numbers = #tpu.dot_dimension_numbers<[1], [0], [0], [1], [0, 0, 1, 1], [], []>} : vector<16x16xbf16>, vector<16x32xbf16>, vector<16x32xf32> -> vector<16x32xf32>
    %c16_40 = arith.constant 16 : index
    %c32_41 = arith.constant 32 : index
    %147 = vector.load %arg19[%c16_40, %c32_41] : memref<32x128xf32, #tpu.memory_space<vmem>>, vector<16x32xf32>
    tpu.vector_store %arg19[%c16_40, %c32_41], %146 {strides = array<i32>} : memref<32x128xf32, #tpu.memory_space<vmem>>, vector<16x32xf32>,
    %148 = vector.extract_strided_slice %12 {offsets = [16, 64], sizes = [16, 32], strides = [1, 1]} : vector<32x128xf32> to vector<16x32xf32>
    %149 = arith.truncf %148 : vector<16x32xf32> to vector<16x32xbf16>
    %150 = vector.extract_strided_slice %13 {offsets = [16, 64], sizes = [16, 32], strides = [1, 1]} : vector<32x128xf32> to vector<16x32xf32>
    %151 = arith.truncf %150 : vector<16x32xf32> to vector<16x32xbf16>
    %152 = vector.extract_strided_slice %14 {offsets = [16, 64], sizes = [16, 32], strides = [1, 1]} : vector<32x128xf32> to vector<16x32xf32>
    %153 = arith.truncf %152 : vector<16x32xf32> to vector<16x32xbf16>
    %cst_42 = arith.constant dense<0.000000e+00> : vector<16x16xf32>
    %154 = tpu.matmul %149, %151, %cst_42 {dimension_numbers = #tpu.dot_dimension_numbers<[1], [1], [0], [0], [0, 0, 1, 0], [], []>} : vector<16x32xbf16>, vector<16x32xbf16>, vector<16x16xf32> -> vector<16x16xf32>
    %155 = arith.addf %154, %105 : vector<16x16xf32>
    %cst_43 = arith.constant dense<0xFF800000> : vector<16xf32>
    %156 = vector.multi_reduction <maximumf>, %155, %cst_43 [1] : vector<16x16xf32> to vector<16xf32>
    %157 = vector.shape_cast %156 : vector<16xf32> to vector<16x1xf32>
    %158 = vector.broadcast %157 : vector<16x1xf32> to vector<16x16xf32>
    %159 = arith.subf %155, %158 : vector<16x16xf32>
    %160 = math.exp %159 : vector<16x16xf32>
    %cst_44 = arith.constant dense<0.000000e+00> : vector<16xf32>
    %161 = vector.multi_reduction <add>, %160, %cst_44 [1] : vector<16x16xf32> to vector<16xf32>
    %162 = vector.shape_cast %161 : vector<16xf32> to vector<16x1xf32>
    %163 = tpu.reciprocal %162 {approx = true} : vector<16x1xf32> -> vector<16x1xf32>
    %164 = vector.broadcast %163 : vector<16x1xf32> to vector<16x16xf32>
    %165 = arith.mulf %160, %164 : vector<16x16xf32>
    %166 = arith.truncf %165 : vector<16x16xf32> to vector<16x16xbf16>
    %cst_45 = arith.constant dense<0.000000e+00> : vector<16x32xf32>
    %167 = tpu.matmul %166, %153, %cst_45 {dimension_numbers = #tpu.dot_dimension_numbers<[1], [0], [0], [1], [0, 0, 1, 1], [], []>} : vector<16x16xbf16>, vector<16x32xbf16>, vector<16x32xf32> -> vector<16x32xf32>
    %c16_46 = arith.constant 16 : index
    %c64_47 = arith.constant 64 : index
    %168 = vector.load %arg19[%c16_46, %c64_47] : memref<32x128xf32, #tpu.memory_space<vmem>>, vector<16x32xf32>
    tpu.vector_store %arg19[%c16_46, %c64_47], %167 {strides = array<i32>} : memref<32x128xf32, #tpu.memory_space<vmem>>, vector<16x32xf32>,
    %169 = vector.extract_strided_slice %12 {offsets = [16, 96], sizes = [16, 32], strides = [1, 1]} : vector<32x128xf32> to vector<16x32xf32>
    %170 = arith.truncf %169 : vector<16x32xf32> to vector<16x32xbf16>
    %171 = vector.extract_strided_slice %13 {offsets = [16, 96], sizes = [16, 32], strides = [1, 1]} : vector<32x128xf32> to vector<16x32xf32>
    %172 = arith.truncf %171 : vector<16x32xf32> to vector<16x32xbf16>
    %173 = vector.extract_strided_slice %14 {offsets = [16, 96], sizes = [16, 32], strides = [1, 1]} : vector<32x128xf32> to vector<16x32xf32>
    %174 = arith.truncf %173 : vector<16x32xf32> to vector<16x32xbf16>
    %cst_48 = arith.constant dense<0.000000e+00> : vector<16x16xf32>
    %175 = tpu.matmul %170, %172, %cst_48 {dimension_numbers = #tpu.dot_dimension_numbers<[1], [1], [0], [0], [0, 0, 1, 0], [], []>} : vector<16x32xbf16>, vector<16x32xbf16>, vector<16x16xf32> -> vector<16x16xf32>
    %176 = arith.addf %175, %105 : vector<16x16xf32>
    %cst_49 = arith.constant dense<0xFF800000> : vector<16xf32>
    %177 = vector.multi_reduction <maximumf>, %176, %cst_49 [1] : vector<16x16xf32> to vector<16xf32>
    %178 = vector.shape_cast %177 : vector<16xf32> to vector<16x1xf32>
    %179 = vector.broadcast %178 : vector<16x1xf32> to vector<16x16xf32>
    %180 = arith.subf %176, %179 : vector<16x16xf32>
    %181 = math.exp %180 : vector<16x16xf32>
    %cst_50 = arith.constant dense<0.000000e+00> : vector<16xf32>
    %182 = vector.multi_reduction <add>, %181, %cst_50 [1] : vector<16x16xf32> to vector<16xf32>
    %183 = vector.shape_cast %182 : vector<16xf32> to vector<16x1xf32>
    %184 = tpu.reciprocal %183 {approx = true} : vector<16x1xf32> -> vector<16x1xf32>
    %185 = vector.broadcast %184 : vector<16x1xf32> to vector<16x16xf32>
    %186 = arith.mulf %181, %185 : vector<16x16xf32>
    %187 = arith.truncf %186 : vector<16x16xf32> to vector<16x16xbf16>
    %cst_51 = arith.constant dense<0.000000e+00> : vector<16x32xf32>
    %188 = tpu.matmul %187, %174, %cst_51 {dimension_numbers = #tpu.dot_dimension_numbers<[1], [0], [0], [1], [0, 0, 1, 1], [], []>} : vector<16x16xbf16>, vector<16x32xbf16>, vector<16x32xf32> -> vector<16x32xf32>
    %c16_52 = arith.constant 16 : index
    %c96_53 = arith.constant 96 : index
    %189 = vector.load %arg19[%c16_52, %c96_53] : memref<32x128xf32, #tpu.memory_space<vmem>>, vector<16x32xf32>
    tpu.vector_store %arg19[%c16_52, %c96_53], %188 {strides = array<i32>} : memref<32x128xf32, #tpu.memory_space<vmem>>, vector<16x32xf32>,
    %c0_54 = arith.constant 0 : index
    %c0_55 = arith.constant 0 : index
    %190 = vector.load %arg19[%c0_54, %c0_55] : memref<32x128xf32, #tpu.memory_space<vmem>>, vector<32x128xf32>
    %191 = arith.truncf %190 : vector<32x128xf32> to vector<32x128xbf16>
    %c0_56 = arith.constant 0 : index
    %c0_57 = arith.constant 0 : index
    %c0_58 = arith.constant 0 : index
    %192 = vector.load %arg7[%c0_56, %c0_57, %c0_58] : memref<1x128x128xbf16, #tpu.memory_space<vmem>>, vector<1x128x128xbf16>
    %193 = vector.shape_cast %192 : vector<1x128x128xbf16> to vector<128x128xbf16>
    %cst_59 = arith.constant dense<0.000000e+00> : vector<32x128xf32>
    %194 = tpu.matmul %191, %193, %cst_59 {dimension_numbers = #tpu.dot_dimension_numbers<[1], [0], [0], [1], [0, 0, 1, 1], [], []>} : vector<32x128xbf16>, vector<128x128xbf16>, vector<32x128xf32> -> vector<32x128xf32>
    %c0_60 = arith.constant 0 : index
    %c0_61 = arith.constant 0 : index
    %c0_62 = arith.constant 0 : index
    %195 = vector.load %arg8[%c0_60, %c0_61, %c0_62] : memref<1x1x128xf32, #tpu.memory_space<vmem>>, vector<1x1x128xf32>
    %196 = vector.shape_cast %195 : vector<1x1x128xf32> to vector<1x128xf32>
    %197 = vector.broadcast %196 : vector<1x128xf32> to vector<32x128xf32>
    %198 = arith.addf %194, %197 : vector<32x128xf32>
    %199 = arith.addf %3, %198 : vector<32x128xf32>
    %c0_63 = arith.constant 0 : index
    %c0_64 = arith.constant 0 : index
    %c0_65 = arith.constant 0 : index
    %200 = vector.load %arg9[%c0_63, %c0_64, %c0_65] : memref<1x1x128xf32, #tpu.memory_space<vmem>>, vector<1x1x128xf32>
    %201 = vector.shape_cast %200 : vector<1x1x128xf32> to vector<1x128xf32>
    %c0_66 = arith.constant 0 : index
    %c0_67 = arith.constant 0 : index
    %c0_68 = arith.constant 0 : index
    %202 = vector.load %arg10[%c0_66, %c0_67, %c0_68] : memref<1x1x128xf32, #tpu.memory_space<vmem>>, vector<1x1x128xf32>
    %203 = vector.shape_cast %202 : vector<1x1x128xf32> to vector<1x128xf32>
    %cst_69 = arith.constant dense<0.000000e+00> : vector<32xf32>
    %204 = vector.multi_reduction <add>, %199, %cst_69 [1] : vector<32x128xf32> to vector<32xf32>
    %205 = vector.shape_cast %204 : vector<32xf32> to vector<32x1xf32>
    %cst_70 = arith.constant 1.280000e+02 : f32
    %206 = vector.broadcast %cst_70 : f32 to vector<32x1xf32>
    %207 = arith.divf %205, %206 : vector<32x1xf32>
    %208 = vector.broadcast %207 : vector<32x1xf32> to vector<32x128xf32>
    %209 = arith.subf %199, %208 : vector<32x128xf32>
    %210 = arith.mulf %209, %209 : vector<32x128xf32>
    %cst_71 = arith.constant dense<0.000000e+00> : vector<32xf32>
    %211 = vector.multi_reduction <add>, %210, %cst_71 [1] : vector<32x128xf32> to vector<32xf32>
    %212 = vector.shape_cast %211 : vector<32xf32> to vector<32x1xf32>
    %cst_72 = arith.constant 1.280000e+02 : f32
    %213 = vector.broadcast %cst_72 : f32 to vector<32x1xf32>
    %214 = arith.divf %212, %213 : vector<32x1xf32>
    %215 = vector.broadcast %207 : vector<32x1xf32> to vector<32x128xf32>
    %216 = arith.subf %199, %215 : vector<32x128xf32>
    %cst_73 = arith.constant 9.99999996E-13 : f32
    %217 = vector.broadcast %cst_73 : f32 to vector<32x1xf32>
    %218 = arith.addf %214, %217 : vector<32x1xf32>
    %219 = math.rsqrt %218 : vector<32x1xf32>
    %220 = vector.broadcast %219 : vector<32x1xf32> to vector<32x128xf32>
    %221 = arith.mulf %216, %220 : vector<32x128xf32>
    %222 = vector.broadcast %201 : vector<1x128xf32> to vector<32x128xf32>
    %223 = arith.mulf %221, %222 : vector<32x128xf32>
    %224 = vector.broadcast %203 : vector<1x128xf32> to vector<32x128xf32>
    %225 = arith.addf %223, %224 : vector<32x128xf32>
    %226 = arith.truncf %225 : vector<32x128xf32> to vector<32x128xbf16>
    %c0_74 = arith.constant 0 : index
    %c0_75 = arith.constant 0 : index
    %c0_76 = arith.constant 0 : index
    %227 = vector.load %arg11[%c0_74, %c0_75, %c0_76] : memref<1x128x512xbf16, #tpu.memory_space<vmem>>, vector<1x128x512xbf16>
    %228 = vector.shape_cast %227 : vector<1x128x512xbf16> to vector<128x512xbf16>
    %cst_77 = arith.constant dense<0.000000e+00> : vector<32x512xf32>
    %229 = tpu.matmul %226, %228, %cst_77 {dimension_numbers = #tpu.dot_dimension_numbers<[1], [0], [0], [1], [0, 0, 1, 1], [], []>} : vector<32x128xbf16>, vector<128x512xbf16>, vector<32x512xf32> -> vector<32x512xf32>
    %c0_78 = arith.constant 0 : index
    %c0_79 = arith.constant 0 : index
    %c0_80 = arith.constant 0 : index
    %230 = vector.load %arg12[%c0_78, %c0_79, %c0_80] : memref<1x1x512xf32, #tpu.memory_space<vmem>>, vector<1x1x512xf32>
    %231 = vector.shape_cast %230 : vector<1x1x512xf32> to vector<1x512xf32>
    %232 = vector.broadcast %231 : vector<1x512xf32> to vector<32x512xf32>
    %233 = arith.addf %229, %232 : vector<32x512xf32>
    %cst_81 = arith.constant 5.000000e-01 : f32
    %234 = vector.broadcast %cst_81 : f32 to vector<32x512xf32>
    %235 = arith.mulf %234, %233 : vector<32x512xf32>
    %cst_82 = arith.constant 4.471500e-02 : f32
    %236 = vector.broadcast %cst_82 : f32 to vector<32x512xf32>
    %237 = arith.mulf %236, %233 : vector<32x512xf32>
    %238 = arith.mulf %237, %233 : vector<32x512xf32>
    %239 = arith.mulf %238, %233 : vector<32x512xf32>
    %240 = arith.addf %233, %239 : vector<32x512xf32>
    %cst_83 = arith.constant 0.797884583 : f32
    %241 = vector.broadcast %cst_83 : f32 to vector<32x512xf32>
    %242 = arith.mulf %241, %240 : vector<32x512xf32>
    %243 = math.tanh %242 : vector<32x512xf32>
    %cst_84 = arith.constant 1.000000e+00 : f32
    %244 = vector.broadcast %cst_84 : f32 to vector<32x512xf32>
    %245 = arith.addf %244, %243 : vector<32x512xf32>
    %246 = arith.mulf %235, %245 : vector<32x512xf32>
    %247 = arith.truncf %246 : vector<32x512xf32> to vector<32x512xbf16>
    %c0_85 = arith.constant 0 : index
    %c0_86 = arith.constant 0 : index
    %c0_87 = arith.constant 0 : index
    %248 = vector.load %arg13[%c0_85, %c0_86, %c0_87] : memref<1x512x128xbf16, #tpu.memory_space<vmem>>, vector<1x512x128xbf16>
    %249 = vector.shape_cast %248 : vector<1x512x128xbf16> to vector<512x128xbf16>
    %cst_88 = arith.constant dense<0.000000e+00> : vector<32x128xf32>
    %250 = tpu.matmul %247, %249, %cst_88 {dimension_numbers = #tpu.dot_dimension_numbers<[1], [0], [0], [1], [0, 0, 1, 1], [], []>} : vector<32x512xbf16>, vector<512x128xbf16>, vector<32x128xf32> -> vector<32x128xf32>
    %c0_89 = arith.constant 0 : index
    %c0_90 = arith.constant 0 : index
    %c0_91 = arith.constant 0 : index
    %251 = vector.load %arg14[%c0_89, %c0_90, %c0_91] : memref<1x1x128xf32, #tpu.memory_space<vmem>>, vector<1x1x128xf32>
    %252 = vector.shape_cast %251 : vector<1x1x128xf32> to vector<1x128xf32>
    %253 = vector.broadcast %252 : vector<1x128xf32> to vector<32x128xf32>
    %254 = arith.addf %250, %253 : vector<32x128xf32>
    %255 = arith.addf %225, %254 : vector<32x128xf32>
    %c0_92 = arith.constant 0 : index
    %c0_93 = arith.constant 0 : index
    %c0_94 = arith.constant 0 : index
    %256 = vector.load %arg15[%c0_92, %c0_93, %c0_94] : memref<1x1x128xf32, #tpu.memory_space<vmem>>, vector<1x1x128xf32>
    %257 = vector.shape_cast %256 : vector<1x1x128xf32> to vector<1x128xf32>
    %c0_95 = arith.constant 0 : index
    %c0_96 = arith.constant 0 : index
    %c0_97 = arith.constant 0 : index
    %258 = vector.load %arg16[%c0_95, %c0_96, %c0_97] : memref<1x1x128xf32, #tpu.memory_space<vmem>>, vector<1x1x128xf32>
    %259 = vector.shape_cast %258 : vector<1x1x128xf32> to vector<1x128xf32>
    %cst_98 = arith.constant dense<0.000000e+00> : vector<32xf32>
    %260 = vector.multi_reduction <add>, %255, %cst_98 [1] : vector<32x128xf32> to vector<32xf32>
    %261 = vector.shape_cast %260 : vector<32xf32> to vector<32x1xf32>
    %cst_99 = arith.constant 1.280000e+02 : f32
    %262 = vector.broadcast %cst_99 : f32 to vector<32x1xf32>
    %263 = arith.divf %261, %262 : vector<32x1xf32>
    %264 = vector.broadcast %263 : vector<32x1xf32> to vector<32x128xf32>
    %265 = arith.subf %255, %264 : vector<32x128xf32>
    %266 = arith.mulf %265, %265 : vector<32x128xf32>
    %cst_100 = arith.constant dense<0.000000e+00> : vector<32xf32>
    %267 = vector.multi_reduction <add>, %266, %cst_100 [1] : vector<32x128xf32> to vector<32xf32>
    %268 = vector.shape_cast %267 : vector<32xf32> to vector<32x1xf32>
    %cst_101 = arith.constant 1.280000e+02 : f32
    %269 = vector.broadcast %cst_101 : f32 to vector<32x1xf32>
    %270 = arith.divf %268, %269 : vector<32x1xf32>
    %271 = vector.broadcast %263 : vector<32x1xf32> to vector<32x128xf32>
    %272 = arith.subf %255, %271 : vector<32x128xf32>
    %cst_102 = arith.constant 9.99999996E-13 : f32
    %273 = vector.broadcast %cst_102 : f32 to vector<32x1xf32>
    %274 = arith.addf %270, %273 : vector<32x1xf32>
    %275 = math.rsqrt %274 : vector<32x1xf32>
    %276 = vector.broadcast %275 : vector<32x1xf32> to vector<32x128xf32>
    %277 = arith.mulf %272, %276 : vector<32x128xf32>
    %278 = vector.broadcast %257 : vector<1x128xf32> to vector<32x128xf32>
    %279 = arith.mulf %277, %278 : vector<32x128xf32>
    %280 = vector.broadcast %259 : vector<1x128xf32> to vector<32x128xf32>
    %281 = arith.addf %279, %280 : vector<32x128xf32>
    %c0_103 = arith.constant 0 : index
    %c0_104 = arith.constant 0 : index
    %282 = vector.load %arg18[%c0_103, %c0_104] : memref<32x128xf32, #tpu.memory_space<vmem>>, vector<32x128xf32>
    tpu.vector_store %arg18[%c0_103, %c0_104], %281 {strides = array<i32>} : memref<32x128xf32, #tpu.memory_space<vmem>>, vector<32x128xf32>,
    %c1_i32 = arith.constant 1 : i32
    %283 = arith.cmpi eq, %arg0, %c1_i32 : i32
    %284 = arith.extui %283 : i1 to i32
    %c0_i32_105 = arith.constant 0 : i32
    %285 = arith.cmpi ne, %284, %c0_i32_105 : i32
    scf.if %285 {
      %c0_106 = arith.constant 0 : index
      %c0_107 = arith.constant 0 : index
      %286 = vector.load %arg17[%c0_106, %c0_107] : memref<32x128xf32, #tpu.memory_space<vmem>>, vector<32x128xf32>
      tpu.vector_store %arg17[%c0_106, %c0_107], %281 {strides = array<i32>} : memref<32x128xf32, #tpu.memory_space<vmem>>, vector<32x128xf32>,
    } else {
    }
    return
  }
  func.func @transform_0(%arg0: i32) -> (i32, i32) {
    %c0_i32 = arith.constant 0 : i32
    %c0_i32_0 = arith.constant 0 : i32
    %c0_i32_1 = arith.constant 0 : i32
    return %c0_i32, %c0_i32_0 : i32, i32
  }
  func.func @transform_1(%arg0: i32) -> (i32, i32) {
    %c0_i32 = arith.constant 0 : i32
    %c0_i32_0 = arith.constant 0 : i32
    %c0_i32_1 = arith.constant 0 : i32
    return %c0_i32, %c0_i32_0 : i32, i32
  }
  func.func @transform_2(%arg0: i32) -> (i32, i32) {
    %c0_i32 = arith.constant 0 : i32
    %c0_i32_0 = arith.constant 0 : i32
    %c0_i32_1 = arith.constant 0 : i32
    return %c0_i32, %c0_i32_0 : i32, i32
  }
  func.func @transform_3(%arg0: i32) -> (i32, i32) {
    %c0_i32 = arith.constant 0 : i32
    %c0_i32_0 = arith.constant 0 : i32
    %c0_i32_1 = arith.constant 0 : i32
    return %c0_i32, %c0_i32_0 : i32, i32
  }
  func.func @transform_4(%arg0: i32) -> (i32, i32, i32) {
    %c0_i32 = arith.constant 0 : i32
    %c0_i32_0 = arith.constant 0 : i32
    %c0_i32_1 = arith.constant 0 : i32
    return %arg0, %c0_i32, %c0_i32_0 : i32, i32, i32
  }
  func.func @transform_5(%arg0: i32) -> (i32, i32, i32) {
    %c0_i32 = arith.constant 0 : i32
    %c0_i32_0 = arith.constant 0 : i32
    %c0_i32_1 = arith.constant 0 : i32
    return %arg0, %c0_i32, %c0_i32_0 : i32, i32, i32
  }
  func.func @transform_6(%arg0: i32) -> (i32, i32, i32) {
    %c0_i32 = arith.constant 0 : i32
    %c0_i32_0 = arith.constant 0 : i32
    %c0_i32_1 = arith.constant 0 : i32
    return %arg0, %c0_i32, %c0_i32_0 : i32, i32, i32
  }
  func.func @transform_7(%arg0: i32) -> (i32, i32, i32) {
    %c0_i32 = arith.constant 0 : i32
    %c0_i32_0 = arith.constant 0 : i32
    %c0_i32_1 = arith.constant 0 : i32
    return %arg0, %c0_i32, %c0_i32_0 : i32, i32, i32
  }
  func.func @transform_8(%arg0: i32) -> (i32, i32, i32) {
    %c0_i32 = arith.constant 0 : i32
    %c0_i32_0 = arith.constant 0 : i32
    %c0_i32_1 = arith.constant 0 : i32
    return %arg0, %c0_i32, %c0_i32_0 : i32, i32, i32
  }
  func.func @transform_9(%arg0: i32) -> (i32, i32, i32) {
    %c0_i32 = arith.constant 0 : i32
    %c0_i32_0 = arith.constant 0 : i32
    %c0_i32_1 = arith.constant 0 : i32
    return %arg0, %c0_i32, %c0_i32_0 : i32, i32, i32
  }
  func.func @transform_10(%arg0: i32) -> (i32, i32, i32) {
    %c0_i32 = arith.constant 0 : i32
    %c0_i32_0 = arith.constant 0 : i32
    %c0_i32_1 = arith.constant 0 : i32
    return %arg0, %c0_i32, %c0_i32_0 : i32, i32, i32
  }
  func.func @transform_11(%arg0: i32) -> (i32, i32, i32) {
    %c0_i32 = arith.constant 0 : i32
    %c0_i32_0 = arith.constant 0 : i32
    %c0_i32_1 = arith.constant 0 : i32
    return %arg0, %c0_i32, %c0_i32_0 : i32, i32, i32
  }
  func.func @transform_12(%arg0: i32) -> (i32, i32, i32) {
    %c0_i32 = arith.constant 0 : i32
    %c0_i32_0 = arith.constant 0 : i32
    %c0_i32_1 = arith.constant 0 : i32
    return %arg0, %c0_i32, %c0_i32_0 : i32, i32, i32
  }
  func.func @transform_13(%arg0: i32) -> (i32, i32, i32) {
    %c0_i32 = arith.constant 0 : i32
    %c0_i32_0 = arith.constant 0 : i32
    %c0_i32_1 = arith.constant 0 : i32
    return %arg0, %c0_i32, %c0_i32_0 : i32, i32, i32
  }
  func.func @transform_14(%arg0: i32) -> (i32, i32, i32) {
    %c0_i32 = arith.constant 0 : i32
    %c0_i32_0 = arith.constant 0 : i32
    %c0_i32_1 = arith.constant 0 : i32
    return %arg0, %c0_i32, %c0_i32_0 : i32, i32, i32
  }
  func.func @transform_15(%arg0: i32) -> (i32, i32, i32) {
    %c0_i32 = arith.constant 0 : i32
    %c0_i32_0 = arith.constant 0 : i32
    %c0_i32_1 = arith.constant 0 : i32
    return %arg0, %c0_i32, %c0_i32_0 : i32, i32, i32
  }
  func.func @transform_16(%arg0: i32) -> (i32, i32) {
    %c0_i32 = arith.constant 0 : i32
    %c0_i32_0 = arith.constant 0 : i32
    %c0_i32_1 = arith.constant 0 : i32
    return %c0_i32, %c0_i32_0 : i32, i32
  }
}

</mosaic_0001>

<llo_original>
// kernel: tpu_custom_call.1
$region0: #{tpu_custom_call.1}
  #allocation0 [shape = 'u32[]', space=smem, size = 0x4, offset = 0x4, fixed_abs, tag = 'smem constant byte address 0x4 - core index']
  #allocation1 [shape = 'u32[144,128]{1,0:T(1,128)}', space=vmem, size = 0x12000, scoped, tag = 'internal scratch']
  #allocation2 [shape = 'f32[32,128]{1,0:T(8,128)}', space=vmem, size = 0x4000, scoped, tag = 'scratch operand']
  #allocation3 [shape = 'f32[32,128]{1,0:T(8,128)}', space=vmem, size = 0x4000, scoped, tag = 'scratch operand']
  %s0 = inlined_call_operand.hbm [shape: f32[32,128], index: 0, kind: input, shape index: {}]
  %s1 = inlined_call_operand.hbm [shape: f32[2,128], index: 1, kind: input, shape index: {}]
  %s2 = inlined_call_operand.hbm [shape: f32[1,128], index: 2, kind: input, shape index: {}]
  %s3 = inlined_call_operand.hbm [shape: f32[1,128], index: 3, kind: input, shape index: {}]
  %s4 = inlined_call_operand.hbm [shape: bf16[2,128,384], index: 4, kind: input, shape index: {}]
  %s5 = inlined_call_operand.vmem [shape: f32[2,1,384], index: 5, kind: input, shape index: {}]
  %s6 = inlined_call_operand.hbm [shape: bf16[2,128,128], index: 6, kind: input, shape index: {}]
  %s7 = inlined_call_operand.vmem [shape: f32[2,1,128], index: 7, kind: input, shape index: {}]
  %s8 = inlined_call_operand.hbm [shape: f32[2,1,128], index: 8, kind: input, shape index: {}]
  %s9 = inlined_call_operand.hbm [shape: f32[2,1,128], index: 9, kind: input, shape index: {}]
  %s10 = inlined_call_operand.hbm [shape: bf16[2,128,512], index: 10, kind: input, shape index: {}]
  %s11 = inlined_call_operand.vmem [shape: f32[2,1,512], index: 11, kind: input, shape index: {}]
  %s12 = inlined_call_operand.hbm [shape: bf16[2,512,128], index: 12, kind: input, shape index: {}]
  %s13 = inlined_call_operand.vmem [shape: f32[2,1,128], index: 13, kind: input, shape index: {}]
  %s14 = inlined_call_operand.vmem [shape: f32[2,1,128], index: 14, kind: input, shape index: {}]
  %s15 = inlined_call_operand.vmem [shape: f32[2,1,128], index: 15, kind: input, shape index: {}]
  %s16 = inlined_call_operand.hbm [shape: f32[32,128], index: 16, kind: output, shape index: {}]
  %s17 = sld [smem:[#allocation0]]
  $region145: #{tpu_custom_call.1} parent=0
    _
  %s19 = ssub.s32 1, %s17
  %s20 = scalar_select 0, %s19, %s17
  $region1: #{tpu_custom_call.1} parent=0
    #allocation4 [shape = 'u8[16384]{0}', space=vmem, size = 0x4000, scoped, tag = 'input window, operand 0, single buffered']
    #allocation5 [shape = 's32[2]{0}', space=sflag, size = 0x8, scoped, tag = 'scoped memory for tpu_custom_call.1']
    #allocation6 [shape = 's32[2]{0}', space=sflag, size = 0x8, scoped, tag = 'scoped memory for tpu_custom_call.1']
    #allocation7 [shape = 'u8[1024]{0}', space=vmem, size = 0x400, scoped, tag = 'input window, operand 1, single buffered']
    #allocation8 [shape = 's32[1]{0}', space=sflag, size = 0x4, scoped, tag = 'scoped memory for tpu_custom_call.1']
    #allocation9 [shape = 'u8[512]{0}', space=vmem, size = 0x400, scoped, tag = 'input window, operand 2, single buffered']
    #allocation10 [shape = 'u8[512]{0}', space=vmem, size = 0x400, scoped, tag = 'input window, operand 3, single buffered']
    #allocation11 [shape = 's32[1]{0}', space=sflag, size = 0x4, scoped, tag = 'scoped memory for tpu_custom_call.1']
    #allocation12 [shape = 'u8[196608]{0}', space=vmem, size = 0x30000, scoped, tag = 'input window, operand 4']
    #allocation13 [shape = 'u8[65536]{0}', space=vmem, size = 0x10000, scoped, tag = 'input window, operand 6']
    #allocation14 [shape = 'u8[1024]{0}', space=vmem, size = 0x400, scoped, tag = 'input window, operand 8']
    #allocation15 [shape = 'u8[1024]{0}', space=vmem, size = 0x400, scoped, tag = 'input window, operand 9']
    #allocation16 [shape = 'u8[262144]{0}', space=vmem, size = 0x40000, scoped, tag = 'input window, operand 10']
    #allocation17 [shape = 'u8[262144]{0}', space=vmem, size = 0x40000, scoped, tag = 'input window, operand 12']
    #allocation18 [shape = 'u8[16384]{0}', space=vmem, size = 0x4000, scoped, tag = 'output window, operand 0, single buffered']
    %21 = vsyncpa [#allocation5], 0
    %22 = vsyncpa [#allocation8], 0
    %23 = vsyncpa [#allocation11], 0
    %24 = vsyncpa [#allocation6], 0
    loop: start=0, step=1, limit=4
    $region2: #{tpu_custom_call.1} parent=1 // loop_pre_header
      _
    $region3: #{tpu_custom_call.1} parent=1 // loop_header
      %s26 = sphi 0, %s30
      %p27 = scmp.ge.s32.totalorder %s26, 4
      %s34 = sphi 0, %s34
      %s36 = sphi 0, %s34
      %s37 = sphi 0, %s36
      %s51 = sphi 0, %s37
      %s55 = sphi 0, %s55
      %s57 = sphi 0, %s55
      %s58 = sphi 0, %s57
      %s72 = sphi 0, %s58
      %s76 = sphi 0, %s76
      %s78 = sphi 0, %s76
      %s79 = sphi 0, %s78
      %s93 = sphi 0, %s79
      %s97 = sphi 0, %s97
      %s99 = sphi 0, %s97
      %s100 = sphi 0, %s99
      %s114 = sphi 0, %s100
      %s120 = sphi 0, %s122
      %s123 = sphi 0, %s120
      %s124 = sphi 0, %s123
      %s140 = sphi 0, %s124
      %s146 = sphi 0, %s148
      %s149 = sphi 0, %s146
      %s150 = sphi 0, %s149
      %s166 = sphi 0, %s150
      %s172 = sphi 0, %s174
      %s175 = sphi 0, %s172
      %s176 = sphi 0, %s175
      %s192 = sphi 0, %s176
      %s198 = sphi 0, %s200
      %s201 = sphi 0, %s198
      %s202 = sphi 0, %s201
      %s218 = sphi 0, %s202
      %s224 = sphi 0, %s226
      %s227 = sphi 0, %s224
      %s228 = sphi 0, %s227
      %s244 = sphi 0, %s228
      %s250 = sphi 0, %s252
      %s253 = sphi 0, %s250
      %s254 = sphi 0, %s253
      %s270 = sphi 0, %s254
      %s276 = sphi 0, %s278
      %s279 = sphi 0, %s276
      %s280 = sphi 0, %s279
      %s296 = sphi 0, %s280
      %s302 = sphi 0, %s304
      %s305 = sphi 0, %s302
      %s306 = sphi 0, %s305
      %s322 = sphi 0, %s306
      %s328 = sphi 0, %s330
      %s331 = sphi 0, %s328
      %s332 = sphi 0, %s331
      %s348 = sphi 0, %s332
      %s354 = sphi 0, %s356
      %s357 = sphi 0, %s354
      %s358 = sphi 0, %s357
      %s374 = sphi 0, %s358
      %s380 = sphi 0, %s382
      %s383 = sphi 0, %s380
      %s384 = sphi 0, %s383
      %s400 = sphi 0, %s384
      %s406 = sphi 0, %s408
      %s409 = sphi 0, %s406
      %s410 = sphi 0, %s409
      %s426 = sphi 0, %s410
      %s430 = sphi 0, %s430
      %s432 = sphi 0, %s430
      %s433 = sphi 0, %s432
      %s447 = sphi 0, %s433
    $region4: #{tpu_custom_call.1} parent=1 // loop_header_branch
      %29 = sbr.rel (%p27) target = $region8
    $region5: #{tpu_custom_call.1} parent=1 // loop_body
      %s31 = ssub.s32 %s26, 1
      %s32 = ssub.s32 %s26, 2
      %s33 = sadd.s32 %s26, 1
      %s35 = sadd.s32 %s34, 1
      %p38 = scmp.eq.s32.totalorder %s26, 1
      %p39 = scmp.ne.s32.totalorder %s34, %s36
      %p40 = scmp.eq.s32.totalorder %s26, 0
      %p41 = por %p39, %p40
      %p42 = scmp.ne.s32.totalorder %s34, %s36
      %p43 = scmp.eq.s32.totalorder %s31, 1
      %p44 = por %p42, %p43
      %p45 = scmp.ne.s32.totalorder %s36, %s37
      %p46 = scmp.eq.s32.totalorder %s31, 0
      %p47 = por %p45, %p46
      %p48 = scmp.ne.s32.totalorder %s36, %s37
      %p49 = scmp.eq.s32.totalorder %s32, 1
      %p50 = por %p48, %p49
      %p52 = scmp.ne.s32.totalorder %s37, %s51
      %p53 = scmp.eq.s32.totalorder %s32, 0
      %p54 = por %p52, %p53
      %s56 = sadd.s32 %s55, 1
      %p59 = scmp.eq.s32.totalorder %s26, 1
      %p60 = scmp.ne.s32.totalorder %s55, %s57
      %p61 = scmp.eq.s32.totalorder %s26, 0
      %p62 = por %p60, %p61
      %p63 = scmp.ne.s32.totalorder %s55, %s57
      %p64 = scmp.eq.s32.totalorder %s31, 1
      %p65 = por %p63, %p64
      %p66 = scmp.ne.s32.totalorder %s57, %s58
      %p67 = scmp.eq.s32.totalorder %s31, 0
      %p68 = por %p66, %p67
      %p69 = scmp.ne.s32.totalorder %s57, %s58
      %p70 = scmp.eq.s32.totalorder %s32, 1
      %p71 = por %p69, %p70
      %p73 = scmp.ne.s32.totalorder %s58, %s72
      %p74 = scmp.eq.s32.totalorder %s32, 0
      %p75 = por %p73, %p74
      %s77 = sadd.s32 %s76, 1
      %p80 = scmp.eq.s32.totalorder %s26, 1
      %p81 = scmp.ne.s32.totalorder %s76, %s78
      %p82 = scmp.eq.s32.totalorder %s26, 0
      %p83 = por %p81, %p82
      %p84 = scmp.ne.s32.totalorder %s76, %s78
      %p85 = scmp.eq.s32.totalorder %s31, 1
      %p86 = por %p84, %p85
      %p87 = scmp.ne.s32.totalorder %s78, %s79
      %p88 = scmp.eq.s32.totalorder %s31, 0
      %p89 = por %p87, %p88
      %p90 = scmp.ne.s32.totalorder %s78, %s79
      %p91 = scmp.eq.s32.totalorder %s32, 1
      %p92 = por %p90, %p91
      %p94 = scmp.ne.s32.totalorder %s79, %s93
      %p95 = scmp.eq.s32.totalorder %s32, 0
      %p96 = por %p94, %p95
      %s98 = sadd.s32 %s97, 1
      %p101 = scmp.eq.s32.totalorder %s26, 1
      %p102 = scmp.ne.s32.totalorder %s97, %s99
      %p103 = scmp.eq.s32.totalorder %s26, 0
      %p104 = por %p102, %p103
      %p105 = scmp.ne.s32.totalorder %s97, %s99
      %p106 = scmp.eq.s32.totalorder %s31, 1
      %p107 = por %p105, %p106
      %p108 = scmp.ne.s32.totalorder %s99, %s100
      %p109 = scmp.eq.s32.totalorder %s31, 0
      %p110 = por %p108, %p109
      %p111 = scmp.ne.s32.totalorder %s99, %s100
      %p112 = scmp.eq.s32.totalorder %s32, 1
      %p113 = por %p111, %p112
      %p115 = scmp.ne.s32.totalorder %s100, %s114
      %p116 = scmp.eq.s32.totalorder %s32, 0
      %p117 = por %p115, %p116
      %s118 = ssub.s32 %s26, %s33
      %p119 = scmp.eq.s32.totalorder %s118, 0
      %s121 = sadd.s32 %s120, 1
      %s122 = scalar_select %p119, %s120, %s121
      %p125 = pneg %p119
      %p126 = scmp.eq.s32.totalorder %s26, 1
      %p127 = por %p125, %p126
      %p128 = scmp.ne.s32.totalorder %s120, %s123
      %p129 = scmp.eq.s32.totalorder %s26, 0
      %p130 = por %p128, %p129
      %p131 = scmp.ne.s32.totalorder %s120, %s123
      %p132 = scmp.eq.s32.totalorder %s31, 1
      %p133 = por %p131, %p132
      %p134 = scmp.ne.s32.totalorder %s123, %s124
      %p135 = scmp.eq.s32.totalorder %s31, 0
      %p136 = por %p134, %p135
      %p137 = scmp.ne.s32.totalorder %s123, %s124
      %p138 = scmp.eq.s32.totalorder %s32, 1
      %p139 = por %p137, %p138
      %p141 = scmp.ne.s32.totalorder %s124, %s140
      %p142 = scmp.eq.s32.totalorder %s32, 0
      %p143 = por %p141, %p142
      %s144 = ssub.s32 %s26, %s33
      %p145 = scmp.eq.s32.totalorder %s144, 0
      %s147 = sadd.s32 %s146, 1
      %s148 = scalar_select %p145, %s146, %s147
      %p151 = pneg %p145
      %p152 = scmp.eq.s32.totalorder %s26, 1
      %p153 = por %p151, %p152
      %p154 = scmp.ne.s32.totalorder %s146, %s149
      %p155 = scmp.eq.s32.totalorder %s26, 0
      %p156 = por %p154, %p155
      %p157 = scmp.ne.s32.totalorder %s146, %s149
      %p158 = scmp.eq.s32.totalorder %s31, 1
      %p159 = por %p157, %p158
      %p160 = scmp.ne.s32.totalorder %s149, %s150
      %p161 = scmp.eq.s32.totalorder %s31, 0
      %p162 = por %p160, %p161
      %p163 = scmp.ne.s32.totalorder %s149, %s150
      %p164 = scmp.eq.s32.totalorder %s32, 1
      %p165 = por %p163, %p164
      %p167 = scmp.ne.s32.totalorder %s150, %s166
      %p168 = scmp.eq.s32.totalorder %s32, 0
      %p169 = por %p167, %p168
      %s170 = ssub.s32 %s26, %s33
      %p171 = scmp.eq.s32.totalorder %s170, 0
      %s173 = sadd.s32 %s172, 1
      %s174 = scalar_select %p171, %s172, %s173
      %p177 = pneg %p171
      %p178 = scmp.eq.s32.totalorder %s26, 1
      %p179 = por %p177, %p178
      %p180 = scmp.ne.s32.totalorder %s172, %s175
      %p181 = scmp.eq.s32.totalorder %s26, 0
      %p182 = por %p180, %p181
      %p183 = scmp.ne.s32.totalorder %s172, %s175
      %p184 = scmp.eq.s32.totalorder %s31, 1
      %p185 = por %p183, %p184
      %p186 = scmp.ne.s32.totalorder %s175, %s176
      %p187 = scmp.eq.s32.totalorder %s31, 0
      %p188 = por %p186, %p187
      %p189 = scmp.ne.s32.totalorder %s175, %s176
      %p190 = scmp.eq.s32.totalorder %s32, 1
      %p191 = por %p189, %p190
      %p193 = scmp.ne.s32.totalorder %s176, %s192
      %p194 = scmp.eq.s32.totalorder %s32, 0
      %p195 = por %p193, %p194
      %s196 = ssub.s32 %s26, %s33
      %p197 = scmp.eq.s32.totalorder %s196, 0
      %s199 = sadd.s32 %s198, 1
      %s200 = scalar_select %p197, %s198, %s199
      %p203 = pneg %p197
      %p204 = scmp.eq.s32.totalorder %s26, 1
      %p205 = por %p203, %p204
      %p206 = scmp.ne.s32.totalorder %s198, %s201
      %p207 = scmp.eq.s32.totalorder %s26, 0
      %p208 = por %p206, %p207
      %p209 = scmp.ne.s32.totalorder %s198, %s201
      %p210 = scmp.eq.s32.totalorder %s31, 1
      %p211 = por %p209, %p210
      %p212 = scmp.ne.s32.totalorder %s201, %s202
      %p213 = scmp.eq.s32.totalorder %s31, 0
      %p214 = por %p212, %p213
      %p215 = scmp.ne.s32.totalorder %s201, %s202
      %p216 = scmp.eq.s32.totalorder %s32, 1
      %p217 = por %p215, %p216
      %p219 = scmp.ne.s32.totalorder %s202, %s218
      %p220 = scmp.eq.s32.totalorder %s32, 0
      %p221 = por %p219, %p220
      %s222 = ssub.s32 %s26, %s33
      %p223 = scmp.eq.s32.totalorder %s222, 0
      %s225 = sadd.s32 %s224, 1
      %s226 = scalar_select %p223, %s224, %s225
      %p229 = pneg %p223
      %p230 = scmp.eq.s32.totalorder %s26, 1
      %p231 = por %p229, %p230
      %p232 = scmp.ne.s32.totalorder %s224, %s227
      %p233 = scmp.eq.s32.totalorder %s26, 0
      %p234 = por %p232, %p233
      %p235 = scmp.ne.s32.totalorder %s224, %s227
      %p236 = scmp.eq.s32.totalorder %s31, 1
      %p237 = por %p235, %p236
      %p238 = scmp.ne.s32.totalorder %s227, %s228
      %p239 = scmp.eq.s32.totalorder %s31, 0
      %p240 = por %p238, %p239
      %p241 = scmp.ne.s32.totalorder %s227, %s228
      %p242 = scmp.eq.s32.totalorder %s32, 1
      %p243 = por %p241, %p242
      %p245 = scmp.ne.s32.totalorder %s228, %s244
      %p246 = scmp.eq.s32.totalorder %s32, 0
      %p247 = por %p245, %p246
      %s248 = ssub.s32 %s26, %s33
      %p249 = scmp.eq.s32.totalorder %s248, 0
      %s251 = sadd.s32 %s250, 1
      %s252 = scalar_select %p249, %s250, %s251
      %p255 = pneg %p249
      %p256 = scmp.eq.s32.totalorder %s26, 1
      %p257 = por %p255, %p256
      %p258 = scmp.ne.s32.totalorder %s250, %s253
      %p259 = scmp.eq.s32.totalorder %s26, 0
      %p260 = por %p258, %p259
      %p261 = scmp.ne.s32.totalorder %s250, %s253
      %p262 = scmp.eq.s32.totalorder %s31, 1
      %p263 = por %p261, %p262
      %p264 = scmp.ne.s32.totalorder %s253, %s254
      %p265 = scmp.eq.s32.totalorder %s31, 0
      %p266 = por %p264, %p265
      %p267 = scmp.ne.s32.totalorder %s253, %s254
      %p268 = scmp.eq.s32.totalorder %s32, 1
      %p269 = por %p267, %p268
      %p271 = scmp.ne.s32.totalorder %s254, %s270
      %p272 = scmp.eq.s32.totalorder %s32, 0
      %p273 = por %p271, %p272
      %s274 = ssub.s32 %s26, %s33
      %p275 = scmp.eq.s32.totalorder %s274, 0
      %s277 = sadd.s32 %s276, 1
      %s278 = scalar_select %p275, %s276, %s277
      %p281 = pneg %p275
      %p282 = scmp.eq.s32.totalorder %s26, 1
      %p283 = por %p281, %p282
      %p284 = scmp.ne.s32.totalorder %s276, %s279
      %p285 = scmp.eq.s32.totalorder %s26, 0
      %p286 = por %p284, %p285
      %p287 = scmp.ne.s32.totalorder %s276, %s279
      %p288 = scmp.eq.s32.totalorder %s31, 1
      %p289 = por %p287, %p288
      %p290 = scmp.ne.s32.totalorder %s279, %s280
      %p291 = scmp.eq.s32.totalorder %s31, 0
      %p292 = por %p290, %p291
      %p293 = scmp.ne.s32.totalorder %s279, %s280
      %p294 = scmp.eq.s32.totalorder %s32, 1
      %p295 = por %p293, %p294
      %p297 = scmp.ne.s32.totalorder %s280, %s296
      %p298 = scmp.eq.s32.totalorder %s32, 0
      %p299 = por %p297, %p298
      %s300 = ssub.s32 %s26, %s33
      %p301 = scmp.eq.s32.totalorder %s300, 0
      %s303 = sadd.s32 %s302, 1
      %s304 = scalar_select %p301, %s302, %s303
      %p307 = pneg %p301
      %p308 = scmp.eq.s32.totalorder %s26, 1
      %p309 = por %p307, %p308
      %p310 = scmp.ne.s32.totalorder %s302, %s305
      %p311 = scmp.eq.s32.totalorder %s26, 0
      %p312 = por %p310, %p311
      %p313 = scmp.ne.s32.totalorder %s302, %s305
      %p314 = scmp.eq.s32.totalorder %s31, 1
      %p315 = por %p313, %p314
      %p316 = scmp.ne.s32.totalorder %s305, %s306
      %p317 = scmp.eq.s32.totalorder %s31, 0
      %p318 = por %p316, %p317
      %p319 = scmp.ne.s32.totalorder %s305, %s306
      %p320 = scmp.eq.s32.totalorder %s32, 1
      %p321 = por %p319, %p320
      %p323 = scmp.ne.s32.totalorder %s306, %s322
      %p324 = scmp.eq.s32.totalorder %s32, 0
      %p325 = por %p323, %p324
      %s326 = ssub.s32 %s26, %s33
      %p327 = scmp.eq.s32.totalorder %s326, 0
      %s329 = sadd.s32 %s328, 1
      %s330 = scalar_select %p327, %s328, %s329
      %p333 = pneg %p327
      %p334 = scmp.eq.s32.totalorder %s26, 1
      %p335 = por %p333, %p334
      %p336 = scmp.ne.s32.totalorder %s328, %s331
      %p337 = scmp.eq.s32.totalorder %s26, 0
      %p338 = por %p336, %p337
      %p339 = scmp.ne.s32.totalorder %s328, %s331
      %p340 = scmp.eq.s32.totalorder %s31, 1
      %p341 = por %p339, %p340
      %p342 = scmp.ne.s32.totalorder %s331, %s332
      %p343 = scmp.eq.s32.totalorder %s31, 0
      %p344 = por %p342, %p343
      %p345 = scmp.ne.s32.totalorder %s331, %s332
      %p346 = scmp.eq.s32.totalorder %s32, 1
      %p347 = por %p345, %p346
      %p349 = scmp.ne.s32.totalorder %s332, %s348
      %p350 = scmp.eq.s32.totalorder %s32, 0
      %p351 = por %p349, %p350
      %s352 = ssub.s32 %s26, %s33
      %p353 = scmp.eq.s32.totalorder %s352, 0
      %s355 = sadd.s32 %s354, 1
      %s356 = scalar_select %p353, %s354, %s355
      %p359 = pneg %p353
      %p360 = scmp.eq.s32.totalorder %s26, 1
      %p361 = por %p359, %p360
      %p362 = scmp.ne.s32.totalorder %s354, %s357
      %p363 = scmp.eq.s32.totalorder %s26, 0
      %p364 = por %p362, %p363
      %p365 = scmp.ne.s32.totalorder %s354, %s357
      %p366 = scmp.eq.s32.totalorder %s31, 1
      %p367 = por %p365, %p366
      %p368 = scmp.ne.s32.totalorder %s357, %s358
      %p369 = scmp.eq.s32.totalorder %s31, 0
      %p370 = por %p368, %p369
      %p371 = scmp.ne.s32.totalorder %s357, %s358
      %p372 = scmp.eq.s32.totalorder %s32, 1
      %p373 = por %p371, %p372
      %p375 = scmp.ne.s32.totalorder %s358, %s374
      %p376 = scmp.eq.s32.totalorder %s32, 0
      %p377 = por %p375, %p376
      %s378 = ssub.s32 %s26, %s33
      %p379 = scmp.eq.s32.totalorder %s378, 0
      %s381 = sadd.s32 %s380, 1
      %s382 = scalar_select %p379, %s380, %s381
      %p385 = pneg %p379
      %p386 = scmp.eq.s32.totalorder %s26, 1
      %p387 = por %p385, %p386
      %p388 = scmp.ne.s32.totalorder %s380, %s383
      %p389 = scmp.eq.s32.totalorder %s26, 0
      %p390 = por %p388, %p389
      %p391 = scmp.ne.s32.totalorder %s380, %s383
      %p392 = scmp.eq.s32.totalorder %s31, 1
      %p393 = por %p391, %p392
      %p394 = scmp.ne.s32.totalorder %s383, %s384
      %p395 = scmp.eq.s32.totalorder %s31, 0
      %p396 = por %p394, %p395
      %p397 = scmp.ne.s32.totalorder %s383, %s384
      %p398 = scmp.eq.s32.totalorder %s32, 1
      %p399 = por %p397, %p398
      %p401 = scmp.ne.s32.totalorder %s384, %s400
      %p402 = scmp.eq.s32.totalorder %s32, 0
      %p403 = por %p401, %p402
      %s404 = ssub.s32 %s26, %s33
      %p405 = scmp.eq.s32.totalorder %s404, 0
      %s407 = sadd.s32 %s406, 1
      %s408 = scalar_select %p405, %s406, %s407
      %p411 = pneg %p405
      %p412 = scmp.eq.s32.totalorder %s26, 1
      %p413 = por %p411, %p412
      %p414 = scmp.ne.s32.totalorder %s406, %s409
      %p415 = scmp.eq.s32.totalorder %s26, 0
      %p416 = por %p414, %p415
      %p417 = scmp.ne.s32.totalorder %s406, %s409
      %p418 = scmp.eq.s32.totalorder %s31, 1
      %p419 = por %p417, %p418
      %p420 = scmp.ne.s32.totalorder %s409, %s410
      %p421 = scmp.eq.s32.totalorder %s31, 0
      %p422 = por %p420, %p421
      %p423 = scmp.ne.s32.totalorder %s409, %s410
      %p424 = scmp.eq.s32.totalorder %s32, 1
      %p425 = por %p423, %p424
      %p427 = scmp.ne.s32.totalorder %s410, %s426
      %p428 = scmp.eq.s32.totalorder %s32, 0
      %p429 = por %p427, %p428
      %s431 = sadd.s32 %s430, 1
      %p434 = scmp.eq.s32.totalorder %s26, 1
      %p435 = scmp.ne.s32.totalorder %s430, %s432
      %p436 = scmp.eq.s32.totalorder %s26, 0
      %p437 = por %p435, %p436
      %p438 = scmp.ne.s32.totalorder %s430, %s432
      %p439 = scmp.eq.s32.totalorder %s31, 1
      %p440 = por %p438, %p439
      %p441 = scmp.ne.s32.totalorder %s432, %s433
      %p442 = scmp.eq.s32.totalorder %s31, 0
      %p443 = por %p441, %p442
      %p444 = scmp.ne.s32.totalorder %s432, %s433
      %p445 = scmp.eq.s32.totalorder %s32, 1
      %p446 = por %p444, %p445
      %p448 = scmp.ne.s32.totalorder %s433, %s447
      %p449 = scmp.eq.s32.totalorder %s32, 0
      %p450 = por %p448, %p449
      %p451 = scmp.le.s32.totalorder 1, %s26
      %p452 = scmp.lt.s32.totalorder %s26, 3
      %p453 = pnand %p451, %p452
      %p454 = pneg %p453
      // Predicated region
      $region9: #{tpu_custom_call.1} parent=5 // pred_check
        _
      $region10: #{tpu_custom_call.1} parent=5 // pred_check_branch
        %456 = sbr.rel (%p453) target = $region12
      $region11: #{tpu_custom_call.1} parent=5 // pred_region
        %s457 = ssub.s32 %s26, 1
        // Predicated region
        $region13: #{tpu_custom_call.1} parent=11 // pred_check
          %p458 = pneg %p47
        $region14: #{tpu_custom_call.1} parent=11 // pred_check_branch
          %460 = sbr.rel (%p458) target = $region16
        $region15: #{tpu_custom_call.1} parent=11 // pred_region
          %s462 = ssub.s32 512, 512
          %463 = vsyncadd [#allocation5], %s462
          %s464 = sshll.u32 [#allocation4], 4
          %s465 = int_to_ptr.vmem [resolvable:$true] %s464
          %470 = dma.hbm_to_vmem [thread:$0]  %s0, 512, %s465, [#allocation5], 128, 128, 8
        $region16: #{tpu_custom_call.1} parent=11 // pred_fallthru
          _
        // Predicated region
        $region17: #{tpu_custom_call.1} parent=11 // pred_check
          %p471 = pneg %p68
        $region18: #{tpu_custom_call.1} parent=11 // pred_check_branch
          %473 = sbr.rel (%p471) target = $region20
        $region19: #{tpu_custom_call.1} parent=11 // pred_region
          %s475 = ssub.s32 32, 32
          %476 = vsyncadd [#allocation8], %s475
          %s478 = sshll.u32 [#allocation7], 4
          %s479 = int_to_ptr.vmem [resolvable:$true] %s478
          %481 = dma.hbm_to_vmem [thread:$0]  %s1, 32, %s479, [#allocation8]
        $region20: #{tpu_custom_call.1} parent=11 // pred_fallthru
          _
        // Predicated region
        $region21: #{tpu_custom_call.1} parent=11 // pred_check
          %p482 = pneg %p89
        $region22: #{tpu_custom_call.1} parent=11 // pred_check_branch
          %484 = sbr.rel (%p482) target = $region24
        $region23: #{tpu_custom_call.1} parent=11 // pred_region
          %s486 = ssub.s32 16, 16
          %487 = vsyncadd [#allocation8], %s486
          %s489 = sshll.u32 [#allocation9], 4
          %s490 = int_to_ptr.vmem [resolvable:$true] %s489
          %492 = dma.hbm_to_vmem [thread:$0]  %s2, 16, %s490, [#allocation8]
        $region24: #{tpu_custom_call.1} parent=11 // pred_fallthru
          _
        // Predicated region
        $region25: #{tpu_custom_call.1} parent=11 // pred_check
          %p493 = pneg %p110
        $region26: #{tpu_custom_call.1} parent=11 // pred_check_branch
          %495 = sbr.rel (%p493) target = $region28
        $region27: #{tpu_custom_call.1} parent=11 // pred_region
          %s497 = ssub.s32 16, 16
          %498 = vsyncadd [#allocation11], %s497
          %s500 = sshll.u32 [#allocation10], 4
          %s501 = int_to_ptr.vmem [resolvable:$true] %s500
          %503 = dma.hbm_to_vmem [thread:$0]  %s3, 16, %s501, [#allocation11]
        $region28: #{tpu_custom_call.1} parent=11 // pred_fallthru
          _
      $region12: #{tpu_custom_call.1} parent=5 // pred_fallthru
        _
      %p504 = scmp.lt.s32.totalorder %s26, 2
      // Predicated region
      $region29: #{tpu_custom_call.1} parent=5 // pred_check
        %p505 = pneg %p504
      $region30: #{tpu_custom_call.1} parent=5 // pred_check_branch
        %507 = sbr.rel (%p505) target = $region32
      $region31: #{tpu_custom_call.1} parent=5 // pred_region
        // Predicated region
        $region33: #{tpu_custom_call.1} parent=31 // pred_check
          %p508 = pneg %p130
        $region34: #{tpu_custom_call.1} parent=31 // pred_check_branch
          %510 = sbr.rel (%p508) target = $region36
        $region35: #{tpu_custom_call.1} parent=31 // pred_region
          %s511 = sand.u32 %s26, 1
          %s512 = scalar_lea.sflag [#allocation5], %s511
          %s513 = sand.u32 %s120, 1
          %s514 = smul.addr %s513, 192
          %s515 = scalar_lea.vmem [#allocation12], %s514
          %s517 = ssub.s32 3072, 3072
          %518 = vsyncadd %s512, %s517
          %s519 = smul.addr %s26, 48
          %s520 = smul.addr %s519, 64
          %s521 = scalar_lea.hbm %s4, %s520
          %s522 = sshll.u32 %s515, 4
          %s523 = int_to_ptr.vmem [resolvable:$true] %s522
          %528 = dma.hbm_to_vmem [thread:$0]  %s521, 3072, %s523, %s512, 192, 192, 12
        $region36: #{tpu_custom_call.1} parent=31 // pred_fallthru
          _
        // Predicated region
        $region37: #{tpu_custom_call.1} parent=31 // pred_check
          %p529 = pneg %p156
        $region38: #{tpu_custom_call.1} parent=31 // pred_check_branch
          %531 = sbr.rel (%p529) target = $region40
        $region39: #{tpu_custom_call.1} parent=31 // pred_region
          %p532 = scmp.lt.s32.totalorder %s26, 1
          %s533 = scalar_select %p532, %s26, 1
          %s534 = smul.addr %s533, 3
          %s535 = scalar_lea.vmem %s5, %s534
        $region40: #{tpu_custom_call.1} parent=31 // pred_fallthru
          _
        // Predicated region
        $region41: #{tpu_custom_call.1} parent=31 // pred_check
          %p536 = pneg %p182
        $region42: #{tpu_custom_call.1} parent=31 // pred_check_branch
          %538 = sbr.rel (%p536) target = $region44
        $region43: #{tpu_custom_call.1} parent=31 // pred_region
          %s539 = sand.u32 %s26, 1
          %s540 = scalar_lea.sflag [#allocation5], %s539
          %s541 = sand.u32 %s172, 1
          %s542 = smul.addr %s541, 64
          %s543 = scalar_lea.vmem [#allocation13], %s542
          %s545 = ssub.s32 1024, 1024
          %546 = vsyncadd %s540, %s545
          %s547 = smul.addr %s26, 16
          %s548 = smul.addr %s547, 64
          %s549 = scalar_lea.hbm %s6, %s548
          %s550 = sshll.u32 %s543, 4
          %s551 = int_to_ptr.vmem [resolvable:$true] %s550
          %556 = dma.hbm_to_vmem [thread:$0]  %s549, 1024, %s551, %s540, 64, 64, 4
        $region44: #{tpu_custom_call.1} parent=31 // pred_fallthru
          _
        // Predicated region
        $region45: #{tpu_custom_call.1} parent=31 // pred_check
          %p557 = pneg %p208
        $region46: #{tpu_custom_call.1} parent=31 // pred_check_branch
          %559 = sbr.rel (%p557) target = $region48
        $region47: #{tpu_custom_call.1} parent=31 // pred_region
          %p560 = scmp.lt.s32.totalorder %s26, 1
          %s561 = scalar_select %p560, %s26, 1
          %s562 = scalar_lea.vmem %s7, %s561
        $region48: #{tpu_custom_call.1} parent=31 // pred_fallthru
          _
        // Predicated region
        $region49: #{tpu_custom_call.1} parent=31 // pred_check
          %p563 = pneg %p234
        $region50: #{tpu_custom_call.1} parent=31 // pred_check_branch
          %565 = sbr.rel (%p563) target = $region52
        $region51: #{tpu_custom_call.1} parent=31 // pred_region
          %s566 = sand.u32 %s26, 1
          %s567 = scalar_lea.sflag [#allocation5], %s566
          %s568 = sand.u32 %s224, 1
          %s569 = scalar_lea.vmem [#allocation14], %s568
          %s571 = ssub.s32 16, 16
          %572 = vsyncadd %s567, %s571
          %s573 = smul.addr %s26, 16
          %s574 = scalar_lea.hbm %s8, %s573
          %s576 = sshll.u32 %s569, 4
          %s577 = int_to_ptr.vmem [resolvable:$true] %s576
          %579 = dma.hbm_to_vmem [thread:$0]  %s574, 16, %s577, %s567
        $region52: #{tpu_custom_call.1} parent=31 // pred_fallthru
          _
        // Predicated region
        $region53: #{tpu_custom_call.1} parent=31 // pred_check
          %p580 = pneg %p260
        $region54: #{tpu_custom_call.1} parent=31 // pred_check_branch
          %582 = sbr.rel (%p580) target = $region56
        $region55: #{tpu_custom_call.1} parent=31 // pred_region
          %s583 = sand.u32 %s26, 1
          %s584 = scalar_lea.sflag [#allocation5], %s583
          %s585 = sand.u32 %s250, 1
          %s586 = scalar_lea.vmem [#allocation15], %s585
          %s588 = ssub.s32 16, 16
          %589 = vsyncadd %s584, %s588
          %s590 = smul.addr %s26, 16
          %s591 = scalar_lea.hbm %s9, %s590
          %s593 = sshll.u32 %s586, 4
          %s594 = int_to_ptr.vmem [resolvable:$true] %s593
          %596 = dma.hbm_to_vmem [thread:$0]  %s591, 16, %s594, %s584
        $region56: #{tpu_custom_call.1} parent=31 // pred_fallthru
          _
        // Predicated region
        $region57: #{tpu_custom_call.1} parent=31 // pred_check
          %p597 = pneg %p286
        $region58: #{tpu_custom_call.1} parent=31 // pred_check_branch
          %599 = sbr.rel (%p597) target = $region60
        $region59: #{tpu_custom_call.1} parent=31 // pred_region
          %s600 = sand.u32 %s26, 1
          %s601 = scalar_lea.sflag [#allocation5], %s600
          %s602 = sand.u32 %s276, 1
          %s603 = smul.addr %s602, 256
          %s604 = scalar_lea.vmem [#allocation16], %s603
          %s606 = ssub.s32 4096, 4096
          %607 = vsyncadd %s601, %s606
          %s608 = smul.addr %s26, 64
          %s609 = smul.addr %s608, 64
          %s610 = scalar_lea.hbm %s10, %s609
          %s611 = sshll.u32 %s604, 4
          %s612 = int_to_ptr.vmem [resolvable:$true] %s611
          %617 = dma.hbm_to_vmem [thread:$0]  %s610, 4096, %s612, %s601, 256, 256, 16
        $region60: #{tpu_custom_call.1} parent=31 // pred_fallthru
          _
        // Predicated region
        $region61: #{tpu_custom_call.1} parent=31 // pred_check
          %p618 = pneg %p312
        $region62: #{tpu_custom_call.1} parent=31 // pred_check_branch
          %620 = sbr.rel (%p618) target = $region64
        $region63: #{tpu_custom_call.1} parent=31 // pred_region
          %p621 = scmp.lt.s32.totalorder %s26, 1
          %s622 = scalar_select %p621, %s26, 1
          %s623 = smul.addr %s622, 4
          %s624 = scalar_lea.vmem %s11, %s623
        $region64: #{tpu_custom_call.1} parent=31 // pred_fallthru
          _
        // Predicated region
        $region65: #{tpu_custom_call.1} parent=31 // pred_check
          %p625 = pneg %p338
        $region66: #{tpu_custom_call.1} parent=31 // pred_check_branch
          %627 = sbr.rel (%p625) target = $region68
        $region67: #{tpu_custom_call.1} parent=31 // pred_region
          %s628 = sand.u32 %s26, 1
          %s629 = scalar_lea.sflag [#allocation5], %s628
          %s630 = sand.u32 %s328, 1
          %s631 = smul.addr %s630, 256
          %s632 = scalar_lea.vmem [#allocation17], %s631
          %s634 = ssub.s32 4096, 4096
          %635 = vsyncadd %s629, %s634
          %s636 = smul.addr %s26, 64
          %s637 = smul.addr %s636, 64
          %s638 = scalar_lea.hbm %s12, %s637
          %s639 = sshll.u32 %s632, 4
          %s640 = int_to_ptr.vmem [resolvable:$true] %s639
          %645 = dma.hbm_to_vmem [thread:$0]  %s638, 4096, %s640, %s629, 64, 64, 4
        $region68: #{tpu_custom_call.1} parent=31 // pred_fallthru
          _
        // Predicated region
        $region69: #{tpu_custom_call.1} parent=31 // pred_check
          %p646 = pneg %p364
        $region70: #{tpu_custom_call.1} parent=31 // pred_check_branch
          %648 = sbr.rel (%p646) target = $region72
        $region71: #{tpu_custom_call.1} parent=31 // pred_region
          %p649 = scmp.lt.s32.totalorder %s26, 1
          %s650 = scalar_select %p649, %s26, 1
          %s651 = scalar_lea.vmem %s13, %s650
        $region72: #{tpu_custom_call.1} parent=31 // pred_fallthru
          _
        // Predicated region
        $region73: #{tpu_custom_call.1} parent=31 // pred_check
          %p652 = pneg %p390
        $region74: #{tpu_custom_call.1} parent=31 // pred_check_branch
          %654 = sbr.rel (%p652) target = $region76
        $region75: #{tpu_custom_call.1} parent=31 // pred_region
          %p655 = scmp.lt.s32.totalorder %s26, 1
          %s656 = scalar_select %p655, %s26, 1
          %s657 = scalar_lea.vmem %s14, %s656
        $region76: #{tpu_custom_call.1} parent=31 // pred_fallthru
          _
        // Predicated region
        $region77: #{tpu_custom_call.1} parent=31 // pred_check
          %p658 = pneg %p416
        $region78: #{tpu_custom_call.1} parent=31 // pred_check_branch
          %660 = sbr.rel (%p658) target = $region80
        $region79: #{tpu_custom_call.1} parent=31 // pred_region
          %p661 = scmp.lt.s32.totalorder %s26, 1
          %s662 = scalar_select %p661, %s26, 1
          %s663 = scalar_lea.vmem %s15, %s662
        $region80: #{tpu_custom_call.1} parent=31 // pred_fallthru
          _
      $region32: #{tpu_custom_call.1} parent=5 // pred_fallthru
        _
      %p664 = scmp.le.s32.totalorder 1, %s26
      %p665 = scmp.lt.s32.totalorder %s26, 3
      %p666 = pnand %p664, %p665
      %p667 = pneg %p666
      // Predicated region
      $region81: #{tpu_custom_call.1} parent=5 // pred_check
        _
      $region82: #{tpu_custom_call.1} parent=5 // pred_check_branch
        %669 = sbr.rel (%p666) target = $region84
      $region83: #{tpu_custom_call.1} parent=5 // pred_region
        %s670 = ssub.s32 %s26, 1
        // Predicated region
        $region85: #{tpu_custom_call.1} parent=83 // pred_check
          %p671 = pneg %p47
        $region86: #{tpu_custom_call.1} parent=83 // pred_check_branch
          %673 = sbr.rel (%p671) target = $region88
        $region87: #{tpu_custom_call.1} parent=83 // pred_region
          %674 = dma.done [#allocation5], 512
        $region88: #{tpu_custom_call.1} parent=83 // pred_fallthru
          _
        // Predicated region
        $region89: #{tpu_custom_call.1} parent=83 // pred_check
          %p675 = pneg %p68
        $region90: #{tpu_custom_call.1} parent=83 // pred_check_branch
          %677 = sbr.rel (%p675) target = $region92
        $region91: #{tpu_custom_call.1} parent=83 // pred_region
          %678 = dma.done [#allocation8], 32
        $region92: #{tpu_custom_call.1} parent=83 // pred_fallthru
          _
        // Predicated region
        $region93: #{tpu_custom_call.1} parent=83 // pred_check
          %p679 = pneg %p89
        $region94: #{tpu_custom_call.1} parent=83 // pred_check_branch
          %681 = sbr.rel (%p679) target = $region96
        $region95: #{tpu_custom_call.1} parent=83 // pred_region
          %682 = dma.done [#allocation8], 16
        $region96: #{tpu_custom_call.1} parent=83 // pred_fallthru
          _
        // Predicated region
        $region97: #{tpu_custom_call.1} parent=83 // pred_check
          %p683 = pneg %p110
        $region98: #{tpu_custom_call.1} parent=83 // pred_check_branch
          %685 = sbr.rel (%p683) target = $region100
        $region99: #{tpu_custom_call.1} parent=83 // pred_region
          %686 = dma.done [#allocation11], 16
        $region100: #{tpu_custom_call.1} parent=83 // pred_fallthru
          _
        %s687 = sand.u32 %s31, 1
        %s688 = scalar_lea.sflag [#allocation5], %s687
        %s689 = sand.u32 %s123, 1
        %s690 = smul.addr %s689, 192
        %s691 = scalar_lea.vmem [#allocation12], %s690
        // Predicated region
        $region101: #{tpu_custom_call.1} parent=83 // pred_check
          %p692 = pneg %p136
        $region102: #{tpu_custom_call.1} parent=83 // pred_check_branch
          %694 = sbr.rel (%p692) target = $region104
        $region103: #{tpu_custom_call.1} parent=83 // pred_region
          %695 = dma.done %s688, 3072
        $region104: #{tpu_custom_call.1} parent=83 // pred_fallthru
          _
        %s696 = sand.u32 %s31, 1
        %s697 = scalar_lea.sflag [#allocation5], %s696
        %s698 = sand.u32 %s175, 1
        %s699 = smul.addr %s698, 64
        %s700 = scalar_lea.vmem [#allocation13], %s699
        // Predicated region
        $region105: #{tpu_custom_call.1} parent=83 // pred_check
          %p701 = pneg %p188
        $region106: #{tpu_custom_call.1} parent=83 // pred_check_branch
          %703 = sbr.rel (%p701) target = $region108
        $region107: #{tpu_custom_call.1} parent=83 // pred_region
          %704 = dma.done %s697, 1024
        $region108: #{tpu_custom_call.1} parent=83 // pred_fallthru
          _
        %s705 = sand.u32 %s31, 1
        %s706 = scalar_lea.sflag [#allocation5], %s705
        %s707 = sand.u32 %s227, 1
        %s708 = scalar_lea.vmem [#allocation14], %s707
        // Predicated region
        $region109: #{tpu_custom_call.1} parent=83 // pred_check
          %p709 = pneg %p240
        $region110: #{tpu_custom_call.1} parent=83 // pred_check_branch
          %711 = sbr.rel (%p709) target = $region112
        $region111: #{tpu_custom_call.1} parent=83 // pred_region
          %712 = dma.done %s706, 16
        $region112: #{tpu_custom_call.1} parent=83 // pred_fallthru
          _
        %s713 = sand.u32 %s31, 1
        %s714 = scalar_lea.sflag [#allocation5], %s713
        %s715 = sand.u32 %s253, 1
        %s716 = scalar_lea.vmem [#allocation15], %s715
        // Predicated region
        $region113: #{tpu_custom_call.1} parent=83 // pred_check
          %p717 = pneg %p266
        $region114: #{tpu_custom_call.1} parent=83 // pred_check_branch
          %719 = sbr.rel (%p717) target = $region116
        $region115: #{tpu_custom_call.1} parent=83 // pred_region
          %720 = dma.done %s714, 16
        $region116: #{tpu_custom_call.1} parent=83 // pred_fallthru
          _
        %s721 = sand.u32 %s31, 1
        %s722 = scalar_lea.sflag [#allocation5], %s721
        %s723 = sand.u32 %s279, 1
        %s724 = smul.addr %s723, 256
        %s725 = scalar_lea.vmem [#allocation16], %s724
        // Predicated region
        $region117: #{tpu_custom_call.1} parent=83 // pred_check
          %p726 = pneg %p292
        $region118: #{tpu_custom_call.1} parent=83 // pred_check_branch
          %728 = sbr.rel (%p726) target = $region120
        $region119: #{tpu_custom_call.1} parent=83 // pred_region
          %729 = dma.done %s722, 4096
        $region120: #{tpu_custom_call.1} parent=83 // pred_fallthru
          _
        %s730 = sand.u32 %s31, 1
        %s731 = scalar_lea.sflag [#allocation5], %s730
        %s732 = sand.u32 %s331, 1
        %s733 = smul.addr %s732, 256
        %s734 = scalar_lea.vmem [#allocation17], %s733
        // Predicated region
        $region121: #{tpu_custom_call.1} parent=83 // pred_check
          %p735 = pneg %p344
        $region122: #{tpu_custom_call.1} parent=83 // pred_check_branch
          %737 = sbr.rel (%p735) target = $region124
        $region123: #{tpu_custom_call.1} parent=83 // pred_region
          %738 = dma.done %s731, 4096
        $region124: #{tpu_custom_call.1} parent=83 // pred_fallthru
          _
        %p739 = pneg %p47
        %p740 = pneg %p44
        %p741 = pneg %p68
        %p742 = pneg %p65
        %p743 = pneg %p89
        %p744 = pneg %p86
        %p745 = pneg %p110
        %p746 = pneg %p107
        %s747 = sand.u32 %s31, 1
        %s748 = scalar_lea.sflag [#allocation5], %s747
        %s749 = sand.u32 %s123, 1
        %s750 = smul.addr %s749, 192
        %s751 = scalar_lea.vmem [#allocation12], %s750
        %p752 = pneg %p136
        %p753 = pneg %p133
        %p754 = scmp.lt.s32.totalorder %s31, 1
        %s755 = scalar_select %p754, %s31, 1
        %s756 = smul.addr %s755, 3
        %s757 = scalar_lea.vmem %s5, %s756
        %p758 = pneg %p162
        %p759 = pneg %p159
        %s760 = sand.u32 %s31, 1
        %s761 = scalar_lea.sflag [#allocation5], %s760
        %s762 = sand.u32 %s175, 1
        %s763 = smul.addr %s762, 64
        %s764 = scalar_lea.vmem [#allocation13], %s763
        %p765 = pneg %p188
        %p766 = pneg %p185
        %p767 = scmp.lt.s32.totalorder %s31, 1
        %s768 = scalar_select %p767, %s31, 1
        %s769 = scalar_lea.vmem %s7, %s768
        %p770 = pneg %p214
        %p771 = pneg %p211
        %s772 = sand.u32 %s31, 1
        %s773 = scalar_lea.sflag [#allocation5], %s772
        %s774 = sand.u32 %s227, 1
        %s775 = scalar_lea.vmem [#allocation14], %s774
        %p776 = pneg %p240
        %p777 = pneg %p237
        %s778 = sand.u32 %s31, 1
        %s779 = scalar_lea.sflag [#allocation5], %s778
        %s780 = sand.u32 %s253, 1
        %s781 = scalar_lea.vmem [#allocation15], %s780
        %p782 = pneg %p266
        %p783 = pneg %p263
        %s784 = sand.u32 %s31, 1
        %s785 = scalar_lea.sflag [#allocation5], %s784
        %s786 = sand.u32 %s279, 1
        %s787 = smul.addr %s786, 256
        %s788 = scalar_lea.vmem [#allocation16], %s787
        %p789 = pneg %p292
        %p790 = pneg %p289
        %p791 = scmp.lt.s32.totalorder %s31, 1
        %s792 = scalar_select %p791, %s31, 1
        %s793 = smul.addr %s792, 4
        %s794 = scalar_lea.vmem %s11, %s793
        %p795 = pneg %p318
        %p796 = pneg %p315
        %s797 = sand.u32 %s31, 1
        %s798 = scalar_lea.sflag [#allocation5], %s797
        %s799 = sand.u32 %s331, 1
        %s800 = smul.addr %s799, 256
        %s801 = scalar_lea.vmem [#allocation17], %s800
        %p802 = pneg %p344
        %p803 = pneg %p341
        %p804 = scmp.lt.s32.totalorder %s31, 1
        %s805 = scalar_select %p804, %s31, 1
        %s806 = scalar_lea.vmem %s13, %s805
        %p807 = pneg %p370
        %p808 = pneg %p367
        %p809 = scmp.lt.s32.totalorder %s31, 1
        %s810 = scalar_select %p809, %s31, 1
        %s811 = scalar_lea.vmem %s14, %s810
        %p812 = pneg %p396
        %p813 = pneg %p393
        %p814 = scmp.lt.s32.totalorder %s31, 1
        %s815 = scalar_select %p814, %s31, 1
        %s816 = scalar_lea.vmem %s15, %s815
        %p817 = pneg %p422
        %p818 = pneg %p419
        %p819 = pneg %p443
        %p820 = pneg %p440
        %p821 = scmp.lt.s32.totalorder %s31, 1
        %s822 = scalar_select %p821, %s31, 1
        %s823 = smul.addr %s822, 3
        %s824 = scalar_lea.vmem %s5, %s823
        %p825 = scmp.lt.s32.totalorder %s31, 1
        %s826 = scalar_select %p825, %s31, 1
        %s827 = scalar_lea.vmem %s7, %s826
        %p828 = scmp.lt.s32.totalorder %s31, 1
        %s829 = scalar_select %p828, %s31, 1
        %s830 = smul.addr %s829, 4
        %s831 = scalar_lea.vmem %s11, %s830
        %p832 = scmp.lt.s32.totalorder %s31, 1
        %s833 = scalar_select %p832, %s31, 1
        %s834 = scalar_lea.vmem %s13, %s833
        %p835 = scmp.lt.s32.totalorder %s31, 1
        %s836 = scalar_select %p835, %s31, 1
        %s837 = scalar_lea.vmem %s14, %s836
        %p838 = scmp.lt.s32.totalorder %s31, 1
        %s839 = scalar_select %p838, %s31, 1
        %s840 = scalar_lea.vmem %s15, %s839
        %p842 = scmp.eq.s32.totalorder %s31, 0
        // Predicated region
        $region125: #{tpu_custom_call.1} parent=83 // pred_check
          %p843 = pneg %p842
        $region126: #{tpu_custom_call.1} parent=83 // pred_check_branch
          %845 = sbr.rel (%p843) target = $region128
        $region127: #{tpu_custom_call.1} parent=83 // pred_region
          %v846 = vld [vmem:[#allocation4] sm:$0xff]
          %v847 = vld [vmem:[#allocation4 + $0x8] sm:$0xff]
          %v848 = vld [vmem:[#allocation4 + $0x10] sm:$0xff]
          %v849 = vld [vmem:[#allocation4 + $0x18] sm:$0xff]
          %v850 = vld [vmem:[#allocation9] sm:$0x1]
          %v851 = vld [vmem:[#allocation10] sm:$0x1]
          %852 = vadd.xlane.f32.xlu0 %v846
          %v853 = vpop.xlane.xlu0 %852
          %854 = vadd.xlane.f32.xlu0 %v847
          %v855 = vpop.xlane.xlu0 %854
          %856 = vadd.xlane.f32.xlu0 %v848
          %v857 = vpop.xlane.xlu0 %856
          %858 = vadd.xlane.f32.xlu0 %v849
          %v859 = vpop.xlane.xlu0 %858
          %v860 = vrcp.pop 128.0
          %v861 = vmul.f32 %v853, %v860
          %v862 = vmul.f32 %v855, %v860
          %v863 = vmul.f32 %v857, %v860
          %v864 = vmul.f32 %v859, %v860
          %v865 = vsub.f32 %v846, %v861
          %v866 = vsub.f32 %v847, %v862
          %v867 = vsub.f32 %v848, %v863
          %v868 = vsub.f32 %v849, %v864
          %v869 = vmul.f32 %v865, %v865
          %v870 = vmul.f32 %v866, %v866
          %v871 = vmul.f32 %v867, %v867
          %v872 = vmul.f32 %v868, %v868
          %873 = vadd.xlane.f32.xlu0 %v869
          %v874 = vpop.xlane.xlu0 %873
          %875 = vadd.xlane.f32.xlu0 %v870
          %v876 = vpop.xlane.xlu0 %875
          %877 = vadd.xlane.f32.xlu0 %v871
          %v878 = vpop.xlane.xlu0 %877
          %879 = vadd.xlane.f32.xlu0 %v872
          %v880 = vpop.xlane.xlu0 %879
          %v881 = vmul.f32 %v874, %v860
          %v882 = vmul.f32 %v876, %v860
          %v883 = vmul.f32 %v878, %v860
          %v884 = vmul.f32 %v880, %v860
          %v885 = vadd.f32 %v881, 1e-12
          %v886 = vadd.f32 %v882, 1e-12
          %v887 = vadd.f32 %v883, 1e-12
          %v888 = vadd.f32 %v884, 1e-12
          %v889 = vrsqrt.pop %v885
          %v890 = vrsqrt.pop %v886
          %v891 = vrsqrt.pop %v887
          %v892 = vrsqrt.pop %v888
          %v893 = vmul.f32 %v865, %v889
          %v894 = vmul.f32 %v866, %v890
          %v895 = vmul.f32 %v867, %v891
          %v896 = vmul.f32 %v868, %v892
          %v898 = vlaneseq
          %v899 = vshrl.u32 %v898, 7
          %v900 = vsub.s32 0, %v899
          %v901 = vrot.slane %v850, %v900
          %v903 = vmul.f32 %v893, %v901
          %v904 = vmul.f32 %v894, %v901
          %v905 = vmul.f32 %v895, %v901
          %v906 = vmul.f32 %v896, %v901
          %v908 = vlaneseq
          %v909 = vshrl.u32 %v908, 7
          %v910 = vsub.s32 0, %v909
          %v911 = vrot.slane %v851, %v910
          %v913 = vadd.f32 %v903, %v911
          %v914 = vadd.f32 %v904, %v911
          %v915 = vadd.f32 %v905, %v911
          %v916 = vadd.f32 %v906, %v911
          %917 = vst [vmem:[#allocation2] sm:$0xff] %v913
          %918 = vst [vmem:[#allocation2 + $0x8] sm:$0xff] %v914
          %919 = vst [vmem:[#allocation2 + $0x10] sm:$0xff] %v915
          %920 = vst [vmem:[#allocation2 + $0x18] sm:$0xff] %v916
        $region128: #{tpu_custom_call.1} parent=83 // pred_fallthru
          _
        %v921 = vld [vmem:[#allocation2] sm:$0xff]
        %v922 = vld [vmem:[#allocation2 + $0x8] sm:$0xff]
        %v923 = vld [vmem:[#allocation2 + $0x10] sm:$0xff]
        %v924 = vld [vmem:[#allocation2 + $0x18] sm:$0xff]
        %v925 = vpack.c.bf16 %v922, %v921
        %v926 = vpack.c.bf16 %v924, %v923
        %v927 = vld [vmem:[%s691] sm:$0xff]
        %v928 = vld [vmem:[%s691 + $0x8] sm:$0xf]
        %v929 = vld [vmem:[%s691 + $0xc] sm:$0xff]
        %v930 = vld [vmem:[%s691 + $0x14] sm:$0xf]
        %v931 = vld [vmem:[%s691 + $0x18] sm:$0xff]
        %v932 = vld [vmem:[%s691 + $0x20] sm:$0xf]
        %v933 = vld [vmem:[%s691 + $0x24] sm:$0xff]
        %v934 = vld [vmem:[%s691 + $0x2c] sm:$0xf]
        %v935 = vld [vmem:[%s691 + $0x30] sm:$0xff]
        %v936 = vld [vmem:[%s691 + $0x38] sm:$0xf]
        %v937 = vld [vmem:[%s691 + $0x3c] sm:$0xff]
        %v938 = vld [vmem:[%s691 + $0x44] sm:$0xf]
        %v939 = vld [vmem:[%s691 + $0x48] sm:$0xff]
        %v940 = vld [vmem:[%s691 + $0x50] sm:$0xf]
        %v941 = vld [vmem:[%s691 + $0x54] sm:$0xff]
        %v942 = vld [vmem:[%s691 + $0x5c] sm:$0xf]
        %v943 = vld [vmem:[%s691 + $0x60] sm:$0xff]
        %v944 = vld [vmem:[%s691 + $0x68] sm:$0xf]
        %v945 = vld [vmem:[%s691 + $0x6c] sm:$0xff]
        %v946 = vld [vmem:[%s691 + $0x74] sm:$0xf]
        %v947 = vld [vmem:[%s691 + $0x78] sm:$0xff]
        %v948 = vld [vmem:[%s691 + $0x80] sm:$0xf]
        %v949 = vld [vmem:[%s691 + $0x84] sm:$0xff]
        %v950 = vld [vmem:[%s691 + $0x8c] sm:$0xf]
        %v951 = vld [vmem:[%s691 + $0x90] sm:$0xff]
        %v952 = vld [vmem:[%s691 + $0x98] sm:$0xf]
        %v953 = vld [vmem:[%s691 + $0x9c] sm:$0xff]
        %v954 = vld [vmem:[%s691 + $0xa4] sm:$0xf]
        %v955 = vld [vmem:[%s691 + $0xa8] sm:$0xff]
        %v956 = vld [vmem:[%s691 + $0xb0] sm:$0xf]
        %v957 = vld [vmem:[%s691 + $0xb4] sm:$0xff]
        %v958 = vld [vmem:[%s691 + $0xbc] sm:$0xf]
        %v959 = vld [vmem:[%s824] sm:$0x7]
        %v961 = vlaneseq
        %v962 = vshrl.u32 %v961, 7
        %v963 = vsub.s32 0, %v962
        %v964 = vrot.slane %v959, %v963
        %v965 = vlaneseq
        %v966 = vshrl.u32 %v965, 7
        %v967 = vsub.s32 1, %v966
        %v968 = vrot.slane %v959, %v967
        %v969 = vlaneseq
        %v970 = vshrl.u32 %v969, 7
        %v971 = vsub.s32 2, %v970
        %v972 = vrot.slane %v959, %v971
        %v1008 = vunpack.c.l.b16 %v927
        %v1009 = vunpack.c.h.b16 %v927
        %v1010 = vunpack.c.l.b16 %v928
        %v1011 = vunpack.c.l.b16 %v929
        %v1012 = vunpack.c.h.b16 %v929
        %v1013 = vunpack.c.l.b16 %v930
        %v1014 = vunpack.c.l.b16 %v931
        %v1015 = vunpack.c.h.b16 %v931
        %v1016 = vunpack.c.l.b16 %v932
        %v1017 = vunpack.c.l.b16 %v933
        %v1018 = vunpack.c.h.b16 %v933
        %v1019 = vunpack.c.l.b16 %v934
        %v1020 = vunpack.c.l.b16 %v935
        %v1021 = vunpack.c.h.b16 %v935
        %v1022 = vunpack.c.l.b16 %v936
        %v1023 = vunpack.c.l.b16 %v937
        %v1024 = vunpack.c.h.b16 %v937
        %v1025 = vunpack.c.l.b16 %v938
        %v1026 = vunpack.c.l.b16 %v939
        %v1027 = vunpack.c.h.b16 %v939
        %v1028 = vunpack.c.l.b16 %v940
        %v1029 = vunpack.c.l.b16 %v941
        %v1030 = vunpack.c.h.b16 %v941
        %v1031 = vunpack.c.l.b16 %v942
        %v1032 = vunpack.c.l.b16 %v943
        %v1033 = vunpack.c.h.b16 %v943
        %v1034 = vunpack.c.l.b16 %v944
        %v1035 = vunpack.c.l.b16 %v945
        %v1036 = vunpack.c.h.b16 %v945
        %v1037 = vunpack.c.l.b16 %v946
        %v1038 = vunpack.c.l.b16 %v947
        %v1039 = vunpack.c.h.b16 %v947
        %v1040 = vunpack.c.l.b16 %v948
        %v1041 = vunpack.c.l.b16 %v949
        %v1042 = vunpack.c.h.b16 %v949
        %v1043 = vunpack.c.l.b16 %v950
        %v1044 = vunpack.c.l.b16 %v951
        %v1045 = vunpack.c.h.b16 %v951
        %v1046 = vunpack.c.l.b16 %v952
        %v1047 = vunpack.c.l.b16 %v953
        %v1048 = vunpack.c.h.b16 %v953
        %v1049 = vunpack.c.l.b16 %v954
        %v1050 = vunpack.c.l.b16 %v955
        %v1051 = vunpack.c.h.b16 %v955
        %v1052 = vunpack.c.l.b16 %v956
        %v1053 = vunpack.c.l.b16 %v957
        %v1054 = vunpack.c.h.b16 %v957
        %v1055 = vunpack.c.l.b16 %v958
        %v1056 = vpack.c.b16 %v1011, %v1008
        %v1057 = vpack.c.b16 %v1012, %v1009
        %v1058 = vpack.c.b16 %v1013, %v1010
        %v1059 = vpack.c.b16 %v1017, %v1014
        %v1060 = vpack.c.b16 %v1018, %v1015
        %v1061 = vpack.c.b16 %v1019, %v1016
        %v1062 = vpack.c.b16 %v1023, %v1020
        %v1063 = vpack.c.b16 %v1024, %v1021
        %v1064 = vpack.c.b16 %v1025, %v1022
        %v1065 = vpack.c.b16 %v1029, %v1026
        %v1066 = vpack.c.b16 %v1030, %v1027
        %v1067 = vpack.c.b16 %v1031, %v1028
        %v1068 = vpack.c.b16 %v1035, %v1032
        %v1069 = vpack.c.b16 %v1036, %v1033
        %v1070 = vpack.c.b16 %v1037, %v1034
        %v1071 = vpack.c.b16 %v1041, %v1038
        %v1072 = vpack.c.b16 %v1042, %v1039
        %v1073 = vpack.c.b16 %v1043, %v1040
        %v1074 = vpack.c.b16 %v1047, %v1044
        %v1075 = vpack.c.b16 %v1048, %v1045
        %v1076 = vpack.c.b16 %v1049, %v1046
        %v1077 = vpack.c.b16 %v1053, %v1050
        %v1078 = vpack.c.b16 %v1054, %v1051
        %v1079 = vpack.c.b16 %v1055, %v1052
        %1104 = vmatprep.subr.bf16.mxu0 %v1078
        %1105 = vmatpush1.bf16.msra.mxu0 %v1077
        %1106 = vmatprep.subr.bf16.mxu0 %v1075
        %1107 = vmatpush1.bf16.msra.mxu0 %v1074
        %1108 = vmatprep.subr.bf16.mxu0 %v1072
        %1109 = vmatpush1.bf16.msra.mxu0 %v1071
        %1110 = vmatprep.subr.bf16.mxu0 %v1069
        %1111 = vmatpush1.bf16.msra.mxu0 %v1068
        %1112 = vmatprep.subr.bf16.mxu0 %v1066
        %1113 = vmatpush1.bf16.msra.mxu0 %v1065
        %1114 = vmatprep.subr.bf16.mxu0 %v1063
        %1115 = vmatpush1.bf16.msra.mxu0 %v1062
        %1116 = vmatprep.subr.bf16.mxu0 %v1060
        %1117 = vmatpush1.bf16.msra.mxu0 %v1059
        %1118 = vmatprep.subr.bf16.mxu0 %v1057
        %1119 = vmatpush1.bf16.msra.mxu0 %v1056
        %1120 = vmatprep.subr.bf16.mxu0 0
        %1121 = vmatpush2.bf16.msra.mxu0 0
        %1122 = vmatprep.subr.bf16.mxu0 0
        %1123 = vmatpush2.bf16.msra.mxu0 0
        %1124 = vmatprep.subr.bf16.mxu0 0
        %1125 = vmatpush2.bf16.msra.mxu0 0
        %1126 = vmatprep.subr.bf16.mxu0 0
        %1127 = vmatpush2.bf16.msra.mxu0 0
        %1128 = vmatprep.subr.bf16.mxu0 0
        %1129 = vmatpush2.bf16.msra.mxu0 0
        %1130 = vmatprep.subr.bf16.mxu0 0
        %1131 = vmatpush2.bf16.msra.mxu0 0
        %1132 = vmatprep.subr.bf16.mxu0 0
        %1133 = vmatpush2.bf16.msra.mxu0 0
        %1134 = vmatprep.subr.bf16.mxu0 0
        %1135 = vmatpush2.bf16.msra.mxu0 0
        %1136 = vmatprep.mubr.bf16.mxu0 0
        %1137 = vmatmul.mubr.bf16.gmra.mxu0 %v925
        %v1138 = vpop.f32.mrf.mxu0
        %v1139 = vadd.f32 %v964, %v1138
        %v1140 = vpop.f32.mrf.mxu0
        %v1141 = vadd.f32 %v968, %v1140
        %v1142 = vpop.f32.mrf.mxu0
        %v1143 = vadd.f32 %v964, %v1142
        %v1144 = vpop.f32.mrf.mxu0
        %v1145 = vadd.f32 %v968, %v1144
        %1146 = vmatprep.mubr.bf16.mxu0 0
        %1147 = vmatmul.mubr.bf16.gmra.mxu0 %v926
        %v1148 = vpop.f32.mrf.mxu0
        %v1149 = vadd.f32 %v964, %v1148
        %v1150 = vpop.f32.mrf.mxu0
        %v1151 = vadd.f32 %v968, %v1150
        %v1152 = vpop.f32.mrf.mxu0
        %v1153 = vadd.f32 %v964, %v1152
        %v1154 = vpop.f32.mrf.mxu0
        %v1155 = vadd.f32 %v968, %v1154
        %1156 = vdwg.mxu0
        %1157 = vmatprep.subr.bf16.mxu0 0
        %1158 = vmatpush1.bf16.msra.mxu0 %v1079
        %1159 = vmatprep.subr.bf16.mxu0 0
        %1160 = vmatpush1.bf16.msra.mxu0 %v1076
        %1161 = vmatprep.subr.bf16.mxu0 0
        %1162 = vmatpush1.bf16.msra.mxu0 %v1073
        %1163 = vmatprep.subr.bf16.mxu0 0
        %1164 = vmatpush1.bf16.msra.mxu0 %v1070
        %1165 = vmatprep.subr.bf16.mxu0 0
        %1166 = vmatpush1.bf16.msra.mxu0 %v1067
        %1167 = vmatprep.subr.bf16.mxu0 0
        %1168 = vmatpush1.bf16.msra.mxu0 %v1064
        %1169 = vmatprep.subr.bf16.mxu0 0
        %1170 = vmatpush1.bf16.msra.mxu0 %v1061
        %1171 = vmatprep.subr.bf16.mxu0 0
        %1172 = vmatpush1.bf16.msra.mxu0 %v1058
        %1173 = vmatprep.subr.bf16.mxu0 0
        %1174 = vmatpush2.bf16.msra.mxu0 0
        %1175 = vmatprep.subr.bf16.mxu0 0
        %1176 = vmatpush2.bf16.msra.mxu0 0
        %1177 = vmatprep.subr.bf16.mxu0 0
        %1178 = vmatpush2.bf16.msra.mxu0 0
        %1179 = vmatprep.subr.bf16.mxu0 0
        %1180 = vmatpush2.bf16.msra.mxu0 0
        %1181 = vmatprep.subr.bf16.mxu0 0
        %1182 = vmatpush2.bf16.msra.mxu0 0
        %1183 = vmatprep.subr.bf16.mxu0 0
        %1184 = vmatpush2.bf16.msra.mxu0 0
        %1185 = vmatprep.subr.bf16.mxu0 0
        %1186 = vmatpush2.bf16.msra.mxu0 0
        %1187 = vmatprep.subr.bf16.mxu0 0
        %1188 = vmatpush2.bf16.msra.mxu0 0
        %1189 = vmatprep.mubr.bf16.mxu0 0
        %1190 = vmatmul.mubr.bf16.gmra.mxu0 %v925
        %v1191 = vpop.f32.mrf.mxu0
        %v1192 = vadd.f32 %v972, %v1191
        %v1193 = vpop.f32.mrf.mxu0
        %v1194 = vpop.f32.mrf.mxu0
        %v1195 = vadd.f32 %v972, %v1194
        %v1196 = vpop.f32.mrf.mxu0
        %1197 = vmatprep.mubr.bf16.mxu0 0
        %1198 = vmatmul.mubr.bf16.gmra.mxu0 %v926
        %v1199 = vpop.f32.mrf.mxu0
        %v1200 = vadd.f32 %v972, %v1199
        %v1201 = vpop.f32.mrf.mxu0
        %v1202 = vpop.f32.mrf.mxu0
        %v1203 = vadd.f32 %v972, %v1202
        %v1204 = vpop.f32.mrf.mxu0
        %1205 = vdwg.mxu0
        %v1206 = vld [vmem:[#allocation7] sm:$0x3]
        %v1207 = vlaneseq
        %v1208 = vshrl.u32 %v1207, 7
        %v1209 = vsub.s32 0, %v1208
        %v1210 = vrot.slane %v1206, %v1209
        %v1211 = vpack.c.bf16 %v1143, %v1139
        %v1212 = vpack.c.bf16 %v1145, %v1141
        %v1213 = vpack.c.bf16 %v1195, %v1192
        %vm1214 = vcmask 261120
        %v1216 = vsel %vm1214, %v1211, 0
        %v1219 = vsel %vm1214, %v1212, 0
        %1221 = vmatprep.subr.bf16.mxu0 0
        %1222 = vmatpush1.bf16.xpose.msra.mxu0 0
        %1223 = vmatprep.subr.bf16.mxu0 0
        %1224 = vmatpush1.bf16.xpose.msra.mxu0 0
        %1225 = vmatprep.subr.bf16.mxu0 0
        %1226 = vmatpush1.bf16.xpose.msra.mxu0 0
        %1227 = vmatprep.subr.bf16.mxu0 0
        %1228 = vmatpush1.bf16.xpose.msra.mxu0 0
        %1229 = vmatprep.subr.bf16.mxu0 0
        %1230 = vmatpush1.bf16.xpose.msra.mxu0 0
        %1231 = vmatprep.subr.bf16.mxu0 0
        %1232 = vmatpush1.bf16.xpose.msra.mxu0 0
        %1233 = vmatprep.subr.bf16.mxu0 0
        %1234 = vmatpush1.bf16.xpose.msra.mxu0 0
        %1235 = vmatprep.subr.bf16.mxu0 0
        %1236 = vmatpush1.bf16.xpose.msra.mxu0 %v1219
        %1237 = vmatprep.subr.bf16.mxu0 0
        %1238 = vmatpush2.bf16.xpose.msra.mxu0 0
        %1239 = vmatprep.subr.bf16.mxu0 0
        %1240 = vmatpush2.bf16.xpose.msra.mxu0 0
        %1241 = vmatprep.subr.bf16.mxu0 0
        %1242 = vmatpush2.bf16.xpose.msra.mxu0 0
        %1243 = vmatprep.subr.bf16.mxu0 0
        %1244 = vmatpush2.bf16.xpose.msra.mxu0 0
        %1245 = vmatprep.subr.bf16.mxu0 0
        %1246 = vmatpush2.bf16.xpose.msra.mxu0 0
        %1247 = vmatprep.subr.bf16.mxu0 0
        %1248 = vmatpush2.bf16.xpose.msra.mxu0 0
        %1249 = vmatprep.subr.bf16.mxu0 0
        %1250 = vmatpush2.bf16.xpose.msra.mxu0 0
        %1251 = vmatprep.subr.bf16.mxu0 0
        %1252 = vmatpush2.bf16.xpose.msra.mxu0 0
        %1253 = vmatprep.mubr.bf16.mxu0 0
        %1254 = vmatmul.mubr.bf16.gmra.mxu0 %v1216
        %v1255 = vpop.f32.mrf.mxu0
        %v1256 = vadd.f32 %v1210, %v1255
        %v1257 = vpop.f32.mrf.mxu0
        %v1258 = vpop.f32.mrf.mxu0
        %v1259 = vadd.f32 %v1210, %v1258
        %v1260 = vpop.f32.mrf.mxu0
        %1261 = vdwg.mxu0
        %vm1262 = vcmask 130048
        %v1263 = vsel %vm1262, %v1256, -inf
        %1264 = vmax.xlane.f32.xlu0 %v1263
        %v1265 = vpop.xlane.xlu0 %1264
        %v1266 = vsel %vm1262, %v1259, -inf
        %1267 = vmax.xlane.f32.xlu0 %v1266
        %v1268 = vpop.xlane.xlu0 %1267
        %v1269 = vsub.f32 %v1256, %v1265
        %v1270 = vsub.f32 %v1259, %v1268
        %v1271 = vmul.f32 %v1269, 1.442695
        %v1272 = vpow.pop %v1271
        %v1273 = vmul.f32 %v1270, 1.442695
        %v1274 = vpow.pop %v1273
        %v1275 = vsel %vm1262, %v1272, 0.0
        %1276 = vadd.xlane.f32.xlu0 %v1275
        %v1277 = vpop.xlane.xlu0 %1276
        %v1278 = vsel %vm1262, %v1274, 0.0
        %1279 = vadd.xlane.f32.xlu0 %v1278
        %v1280 = vpop.xlane.xlu0 %1279
        %v1281 = vrcp.pop %v1277
        %v1282 = vrcp.pop %v1280
        %v1283 = vmul.f32 %v1272, %v1281
        %v1284 = vmul.f32 %v1274, %v1282
        %v1285 = vpack.c.bf16 %v1284, %v1283
        %v1287 = vsel %vm1262, %v1285, 0
        %1289 = vmatprep.subr.bf16.mxu0 0
        %1290 = vmatpush1.bf16.msra.mxu0 0
        %1291 = vmatprep.subr.bf16.mxu0 0
        %1292 = vmatpush1.bf16.msra.mxu0 0
        %1293 = vmatprep.subr.bf16.mxu0 0
        %1294 = vmatpush1.bf16.msra.mxu0 0
        %1295 = vmatprep.subr.bf16.mxu0 0
        %1296 = vmatpush1.bf16.msra.mxu0 0
        %1297 = vmatprep.subr.bf16.mxu0 0
        %1298 = vmatpush1.bf16.msra.mxu0 0
        %1299 = vmatprep.subr.bf16.mxu0 0
        %1300 = vmatpush1.bf16.msra.mxu0 0
        %1301 = vmatprep.subr.bf16.mxu0 0
        %1302 = vmatpush1.bf16.msra.mxu0 0
        %1303 = vmatprep.subr.bf16.mxu0 0
        %1304 = vmatpush1.bf16.msra.mxu0 %v1213
        %1305 = vmatprep.subr.bf16.mxu0 0
        %1306 = vmatpush2.bf16.msra.mxu0 0
        %1307 = vmatprep.subr.bf16.mxu0 0
        %1308 = vmatpush2.bf16.msra.mxu0 0
        %1309 = vmatprep.subr.bf16.mxu0 0
        %1310 = vmatpush2.bf16.msra.mxu0 0
        %1311 = vmatprep.subr.bf16.mxu0 0
        %1312 = vmatpush2.bf16.msra.mxu0 0
        %1313 = vmatprep.subr.bf16.mxu0 0
        %1314 = vmatpush2.bf16.msra.mxu0 0
        %1315 = vmatprep.subr.bf16.mxu0 0
        %1316 = vmatpush2.bf16.msra.mxu0 0
        %1317 = vmatprep.subr.bf16.mxu0 0
        %1318 = vmatpush2.bf16.msra.mxu0 0
        %1319 = vmatprep.subr.bf16.mxu0 0
        %1320 = vmatpush2.bf16.msra.mxu0 0
        %1321 = vmatprep.mubr.bf16.mxu0 0
        %1322 = vmatmul.mubr.bf16.gmra.mxu0 %v1287
        %v1323 = vpop.f32.mrf.mxu0
        %v1324 = vadd.f32 0.0, %v1323
        %v1325 = vpop.f32.mrf.mxu0
        %v1326 = vpop.f32.mrf.mxu0
        %v1327 = vadd.f32 0.0, %v1326
        %v1328 = vpop.f32.mrf.mxu0
        %1329 = vdwg.mxu0
        %1330 = vst.msk [vmem:[#allocation3] sm:$0xff] %vm1214, %v1324
        %1331 = vst.msk [vmem:[#allocation3 + $0x8] sm:$0xff] %vm1214, %v1327
        %1333 = vrot.lane.b32.xlu0 %v1211, 96
        %v1334 = vpop.permute.xlu0 %1333
        %1336 = vrot.lane.b32.xlu0 %v1212, 96
        %v1337 = vpop.permute.xlu0 %1336
        %v1339 = vsel %vm1214, %v1334, 0
        %v1342 = vsel %vm1214, %v1337, 0
        %1344 = vmatprep.subr.bf16.mxu0 0
        %1345 = vmatpush1.bf16.xpose.msra.mxu0 0
        %1346 = vmatprep.subr.bf16.mxu0 0
        %1347 = vmatpush1.bf16.xpose.msra.mxu0 0
        %1348 = vmatprep.subr.bf16.mxu0 0
        %1349 = vmatpush1.bf16.xpose.msra.mxu0 0
        %1350 = vmatprep.subr.bf16.mxu0 0
        %1351 = vmatpush1.bf16.xpose.msra.mxu0 0
        %1352 = vmatprep.subr.bf16.mxu0 0
        %1353 = vmatpush1.bf16.xpose.msra.mxu0 0
        %1354 = vmatprep.subr.bf16.mxu0 0
        %1355 = vmatpush1.bf16.xpose.msra.mxu0 0
        %1356 = vmatprep.subr.bf16.mxu0 0
        %1357 = vmatpush1.bf16.xpose.msra.mxu0 0
        %1358 = vmatprep.subr.bf16.mxu0 0
        %1359 = vmatpush1.bf16.xpose.msra.mxu0 %v1342
        %1360 = vmatprep.subr.bf16.mxu0 0
        %1361 = vmatpush2.bf16.xpose.msra.mxu0 0
        %1362 = vmatprep.subr.bf16.mxu0 0
        %1363 = vmatpush2.bf16.xpose.msra.mxu0 0
        %1364 = vmatprep.subr.bf16.mxu0 0
        %1365 = vmatpush2.bf16.xpose.msra.mxu0 0
        %1366 = vmatprep.subr.bf16.mxu0 0
        %1367 = vmatpush2.bf16.xpose.msra.mxu0 0
        %1368 = vmatprep.subr.bf16.mxu0 0
        %1369 = vmatpush2.bf16.xpose.msra.mxu0 0
        %1370 = vmatprep.subr.bf16.mxu0 0
        %1371 = vmatpush2.bf16.xpose.msra.mxu0 0
        %1372 = vmatprep.subr.bf16.mxu0 0
        %1373 = vmatpush2.bf16.xpose.msra.mxu0 0
        %1374 = vmatprep.subr.bf16.mxu0 0
        %1375 = vmatpush2.bf16.xpose.msra.mxu0 0
        %1376 = vmatprep.mubr.bf16.mxu0 0
        %1377 = vmatmul.mubr.bf16.gmra.mxu0 %v1339
        %v1378 = vpop.f32.mrf.mxu0
        %v1379 = vadd.f32 %v1210, %v1378
        %v1380 = vpop.f32.mrf.mxu0
        %v1381 = vpop.f32.mrf.mxu0
        %v1382 = vadd.f32 %v1210, %v1381
        %v1383 = vpop.f32.mrf.mxu0
        %1384 = vdwg.mxu0
        %v1385 = vsel %vm1262, %v1379, -inf
        %1386 = vmax.xlane.f32.xlu0 %v1385
        %v1387 = vpop.xlane.xlu0 %1386
        %v1388 = vsel %vm1262, %v1382, -inf
        %1389 = vmax.xlane.f32.xlu0 %v1388
        %v1390 = vpop.xlane.xlu0 %1389
        %v1391 = vsub.f32 %v1379, %v1387
        %v1392 = vsub.f32 %v1382, %v1390
        %v1393 = vmul.f32 %v1391, 1.442695
        %v1394 = vpow.pop %v1393
        %v1395 = vmul.f32 %v1392, 1.442695
        %v1396 = vpow.pop %v1395
        %v1397 = vsel %vm1262, %v1394, 0.0
        %1398 = vadd.xlane.f32.xlu0 %v1397
        %v1399 = vpop.xlane.xlu0 %1398
        %v1400 = vsel %vm1262, %v1396, 0.0
        %1401 = vadd.xlane.f32.xlu0 %v1400
        %v1402 = vpop.xlane.xlu0 %1401
        %v1403 = vrcp.pop %v1399
        %v1404 = vrcp.pop %v1402
        %v1405 = vmul.f32 %v1394, %v1403
        %v1406 = vmul.f32 %v1396, %v1404
        %v1407 = vpack.c.bf16 %v1406, %v1405
        %1409 = vrot.lane.b32.xlu0 %v1213, 96
        %v1410 = vpop.permute.xlu0 %1409
        %v1413 = vsel %vm1262, %v1407, 0
        %1415 = vmatprep.subr.bf16.mxu0 0
        %1416 = vmatpush1.bf16.msra.mxu0 0
        %1417 = vmatprep.subr.bf16.mxu0 0
        %1418 = vmatpush1.bf16.msra.mxu0 0
        %1419 = vmatprep.subr.bf16.mxu0 0
        %1420 = vmatpush1.bf16.msra.mxu0 0
        %1421 = vmatprep.subr.bf16.mxu0 0
        %1422 = vmatpush1.bf16.msra.mxu0 0
        %1423 = vmatprep.subr.bf16.mxu0 0
        %1424 = vmatpush1.bf16.msra.mxu0 0
        %1425 = vmatprep.subr.bf16.mxu0 0
        %1426 = vmatpush1.bf16.msra.mxu0 0
        %1427 = vmatprep.subr.bf16.mxu0 0
        %1428 = vmatpush1.bf16.msra.mxu0 0
        %1429 = vmatprep.subr.bf16.mxu0 0
        %1430 = vmatpush1.bf16.msra.mxu0 %v1410
        %1431 = vmatprep.subr.bf16.mxu0 0
        %1432 = vmatpush2.bf16.msra.mxu0 0
        %1433 = vmatprep.subr.bf16.mxu0 0
        %1434 = vmatpush2.bf16.msra.mxu0 0
        %1435 = vmatprep.subr.bf16.mxu0 0
        %1436 = vmatpush2.bf16.msra.mxu0 0
        %1437 = vmatprep.subr.bf16.mxu0 0
        %1438 = vmatpush2.bf16.msra.mxu0 0
        %1439 = vmatprep.subr.bf16.mxu0 0
        %1440 = vmatpush2.bf16.msra.mxu0 0
        %1441 = vmatprep.subr.bf16.mxu0 0
        %1442 = vmatpush2.bf16.msra.mxu0 0
        %1443 = vmatprep.subr.bf16.mxu0 0
        %1444 = vmatpush2.bf16.msra.mxu0 0
        %1445 = vmatprep.subr.bf16.mxu0 0
        %1446 = vmatpush2.bf16.msra.mxu0 0
        %1447 = vmatprep.mubr.bf16.mxu0 0
        %1448 = vmatmul.mubr.bf16.gmra.mxu0 %v1413
        %v1449 = vpop.f32.mrf.mxu0
        %v1450 = vadd.f32 0.0, %v1449
        %v1451 = vpop.f32.mrf.mxu0
        %v1452 = vpop.f32.mrf.mxu0
        %v1453 = vadd.f32 0.0, %v1452
        %v1454 = vpop.f32.mrf.mxu0
        %1455 = vdwg.mxu0
        %1458 = vrot.lane.b32.xlu0 %v1450, 32
        %v1459 = vpop.permute.xlu0 %1458
        %1460 = vrot.lane.b32.xlu0 %v1453, 32
        %v1461 = vpop.permute.xlu0 %1460
        %vm1464 = vcmask 523520
        %1465 = vst.msk [vmem:[#allocation3] sm:$0xff] %vm1464, %v1459
        %1466 = vst.msk [vmem:[#allocation3 + $0x8] sm:$0xff] %vm1464, %v1461
        %1467 = vrot.lane.b32.xlu0 %v1211, 64
        %v1468 = vpop.permute.xlu0 %1467
        %1469 = vrot.lane.b32.xlu0 %v1212, 64
        %v1470 = vpop.permute.xlu0 %1469
        %v1472 = vsel %vm1214, %v1468, 0
        %v1475 = vsel %vm1214, %v1470, 0
        %1477 = vmatprep.subr.bf16.mxu0 0
        %1478 = vmatpush1.bf16.xpose.msra.mxu0 0
        %1479 = vmatprep.subr.bf16.mxu0 0
        %1480 = vmatpush1.bf16.xpose.msra.mxu0 0
        %1481 = vmatprep.subr.bf16.mxu0 0
        %1482 = vmatpush1.bf16.xpose.msra.mxu0 0
        %1483 = vmatprep.subr.bf16.mxu0 0
        %1484 = vmatpush1.bf16.xpose.msra.mxu0 0
        %1485 = vmatprep.subr.bf16.mxu0 0
        %1486 = vmatpush1.bf16.xpose.msra.mxu0 0
        %1487 = vmatprep.subr.bf16.mxu0 0
        %1488 = vmatpush1.bf16.xpose.msra.mxu0 0
        %1489 = vmatprep.subr.bf16.mxu0 0
        %1490 = vmatpush1.bf16.xpose.msra.mxu0 0
        %1491 = vmatprep.subr.bf16.mxu0 0
        %1492 = vmatpush1.bf16.xpose.msra.mxu0 %v1475
        %1493 = vmatprep.subr.bf16.mxu0 0
        %1494 = vmatpush2.bf16.xpose.msra.mxu0 0
        %1495 = vmatprep.subr.bf16.mxu0 0
        %1496 = vmatpush2.bf16.xpose.msra.mxu0 0
        %1497 = vmatprep.subr.bf16.mxu0 0
        %1498 = vmatpush2.bf16.xpose.msra.mxu0 0
        %1499 = vmatprep.subr.bf16.mxu0 0
        %1500 = vmatpush2.bf16.xpose.msra.mxu0 0
        %1501 = vmatprep.subr.bf16.mxu0 0
        %1502 = vmatpush2.bf16.xpose.msra.mxu0 0
        %1503 = vmatprep.subr.bf16.mxu0 0
        %1504 = vmatpush2.bf16.xpose.msra.mxu0 0
        %1505 = vmatprep.subr.bf16.mxu0 0
        %1506 = vmatpush2.bf16.xpose.msra.mxu0 0
        %1507 = vmatprep.subr.bf16.mxu0 0
        %1508 = vmatpush2.bf16.xpose.msra.mxu0 0
        %1509 = vmatprep.mubr.bf16.mxu0 0
        %1510 = vmatmul.mubr.bf16.gmra.mxu0 %v1472
        %v1511 = vpop.f32.mrf.mxu0
        %v1512 = vadd.f32 %v1210, %v1511
        %v1513 = vpop.f32.mrf.mxu0
        %v1514 = vpop.f32.mrf.mxu0
        %v1515 = vadd.f32 %v1210, %v1514
        %v1516 = vpop.f32.mrf.mxu0
        %1517 = vdwg.mxu0
        %v1518 = vsel %vm1262, %v1512, -inf
        %1519 = vmax.xlane.f32.xlu0 %v1518
        %v1520 = vpop.xlane.xlu0 %1519
        %v1521 = vsel %vm1262, %v1515, -inf
        %1522 = vmax.xlane.f32.xlu0 %v1521
        %v1523 = vpop.xlane.xlu0 %1522
        %v1524 = vsub.f32 %v1512, %v1520
        %v1525 = vsub.f32 %v1515, %v1523
        %v1526 = vmul.f32 %v1524, 1.442695
        %v1527 = vpow.pop %v1526
        %v1528 = vmul.f32 %v1525, 1.442695
        %v1529 = vpow.pop %v1528
        %v1530 = vsel %vm1262, %v1527, 0.0
        %1531 = vadd.xlane.f32.xlu0 %v1530
        %v1532 = vpop.xlane.xlu0 %1531
        %v1533 = vsel %vm1262, %v1529, 0.0
        %1534 = vadd.xlane.f32.xlu0 %v1533
        %v1535 = vpop.xlane.xlu0 %1534
        %v1536 = vrcp.pop %v1532
        %v1537 = vrcp.pop %v1535
        %v1538 = vmul.f32 %v1527, %v1536
        %v1539 = vmul.f32 %v1529, %v1537
        %v1540 = vpack.c.bf16 %v1539, %v1538
        %1541 = vrot.lane.b32.xlu0 %v1213, 64
        %v1542 = vpop.permute.xlu0 %1541
        %v1545 = vsel %vm1262, %v1540, 0
        %1547 = vmatprep.subr.bf16.mxu0 0
        %1548 = vmatpush1.bf16.msra.mxu0 0
        %1549 = vmatprep.subr.bf16.mxu0 0
        %1550 = vmatpush1.bf16.msra.mxu0 0
        %1551 = vmatprep.subr.bf16.mxu0 0
        %1552 = vmatpush1.bf16.msra.mxu0 0
        %1553 = vmatprep.subr.bf16.mxu0 0
        %1554 = vmatpush1.bf16.msra.mxu0 0
        %1555 = vmatprep.subr.bf16.mxu0 0
        %1556 = vmatpush1.bf16.msra.mxu0 0
        %1557 = vmatprep.subr.bf16.mxu0 0
        %1558 = vmatpush1.bf16.msra.mxu0 0
        %1559 = vmatprep.subr.bf16.mxu0 0
        %1560 = vmatpush1.bf16.msra.mxu0 0
        %1561 = vmatprep.subr.bf16.mxu0 0
        %1562 = vmatpush1.bf16.msra.mxu0 %v1542
        %1563 = vmatprep.subr.bf16.mxu0 0
        %1564 = vmatpush2.bf16.msra.mxu0 0
        %1565 = vmatprep.subr.bf16.mxu0 0
        %1566 = vmatpush2.bf16.msra.mxu0 0
        %1567 = vmatprep.subr.bf16.mxu0 0
        %1568 = vmatpush2.bf16.msra.mxu0 0
        %1569 = vmatprep.subr.bf16.mxu0 0
        %1570 = vmatpush2.bf16.msra.mxu0 0
        %1571 = vmatprep.subr.bf16.mxu0 0
        %1572 = vmatpush2.bf16.msra.mxu0 0
        %1573 = vmatprep.subr.bf16.mxu0 0
        %1574 = vmatpush2.bf16.msra.mxu0 0
        %1575 = vmatprep.subr.bf16.mxu0 0
        %1576 = vmatpush2.bf16.msra.mxu0 0
        %1577 = vmatprep.subr.bf16.mxu0 0
        %1578 = vmatpush2.bf16.msra.mxu0 0
        %1579 = vmatprep.mubr.bf16.mxu0 0
        %1580 = vmatmul.mubr.bf16.gmra.mxu0 %v1545
        %v1581 = vpop.f32.mrf.mxu0
        %v1582 = vadd.f32 0.0, %v1581
        %v1583 = vpop.f32.mrf.mxu0
        %v1584 = vpop.f32.mrf.mxu0
        %v1585 = vadd.f32 0.0, %v1584
        %v1586 = vpop.f32.mrf.mxu0
        %1587 = vdwg.mxu0
        %1590 = vrot.lane.b32.xlu0 %v1582, 64
        %v1591 = vpop.permute.xlu0 %1590
        %1592 = vrot.lane.b32.xlu0 %v1585, 64
        %v1593 = vpop.permute.xlu0 %1592
        %vm1596 = vcmask 785920
        %1597 = vst.msk [vmem:[#allocation3] sm:$0xff] %vm1596, %v1591
        %1598 = vst.msk [vmem:[#allocation3 + $0x8] sm:$0xff] %vm1596, %v1593
        %1599 = vrot.lane.b32.xlu0 %v1211, 32
        %v1600 = vpop.permute.xlu0 %1599
        %1601 = vrot.lane.b32.xlu0 %v1212, 32
        %v1602 = vpop.permute.xlu0 %1601
        %v1604 = vsel %vm1214, %v1600, 0
        %v1607 = vsel %vm1214, %v1602, 0
        %1609 = vmatprep.subr.bf16.mxu0 0
        %1610 = vmatpush1.bf16.xpose.msra.mxu0 0
        %1611 = vmatprep.subr.bf16.mxu0 0
        %1612 = vmatpush1.bf16.xpose.msra.mxu0 0
        %1613 = vmatprep.subr.bf16.mxu0 0
        %1614 = vmatpush1.bf16.xpose.msra.mxu0 0
        %1615 = vmatprep.subr.bf16.mxu0 0
        %1616 = vmatpush1.bf16.xpose.msra.mxu0 0
        %1617 = vmatprep.subr.bf16.mxu0 0
        %1618 = vmatpush1.bf16.xpose.msra.mxu0 0
        %1619 = vmatprep.subr.bf16.mxu0 0
        %1620 = vmatpush1.bf16.xpose.msra.mxu0 0
        %1621 = vmatprep.subr.bf16.mxu0 0
        %1622 = vmatpush1.bf16.xpose.msra.mxu0 0
        %1623 = vmatprep.subr.bf16.mxu0 0
        %1624 = vmatpush1.bf16.xpose.msra.mxu0 %v1607
        %1625 = vmatprep.subr.bf16.mxu0 0
        %1626 = vmatpush2.bf16.xpose.msra.mxu0 0
        %1627 = vmatprep.subr.bf16.mxu0 0
        %1628 = vmatpush2.bf16.xpose.msra.mxu0 0
        %1629 = vmatprep.subr.bf16.mxu0 0
        %1630 = vmatpush2.bf16.xpose.msra.mxu0 0
        %1631 = vmatprep.subr.bf16.mxu0 0
        %1632 = vmatpush2.bf16.xpose.msra.mxu0 0
        %1633 = vmatprep.subr.bf16.mxu0 0
        %1634 = vmatpush2.bf16.xpose.msra.mxu0 0
        %1635 = vmatprep.subr.bf16.mxu0 0
        %1636 = vmatpush2.bf16.xpose.msra.mxu0 0
        %1637 = vmatprep.subr.bf16.mxu0 0
        %1638 = vmatpush2.bf16.xpose.msra.mxu0 0
        %1639 = vmatprep.subr.bf16.mxu0 0
        %1640 = vmatpush2.bf16.xpose.msra.mxu0 0
        %1641 = vmatprep.mubr.bf16.mxu0 0
        %1642 = vmatmul.mubr.bf16.gmra.mxu0 %v1604
        %v1643 = vpop.f32.mrf.mxu0
        %v1644 = vadd.f32 %v1210, %v1643
        %v1645 = vpop.f32.mrf.mxu0
        %v1646 = vpop.f32.mrf.mxu0
        %v1647 = vadd.f32 %v1210, %v1646
        %v1648 = vpop.f32.mrf.mxu0
        %1649 = vdwg.mxu0
        %v1650 = vsel %vm1262, %v1644, -inf
        %1651 = vmax.xlane.f32.xlu0 %v1650
        %v1652 = vpop.xlane.xlu0 %1651
        %v1653 = vsel %vm1262, %v1647, -inf
        %1654 = vmax.xlane.f32.xlu0 %v1653
        %v1655 = vpop.xlane.xlu0 %1654
        %v1656 = vsub.f32 %v1644, %v1652
        %v1657 = vsub.f32 %v1647, %v1655
        %v1658 = vmul.f32 %v1656, 1.442695
        %v1659 = vpow.pop %v1658
        %v1660 = vmul.f32 %v1657, 1.442695
        %v1661 = vpow.pop %v1660
        %v1662 = vsel %vm1262, %v1659, 0.0
        %1663 = vadd.xlane.f32.xlu0 %v1662
        %v1664 = vpop.xlane.xlu0 %1663
        %v1665 = vsel %vm1262, %v1661, 0.0
        %1666 = vadd.xlane.f32.xlu0 %v1665
        %v1667 = vpop.xlane.xlu0 %1666
        %v1668 = vrcp.pop %v1664
        %v1669 = vrcp.pop %v1667
        %v1670 = vmul.f32 %v1659, %v1668
        %v1671 = vmul.f32 %v1661, %v1669
        %v1672 = vpack.c.bf16 %v1671, %v1670
        %1673 = vrot.lane.b32.xlu0 %v1213, 32
        %v1674 = vpop.permute.xlu0 %1673
        %v1677 = vsel %vm1262, %v1672, 0
        %1679 = vmatprep.subr.bf16.mxu0 0
        %1680 = vmatpush1.bf16.msra.mxu0 0
        %1681 = vmatprep.subr.bf16.mxu0 0
        %1682 = vmatpush1.bf16.msra.mxu0 0
        %1683 = vmatprep.subr.bf16.mxu0 0
        %1684 = vmatpush1.bf16.msra.mxu0 0
        %1685 = vmatprep.subr.bf16.mxu0 0
        %1686 = vmatpush1.bf16.msra.mxu0 0
        %1687 = vmatprep.subr.bf16.mxu0 0
        %1688 = vmatpush1.bf16.msra.mxu0 0
        %1689 = vmatprep.subr.bf16.mxu0 0
        %1690 = vmatpush1.bf16.msra.mxu0 0
        %1691 = vmatprep.subr.bf16.mxu0 0
        %1692 = vmatpush1.bf16.msra.mxu0 0
        %1693 = vmatprep.subr.bf16.mxu0 0
        %1694 = vmatpush1.bf16.msra.mxu0 %v1674
        %1695 = vmatprep.subr.bf16.mxu0 0
        %1696 = vmatpush2.bf16.msra.mxu0 0
        %1697 = vmatprep.subr.bf16.mxu0 0
        %1698 = vmatpush2.bf16.msra.mxu0 0
        %1699 = vmatprep.subr.bf16.mxu0 0
        %1700 = vmatpush2.bf16.msra.mxu0 0
        %1701 = vmatprep.subr.bf16.mxu0 0
        %1702 = vmatpush2.bf16.msra.mxu0 0
        %1703 = vmatprep.subr.bf16.mxu0 0
        %1704 = vmatpush2.bf16.msra.mxu0 0
        %1705 = vmatprep.subr.bf16.mxu0 0
        %1706 = vmatpush2.bf16.msra.mxu0 0
        %1707 = vmatprep.subr.bf16.mxu0 0
        %1708 = vmatpush2.bf16.msra.mxu0 0
        %1709 = vmatprep.subr.bf16.mxu0 0
        %1710 = vmatpush2.bf16.msra.mxu0 0
        %1711 = vmatprep.mubr.bf16.mxu0 0
        %1712 = vmatmul.mubr.bf16.gmra.mxu0 %v1677
        %v1713 = vpop.f32.mrf.mxu0
        %v1714 = vadd.f32 0.0, %v1713
        %v1715 = vpop.f32.mrf.mxu0
        %v1716 = vpop.f32.mrf.mxu0
        %v1717 = vadd.f32 0.0, %v1716
        %v1718 = vpop.f32.mrf.mxu0
        %1719 = vdwg.mxu0
        %1722 = vrot.lane.b32.xlu0 %v1714, 96
        %v1723 = vpop.permute.xlu0 %1722
        %1724 = vrot.lane.b32.xlu0 %v1717, 96
        %v1725 = vpop.permute.xlu0 %1724
        %vm1728 = vcmask 1048320
        %1729 = vst.msk [vmem:[#allocation3] sm:$0xff] %vm1728, %v1723
        %1730 = vst.msk [vmem:[#allocation3 + $0x8] sm:$0xff] %vm1728, %v1725
        %v1731 = vlaneseq
        %v1732 = vshrl.u32 %v1731, 7
        %v1733 = vsub.s32 1, %v1732
        %v1734 = vrot.slane %v1206, %v1733
        %v1735 = vpack.c.bf16 %v1153, %v1149
        %v1736 = vpack.c.bf16 %v1155, %v1151
        %v1737 = vpack.c.bf16 %v1203, %v1200
        %v1739 = vsel %vm1214, %v1735, 0
        %v1742 = vsel %vm1214, %v1736, 0
        %1744 = vmatprep.subr.bf16.mxu0 0
        %1745 = vmatpush1.bf16.xpose.msra.mxu0 0
        %1746 = vmatprep.subr.bf16.mxu0 0
        %1747 = vmatpush1.bf16.xpose.msra.mxu0 0
        %1748 = vmatprep.subr.bf16.mxu0 0
        %1749 = vmatpush1.bf16.xpose.msra.mxu0 0
        %1750 = vmatprep.subr.bf16.mxu0 0
        %1751 = vmatpush1.bf16.xpose.msra.mxu0 0
        %1752 = vmatprep.subr.bf16.mxu0 0
        %1753 = vmatpush1.bf16.xpose.msra.mxu0 0
        %1754 = vmatprep.subr.bf16.mxu0 0
        %1755 = vmatpush1.bf16.xpose.msra.mxu0 0
        %1756 = vmatprep.subr.bf16.mxu0 0
        %1757 = vmatpush1.bf16.xpose.msra.mxu0 0
        %1758 = vmatprep.subr.bf16.mxu0 0
        %1759 = vmatpush1.bf16.xpose.msra.mxu0 %v1742
        %1760 = vmatprep.subr.bf16.mxu0 0
        %1761 = vmatpush2.bf16.xpose.msra.mxu0 0
        %1762 = vmatprep.subr.bf16.mxu0 0
        %1763 = vmatpush2.bf16.xpose.msra.mxu0 0
        %1764 = vmatprep.subr.bf16.mxu0 0
        %1765 = vmatpush2.bf16.xpose.msra.mxu0 0
        %1766 = vmatprep.subr.bf16.mxu0 0
        %1767 = vmatpush2.bf16.xpose.msra.mxu0 0
        %1768 = vmatprep.subr.bf16.mxu0 0
        %1769 = vmatpush2.bf16.xpose.msra.mxu0 0
        %1770 = vmatprep.subr.bf16.mxu0 0
        %1771 = vmatpush2.bf16.xpose.msra.mxu0 0
        %1772 = vmatprep.subr.bf16.mxu0 0
        %1773 = vmatpush2.bf16.xpose.msra.mxu0 0
        %1774 = vmatprep.subr.bf16.mxu0 0
        %1775 = vmatpush2.bf16.xpose.msra.mxu0 0
        %1776 = vmatprep.mubr.bf16.mxu0 0
        %1777 = vmatmul.mubr.bf16.gmra.mxu0 %v1739
        %v1778 = vpop.f32.mrf.mxu0
        %v1779 = vadd.f32 %v1734, %v1778
        %v1780 = vpop.f32.mrf.mxu0
        %v1781 = vpop.f32.mrf.mxu0
        %v1782 = vadd.f32 %v1734, %v1781
        %v1783 = vpop.f32.mrf.mxu0
        %1784 = vdwg.mxu0
        %v1785 = vsel %vm1262, %v1779, -inf
        %1786 = vmax.xlane.f32.xlu0 %v1785
        %v1787 = vpop.xlane.xlu0 %1786
        %v1788 = vsel %vm1262, %v1782, -inf
        %1789 = vmax.xlane.f32.xlu0 %v1788
        %v1790 = vpop.xlane.xlu0 %1789
        %v1791 = vsub.f32 %v1779, %v1787
        %v1792 = vsub.f32 %v1782, %v1790
        %v1793 = vmul.f32 %v1791, 1.442695
        %v1794 = vpow.pop %v1793
        %v1795 = vmul.f32 %v1792, 1.442695
        %v1796 = vpow.pop %v1795
        %v1797 = vsel %vm1262, %v1794, 0.0
        %1798 = vadd.xlane.f32.xlu0 %v1797
        %v1799 = vpop.xlane.xlu0 %1798
        %v1800 = vsel %vm1262, %v1796, 0.0
        %1801 = vadd.xlane.f32.xlu0 %v1800
        %v1802 = vpop.xlane.xlu0 %1801
        %v1803 = vrcp.pop %v1799
        %v1804 = vrcp.pop %v1802
        %v1805 = vmul.f32 %v1794, %v1803
        %v1806 = vmul.f32 %v1796, %v1804
        %v1807 = vpack.c.bf16 %v1806, %v1805
        %v1809 = vsel %vm1262, %v1807, 0
        %1811 = vmatprep.subr.bf16.mxu0 0
        %1812 = vmatpush1.bf16.msra.mxu0 0
        %1813 = vmatprep.subr.bf16.mxu0 0
        %1814 = vmatpush1.bf16.msra.mxu0 0
        %1815 = vmatprep.subr.bf16.mxu0 0
        %1816 = vmatpush1.bf16.msra.mxu0 0
        %1817 = vmatprep.subr.bf16.mxu0 0
        %1818 = vmatpush1.bf16.msra.mxu0 0
        %1819 = vmatprep.subr.bf16.mxu0 0
        %1820 = vmatpush1.bf16.msra.mxu0 0
        %1821 = vmatprep.subr.bf16.mxu0 0
        %1822 = vmatpush1.bf16.msra.mxu0 0
        %1823 = vmatprep.subr.bf16.mxu0 0
        %1824 = vmatpush1.bf16.msra.mxu0 0
        %1825 = vmatprep.subr.bf16.mxu0 0
        %1826 = vmatpush1.bf16.msra.mxu0 %v1737
        %1827 = vmatprep.subr.bf16.mxu0 0
        %1828 = vmatpush2.bf16.msra.mxu0 0
        %1829 = vmatprep.subr.bf16.mxu0 0
        %1830 = vmatpush2.bf16.msra.mxu0 0
        %1831 = vmatprep.subr.bf16.mxu0 0
        %1832 = vmatpush2.bf16.msra.mxu0 0
        %1833 = vmatprep.subr.bf16.mxu0 0
        %1834 = vmatpush2.bf16.msra.mxu0 0
        %1835 = vmatprep.subr.bf16.mxu0 0
        %1836 = vmatpush2.bf16.msra.mxu0 0
        %1837 = vmatprep.subr.bf16.mxu0 0
        %1838 = vmatpush2.bf16.msra.mxu0 0
        %1839 = vmatprep.subr.bf16.mxu0 0
        %1840 = vmatpush2.bf16.msra.mxu0 0
        %1841 = vmatprep.subr.bf16.mxu0 0
        %1842 = vmatpush2.bf16.msra.mxu0 0
        %1843 = vmatprep.mubr.bf16.mxu0 0
        %1844 = vmatmul.mubr.bf16.gmra.mxu0 %v1809
        %v1845 = vpop.f32.mrf.mxu0
        %v1846 = vadd.f32 0.0, %v1845
        %v1847 = vpop.f32.mrf.mxu0
        %v1848 = vpop.f32.mrf.mxu0
        %v1849 = vadd.f32 0.0, %v1848
        %v1850 = vpop.f32.mrf.mxu0
        %1851 = vdwg.mxu0
        %1852 = vst.msk [vmem:[#allocation3 + $0x10] sm:$0xff] %vm1214, %v1846
        %1853 = vst.msk [vmem:[#allocation3 + $0x18] sm:$0xff] %vm1214, %v1849
        %1855 = vrot.lane.b32.xlu0 %v1735, 96
        %v1856 = vpop.permute.xlu0 %1855
        %1858 = vrot.lane.b32.xlu0 %v1736, 96
        %v1859 = vpop.permute.xlu0 %1858
        %v1861 = vsel %vm1214, %v1856, 0
        %v1864 = vsel %vm1214, %v1859, 0
        %1866 = vmatprep.subr.bf16.mxu0 0
        %1867 = vmatpush1.bf16.xpose.msra.mxu0 0
        %1868 = vmatprep.subr.bf16.mxu0 0
        %1869 = vmatpush1.bf16.xpose.msra.mxu0 0
        %1870 = vmatprep.subr.bf16.mxu0 0
        %1871 = vmatpush1.bf16.xpose.msra.mxu0 0
        %1872 = vmatprep.subr.bf16.mxu0 0
        %1873 = vmatpush1.bf16.xpose.msra.mxu0 0
        %1874 = vmatprep.subr.bf16.mxu0 0
        %1875 = vmatpush1.bf16.xpose.msra.mxu0 0
        %1876 = vmatprep.subr.bf16.mxu0 0
        %1877 = vmatpush1.bf16.xpose.msra.mxu0 0
        %1878 = vmatprep.subr.bf16.mxu0 0
        %1879 = vmatpush1.bf16.xpose.msra.mxu0 0
        %1880 = vmatprep.subr.bf16.mxu0 0
        %1881 = vmatpush1.bf16.xpose.msra.mxu0 %v1864
        %1882 = vmatprep.subr.bf16.mxu0 0
        %1883 = vmatpush2.bf16.xpose.msra.mxu0 0
        %1884 = vmatprep.subr.bf16.mxu0 0
        %1885 = vmatpush2.bf16.xpose.msra.mxu0 0
        %1886 = vmatprep.subr.bf16.mxu0 0
        %1887 = vmatpush2.bf16.xpose.msra.mxu0 0
        %1888 = vmatprep.subr.bf16.mxu0 0
        %1889 = vmatpush2.bf16.xpose.msra.mxu0 0
        %1890 = vmatprep.subr.bf16.mxu0 0
        %1891 = vmatpush2.bf16.xpose.msra.mxu0 0
        %1892 = vmatprep.subr.bf16.mxu0 0
        %1893 = vmatpush2.bf16.xpose.msra.mxu0 0
        %1894 = vmatprep.subr.bf16.mxu0 0
        %1895 = vmatpush2.bf16.xpose.msra.mxu0 0
        %1896 = vmatprep.subr.bf16.mxu0 0
        %1897 = vmatpush2.bf16.xpose.msra.mxu0 0
        %1898 = vmatprep.mubr.bf16.mxu0 0
        %1899 = vmatmul.mubr.bf16.gmra.mxu0 %v1861
        %v1900 = vpop.f32.mrf.mxu0
        %v1901 = vadd.f32 %v1734, %v1900
        %v1902 = vpop.f32.mrf.mxu0
        %v1903 = vpop.f32.mrf.mxu0
        %v1904 = vadd.f32 %v1734, %v1903
        %v1905 = vpop.f32.mrf.mxu0
        %1906 = vdwg.mxu0
        %v1907 = vsel %vm1262, %v1901, -inf
        %1908 = vmax.xlane.f32.xlu0 %v1907
        %v1909 = vpop.xlane.xlu0 %1908
        %v1910 = vsel %vm1262, %v1904, -inf
        %1911 = vmax.xlane.f32.xlu0 %v1910
        %v1912 = vpop.xlane.xlu0 %1911
        %v1913 = vsub.f32 %v1901, %v1909
        %v1914 = vsub.f32 %v1904, %v1912
        %v1915 = vmul.f32 %v1913, 1.442695
        %v1916 = vpow.pop %v1915
        %v1917 = vmul.f32 %v1914, 1.442695
        %v1918 = vpow.pop %v1917
        %v1919 = vsel %vm1262, %v1916, 0.0
        %1920 = vadd.xlane.f32.xlu0 %v1919
        %v1921 = vpop.xlane.xlu0 %1920
        %v1922 = vsel %vm1262, %v1918, 0.0
        %1923 = vadd.xlane.f32.xlu0 %v1922
        %v1924 = vpop.xlane.xlu0 %1923
        %v1925 = vrcp.pop %v1921
        %v1926 = vrcp.pop %v1924
        %v1927 = vmul.f32 %v1916, %v1925
        %v1928 = vmul.f32 %v1918, %v1926
        %v1929 = vpack.c.bf16 %v1928, %v1927
        %1931 = vrot.lane.b32.xlu0 %v1737, 96
        %v1932 = vpop.permute.xlu0 %1931
        %v1935 = vsel %vm1262, %v1929, 0
        %1937 = vmatprep.subr.bf16.mxu0 0
        %1938 = vmatpush1.bf16.msra.mxu0 0
        %1939 = vmatprep.subr.bf16.mxu0 0
        %1940 = vmatpush1.bf16.msra.mxu0 0
        %1941 = vmatprep.subr.bf16.mxu0 0
        %1942 = vmatpush1.bf16.msra.mxu0 0
        %1943 = vmatprep.subr.bf16.mxu0 0
        %1944 = vmatpush1.bf16.msra.mxu0 0
        %1945 = vmatprep.subr.bf16.mxu0 0
        %1946 = vmatpush1.bf16.msra.mxu0 0
        %1947 = vmatprep.subr.bf16.mxu0 0
        %1948 = vmatpush1.bf16.msra.mxu0 0
        %1949 = vmatprep.subr.bf16.mxu0 0
        %1950 = vmatpush1.bf16.msra.mxu0 0
        %1951 = vmatprep.subr.bf16.mxu0 0
        %1952 = vmatpush1.bf16.msra.mxu0 %v1932
        %1953 = vmatprep.subr.bf16.mxu0 0
        %1954 = vmatpush2.bf16.msra.mxu0 0
        %1955 = vmatprep.subr.bf16.mxu0 0
        %1956 = vmatpush2.bf16.msra.mxu0 0
        %1957 = vmatprep.subr.bf16.mxu0 0
        %1958 = vmatpush2.bf16.msra.mxu0 0
        %1959 = vmatprep.subr.bf16.mxu0 0
        %1960 = vmatpush2.bf16.msra.mxu0 0
        %1961 = vmatprep.subr.bf16.mxu0 0
        %1962 = vmatpush2.bf16.msra.mxu0 0
        %1963 = vmatprep.subr.bf16.mxu0 0
        %1964 = vmatpush2.bf16.msra.mxu0 0
        %1965 = vmatprep.subr.bf16.mxu0 0
        %1966 = vmatpush2.bf16.msra.mxu0 0
        %1967 = vmatprep.subr.bf16.mxu0 0
        %1968 = vmatpush2.bf16.msra.mxu0 0
        %1969 = vmatprep.mubr.bf16.mxu0 0
        %1970 = vmatmul.mubr.bf16.gmra.mxu0 %v1935
        %v1971 = vpop.f32.mrf.mxu0
        %v1972 = vadd.f32 0.0, %v1971
        %v1973 = vpop.f32.mrf.mxu0
        %v1974 = vpop.f32.mrf.mxu0
        %v1975 = vadd.f32 0.0, %v1974
        %v1976 = vpop.f32.mrf.mxu0
        %1977 = vdwg.mxu0
        %1980 = vrot.lane.b32.xlu0 %v1972, 32
        %v1981 = vpop.permute.xlu0 %1980
        %1982 = vrot.lane.b32.xlu0 %v1975, 32
        %v1983 = vpop.permute.xlu0 %1982
        %1986 = vst.msk [vmem:[#allocation3 + $0x10] sm:$0xff] %vm1464, %v1981
        %1987 = vst.msk [vmem:[#allocation3 + $0x18] sm:$0xff] %vm1464, %v1983
        %1988 = vrot.lane.b32.xlu0 %v1735, 64
        %v1989 = vpop.permute.xlu0 %1988
        %1990 = vrot.lane.b32.xlu0 %v1736, 64
        %v1991 = vpop.permute.xlu0 %1990
        %v1993 = vsel %vm1214, %v1989, 0
        %v1996 = vsel %vm1214, %v1991, 0
        %1998 = vmatprep.subr.bf16.mxu0 0
        %1999 = vmatpush1.bf16.xpose.msra.mxu0 0
        %2000 = vmatprep.subr.bf16.mxu0 0
        %2001 = vmatpush1.bf16.xpose.msra.mxu0 0
        %2002 = vmatprep.subr.bf16.mxu0 0
        %2003 = vmatpush1.bf16.xpose.msra.mxu0 0
        %2004 = vmatprep.subr.bf16.mxu0 0
        %2005 = vmatpush1.bf16.xpose.msra.mxu0 0
        %2006 = vmatprep.subr.bf16.mxu0 0
        %2007 = vmatpush1.bf16.xpose.msra.mxu0 0
        %2008 = vmatprep.subr.bf16.mxu0 0
        %2009 = vmatpush1.bf16.xpose.msra.mxu0 0
        %2010 = vmatprep.subr.bf16.mxu0 0
        %2011 = vmatpush1.bf16.xpose.msra.mxu0 0
        %2012 = vmatprep.subr.bf16.mxu0 0
        %2013 = vmatpush1.bf16.xpose.msra.mxu0 %v1996
        %2014 = vmatprep.subr.bf16.mxu0 0
        %2015 = vmatpush2.bf16.xpose.msra.mxu0 0
        %2016 = vmatprep.subr.bf16.mxu0 0
        %2017 = vmatpush2.bf16.xpose.msra.mxu0 0
        %2018 = vmatprep.subr.bf16.mxu0 0
        %2019 = vmatpush2.bf16.xpose.msra.mxu0 0
        %2020 = vmatprep.subr.bf16.mxu0 0
        %2021 = vmatpush2.bf16.xpose.msra.mxu0 0
        %2022 = vmatprep.subr.bf16.mxu0 0
        %2023 = vmatpush2.bf16.xpose.msra.mxu0 0
        %2024 = vmatprep.subr.bf16.mxu0 0
        %2025 = vmatpush2.bf16.xpose.msra.mxu0 0
        %2026 = vmatprep.subr.bf16.mxu0 0
        %2027 = vmatpush2.bf16.xpose.msra.mxu0 0
        %2028 = vmatprep.subr.bf16.mxu0 0
        %2029 = vmatpush2.bf16.xpose.msra.mxu0 0
        %2030 = vmatprep.mubr.bf16.mxu0 0
        %2031 = vmatmul.mubr.bf16.gmra.mxu0 %v1993
        %v2032 = vpop.f32.mrf.mxu0
        %v2033 = vadd.f32 %v1734, %v2032
        %v2034 = vpop.f32.mrf.mxu0
        %v2035 = vpop.f32.mrf.mxu0
        %v2036 = vadd.f32 %v1734, %v2035
        %v2037 = vpop.f32.mrf.mxu0
        %2038 = vdwg.mxu0
        %v2039 = vsel %vm1262, %v2033, -inf
        %2040 = vmax.xlane.f32.xlu0 %v2039
        %v2041 = vpop.xlane.xlu0 %2040
        %v2042 = vsel %vm1262, %v2036, -inf
        %2043 = vmax.xlane.f32.xlu0 %v2042
        %v2044 = vpop.xlane.xlu0 %2043
        %v2045 = vsub.f32 %v2033, %v2041
        %v2046 = vsub.f32 %v2036, %v2044
        %v2047 = vmul.f32 %v2045, 1.442695
        %v2048 = vpow.pop %v2047
        %v2049 = vmul.f32 %v2046, 1.442695
        %v2050 = vpow.pop %v2049
        %v2051 = vsel %vm1262, %v2048, 0.0
        %2052 = vadd.xlane.f32.xlu0 %v2051
        %v2053 = vpop.xlane.xlu0 %2052
        %v2054 = vsel %vm1262, %v2050, 0.0
        %2055 = vadd.xlane.f32.xlu0 %v2054
        %v2056 = vpop.xlane.xlu0 %2055
        %v2057 = vrcp.pop %v2053
        %v2058 = vrcp.pop %v2056
        %v2059 = vmul.f32 %v2048, %v2057
        %v2060 = vmul.f32 %v2050, %v2058
        %v2061 = vpack.c.bf16 %v2060, %v2059
        %2062 = vrot.lane.b32.xlu0 %v1737, 64
        %v2063 = vpop.permute.xlu0 %2062
        %v2066 = vsel %vm1262, %v2061, 0
        %2068 = vmatprep.subr.bf16.mxu0 0
        %2069 = vmatpush1.bf16.msra.mxu0 0
        %2070 = vmatprep.subr.bf16.mxu0 0
        %2071 = vmatpush1.bf16.msra.mxu0 0
        %2072 = vmatprep.subr.bf16.mxu0 0
        %2073 = vmatpush1.bf16.msra.mxu0 0
        %2074 = vmatprep.subr.bf16.mxu0 0
        %2075 = vmatpush1.bf16.msra.mxu0 0
        %2076 = vmatprep.subr.bf16.mxu0 0
        %2077 = vmatpush1.bf16.msra.mxu0 0
        %2078 = vmatprep.subr.bf16.mxu0 0
        %2079 = vmatpush1.bf16.msra.mxu0 0
        %2080 = vmatprep.subr.bf16.mxu0 0
        %2081 = vmatpush1.bf16.msra.mxu0 0
        %2082 = vmatprep.subr.bf16.mxu0 0
        %2083 = vmatpush1.bf16.msra.mxu0 %v2063
        %2084 = vmatprep.subr.bf16.mxu0 0
        %2085 = vmatpush2.bf16.msra.mxu0 0
        %2086 = vmatprep.subr.bf16.mxu0 0
        %2087 = vmatpush2.bf16.msra.mxu0 0
        %2088 = vmatprep.subr.bf16.mxu0 0
        %2089 = vmatpush2.bf16.msra.mxu0 0
        %2090 = vmatprep.subr.bf16.mxu0 0
        %2091 = vmatpush2.bf16.msra.mxu0 0
        %2092 = vmatprep.subr.bf16.mxu0 0
        %2093 = vmatpush2.bf16.msra.mxu0 0
        %2094 = vmatprep.subr.bf16.mxu0 0
        %2095 = vmatpush2.bf16.msra.mxu0 0
        %2096 = vmatprep.subr.bf16.mxu0 0
        %2097 = vmatpush2.bf16.msra.mxu0 0
        %2098 = vmatprep.subr.bf16.mxu0 0
        %2099 = vmatpush2.bf16.msra.mxu0 0
        %2100 = vmatprep.mubr.bf16.mxu0 0
        %2101 = vmatmul.mubr.bf16.gmra.mxu0 %v2066
        %v2102 = vpop.f32.mrf.mxu0
        %v2103 = vadd.f32 0.0, %v2102
        %v2104 = vpop.f32.mrf.mxu0
        %v2105 = vpop.f32.mrf.mxu0
        %v2106 = vadd.f32 0.0, %v2105
        %v2107 = vpop.f32.mrf.mxu0
        %2108 = vdwg.mxu0
        %2111 = vrot.lane.b32.xlu0 %v2103, 64
        %v2112 = vpop.permute.xlu0 %2111
        %2113 = vrot.lane.b32.xlu0 %v2106, 64
        %v2114 = vpop.permute.xlu0 %2113
        %2117 = vst.msk [vmem:[#allocation3 + $0x10] sm:$0xff] %vm1596, %v2112
        %2118 = vst.msk [vmem:[#allocation3 + $0x18] sm:$0xff] %vm1596, %v2114
        %2119 = vrot.lane.b32.xlu0 %v1735, 32
        %v2120 = vpop.permute.xlu0 %2119
        %2121 = vrot.lane.b32.xlu0 %v1736, 32
        %v2122 = vpop.permute.xlu0 %2121
        %v2124 = vsel %vm1214, %v2120, 0
        %v2127 = vsel %vm1214, %v2122, 0
        %2129 = vmatprep.subr.bf16.mxu0 0
        %2130 = vmatpush1.bf16.xpose.msra.mxu0 0
        %2131 = vmatprep.subr.bf16.mxu0 0
        %2132 = vmatpush1.bf16.xpose.msra.mxu0 0
        %2133 = vmatprep.subr.bf16.mxu0 0
        %2134 = vmatpush1.bf16.xpose.msra.mxu0 0
        %2135 = vmatprep.subr.bf16.mxu0 0
        %2136 = vmatpush1.bf16.xpose.msra.mxu0 0
        %2137 = vmatprep.subr.bf16.mxu0 0
        %2138 = vmatpush1.bf16.xpose.msra.mxu0 0
        %2139 = vmatprep.subr.bf16.mxu0 0
        %2140 = vmatpush1.bf16.xpose.msra.mxu0 0
        %2141 = vmatprep.subr.bf16.mxu0 0
        %2142 = vmatpush1.bf16.xpose.msra.mxu0 0
        %2143 = vmatprep.subr.bf16.mxu0 0
        %2144 = vmatpush1.bf16.xpose.msra.mxu0 %v2127
        %2145 = vmatprep.subr.bf16.mxu0 0
        %2146 = vmatpush2.bf16.xpose.msra.mxu0 0
        %2147 = vmatprep.subr.bf16.mxu0 0
        %2148 = vmatpush2.bf16.xpose.msra.mxu0 0
        %2149 = vmatprep.subr.bf16.mxu0 0
        %2150 = vmatpush2.bf16.xpose.msra.mxu0 0
        %2151 = vmatprep.subr.bf16.mxu0 0
        %2152 = vmatpush2.bf16.xpose.msra.mxu0 0
        %2153 = vmatprep.subr.bf16.mxu0 0
        %2154 = vmatpush2.bf16.xpose.msra.mxu0 0
        %2155 = vmatprep.subr.bf16.mxu0 0
        %2156 = vmatpush2.bf16.xpose.msra.mxu0 0
        %2157 = vmatprep.subr.bf16.mxu0 0
        %2158 = vmatpush2.bf16.xpose.msra.mxu0 0
        %2159 = vmatprep.subr.bf16.mxu0 0
        %2160 = vmatpush2.bf16.xpose.msra.mxu0 0
        %2161 = vmatprep.mubr.bf16.mxu0 0
        %2162 = vmatmul.mubr.bf16.gmra.mxu0 %v2124
        %v2163 = vpop.f32.mrf.mxu0
        %v2164 = vadd.f32 %v1734, %v2163
        %v2165 = vpop.f32.mrf.mxu0
        %v2166 = vpop.f32.mrf.mxu0
        %v2167 = vadd.f32 %v1734, %v2166
        %v2168 = vpop.f32.mrf.mxu0
        %2169 = vdwg.mxu0
        %v2170 = vsel %vm1262, %v2164, -inf
        %2171 = vmax.xlane.f32.xlu0 %v2170
        %v2172 = vpop.xlane.xlu0 %2171
        %v2173 = vsel %vm1262, %v2167, -inf
        %2174 = vmax.xlane.f32.xlu0 %v2173
        %v2175 = vpop.xlane.xlu0 %2174
        %v2176 = vsub.f32 %v2164, %v2172
        %v2177 = vsub.f32 %v2167, %v2175
        %v2178 = vmul.f32 %v2176, 1.442695
        %v2179 = vpow.pop %v2178
        %v2180 = vmul.f32 %v2177, 1.442695
        %v2181 = vpow.pop %v2180
        %v2182 = vsel %vm1262, %v2179, 0.0
        %2183 = vadd.xlane.f32.xlu0 %v2182
        %v2184 = vpop.xlane.xlu0 %2183
        %v2185 = vsel %vm1262, %v2181, 0.0
        %2186 = vadd.xlane.f32.xlu0 %v2185
        %v2187 = vpop.xlane.xlu0 %2186
        %v2188 = vrcp.pop %v2184
        %v2189 = vrcp.pop %v2187
        %v2190 = vmul.f32 %v2179, %v2188
        %v2191 = vmul.f32 %v2181, %v2189
        %v2192 = vpack.c.bf16 %v2191, %v2190
        %2193 = vrot.lane.b32.xlu0 %v1737, 32
        %v2194 = vpop.permute.xlu0 %2193
        %v2197 = vsel %vm1262, %v2192, 0
        %2199 = vmatprep.subr.bf16.mxu0 0
        %2200 = vmatpush1.bf16.msra.mxu0 0
        %2201 = vmatprep.subr.bf16.mxu0 0
        %2202 = vmatpush1.bf16.msra.mxu0 0
        %2203 = vmatprep.subr.bf16.mxu0 0
        %2204 = vmatpush1.bf16.msra.mxu0 0
        %2205 = vmatprep.subr.bf16.mxu0 0
        %2206 = vmatpush1.bf16.msra.mxu0 0
        %2207 = vmatprep.subr.bf16.mxu0 0
        %2208 = vmatpush1.bf16.msra.mxu0 0
        %2209 = vmatprep.subr.bf16.mxu0 0
        %2210 = vmatpush1.bf16.msra.mxu0 0
        %2211 = vmatprep.subr.bf16.mxu0 0
        %2212 = vmatpush1.bf16.msra.mxu0 0
        %2213 = vmatprep.subr.bf16.mxu0 0
        %2214 = vmatpush1.bf16.msra.mxu0 %v2194
        %2215 = vmatprep.subr.bf16.mxu0 0
        %2216 = vmatpush2.bf16.msra.mxu0 0
        %2217 = vmatprep.subr.bf16.mxu0 0
        %2218 = vmatpush2.bf16.msra.mxu0 0
        %2219 = vmatprep.subr.bf16.mxu0 0
        %2220 = vmatpush2.bf16.msra.mxu0 0
        %2221 = vmatprep.subr.bf16.mxu0 0
        %2222 = vmatpush2.bf16.msra.mxu0 0
        %2223 = vmatprep.subr.bf16.mxu0 0
        %2224 = vmatpush2.bf16.msra.mxu0 0
        %2225 = vmatprep.subr.bf16.mxu0 0
        %2226 = vmatpush2.bf16.msra.mxu0 0
        %2227 = vmatprep.subr.bf16.mxu0 0
        %2228 = vmatpush2.bf16.msra.mxu0 0
        %2229 = vmatprep.subr.bf16.mxu0 0
        %2230 = vmatpush2.bf16.msra.mxu0 0
        %2231 = vmatprep.mubr.bf16.mxu0 0
        %2232 = vmatmul.mubr.bf16.gmra.mxu0 %v2197
        %v2233 = vpop.f32.mrf.mxu0
        %v2234 = vadd.f32 0.0, %v2233
        %v2235 = vpop.f32.mrf.mxu0
        %v2236 = vpop.f32.mrf.mxu0
        %v2237 = vadd.f32 0.0, %v2236
        %v2238 = vpop.f32.mrf.mxu0
        %2239 = vdwg.mxu0
        %2242 = vrot.lane.b32.xlu0 %v2234, 96
        %v2243 = vpop.permute.xlu0 %2242
        %2244 = vrot.lane.b32.xlu0 %v2237, 96
        %v2245 = vpop.permute.xlu0 %2244
        %2248 = vst.msk [vmem:[#allocation3 + $0x10] sm:$0xff] %vm1728, %v2243
        %2249 = vst.msk [vmem:[#allocation3 + $0x18] sm:$0xff] %vm1728, %v2245
        %v2250 = vld [vmem:[#allocation3] sm:$0xff]
        %v2251 = vld [vmem:[#allocation3 + $0x8] sm:$0xff]
        %v2252 = vld [vmem:[#allocation3 + $0x10] sm:$0xff]
        %v2253 = vld [vmem:[#allocation3 + $0x18] sm:$0xff]
        %v2254 = vpack.c.bf16 %v2251, %v2250
        %v2255 = vpack.c.bf16 %v2253, %v2252
        %v2256 = vld [vmem:[%s700] sm:$0xf]
        %v2257 = vld [vmem:[%s700 + $0x4] sm:$0xf]
        %v2258 = vld [vmem:[%s700 + $0x8] sm:$0xf]
        %v2259 = vld [vmem:[%s700 + $0xc] sm:$0xf]
        %v2260 = vld [vmem:[%s700 + $0x10] sm:$0xf]
        %v2261 = vld [vmem:[%s700 + $0x14] sm:$0xf]
        %v2262 = vld [vmem:[%s700 + $0x18] sm:$0xf]
        %v2263 = vld [vmem:[%s700 + $0x1c] sm:$0xf]
        %v2264 = vld [vmem:[%s700 + $0x20] sm:$0xf]
        %v2265 = vld [vmem:[%s700 + $0x24] sm:$0xf]
        %v2266 = vld [vmem:[%s700 + $0x28] sm:$0xf]
        %v2267 = vld [vmem:[%s700 + $0x2c] sm:$0xf]
        %v2268 = vld [vmem:[%s700 + $0x30] sm:$0xf]
        %v2269 = vld [vmem:[%s700 + $0x34] sm:$0xf]
        %v2270 = vld [vmem:[%s700 + $0x38] sm:$0xf]
        %v2271 = vld [vmem:[%s700 + $0x3c] sm:$0xf]
        %v2272 = vld [vmem:[%s827] sm:$0x1]
        %v2274 = vlaneseq
        %v2275 = vshrl.u32 %v2274, 7
        %v2276 = vsub.s32 0, %v2275
        %v2277 = vrot.slane %v2272, %v2276
        %v2295 = vunpack.c.l.b16 %v2256
        %v2296 = vunpack.c.l.b16 %v2257
        %v2297 = vunpack.c.l.b16 %v2258
        %v2298 = vunpack.c.l.b16 %v2259
        %v2299 = vunpack.c.l.b16 %v2260
        %v2300 = vunpack.c.l.b16 %v2261
        %v2301 = vunpack.c.l.b16 %v2262
        %v2302 = vunpack.c.l.b16 %v2263
        %v2303 = vunpack.c.l.b16 %v2264
        %v2304 = vunpack.c.l.b16 %v2265
        %v2305 = vunpack.c.l.b16 %v2266
        %v2306 = vunpack.c.l.b16 %v2267
        %v2307 = vunpack.c.l.b16 %v2268
        %v2308 = vunpack.c.l.b16 %v2269
        %v2309 = vunpack.c.l.b16 %v2270
        %v2310 = vunpack.c.l.b16 %v2271
        %v2311 = vpack.c.b16 %v2296, %v2295
        %v2312 = vpack.c.b16 %v2298, %v2297
        %v2313 = vpack.c.b16 %v2300, %v2299
        %v2314 = vpack.c.b16 %v2302, %v2301
        %v2315 = vpack.c.b16 %v2304, %v2303
        %v2316 = vpack.c.b16 %v2306, %v2305
        %v2317 = vpack.c.b16 %v2308, %v2307
        %v2318 = vpack.c.b16 %v2310, %v2309
        %2327 = vmatprep.subr.bf16.mxu0 0
        %2328 = vmatpush1.bf16.msra.mxu0 %v2318
        %2329 = vmatprep.subr.bf16.mxu0 0
        %2330 = vmatpush1.bf16.msra.mxu0 %v2317
        %2331 = vmatprep.subr.bf16.mxu0 0
        %2332 = vmatpush1.bf16.msra.mxu0 %v2316
        %2333 = vmatprep.subr.bf16.mxu0 0
        %2334 = vmatpush1.bf16.msra.mxu0 %v2315
        %2335 = vmatprep.subr.bf16.mxu0 0
        %2336 = vmatpush1.bf16.msra.mxu0 %v2314
        %2337 = vmatprep.subr.bf16.mxu0 0
        %2338 = vmatpush1.bf16.msra.mxu0 %v2313
        %2339 = vmatprep.subr.bf16.mxu0 0
        %2340 = vmatpush1.bf16.msra.mxu0 %v2312
        %2341 = vmatprep.subr.bf16.mxu0 0
        %2342 = vmatpush1.bf16.msra.mxu0 %v2311
        %2343 = vmatprep.subr.bf16.mxu0 0
        %2344 = vmatpush2.bf16.msra.mxu0 0
        %2345 = vmatprep.subr.bf16.mxu0 0
        %2346 = vmatpush2.bf16.msra.mxu0 0
        %2347 = vmatprep.subr.bf16.mxu0 0
        %2348 = vmatpush2.bf16.msra.mxu0 0
        %2349 = vmatprep.subr.bf16.mxu0 0
        %2350 = vmatpush2.bf16.msra.mxu0 0
        %2351 = vmatprep.subr.bf16.mxu0 0
        %2352 = vmatpush2.bf16.msra.mxu0 0
        %2353 = vmatprep.subr.bf16.mxu0 0
        %2354 = vmatpush2.bf16.msra.mxu0 0
        %2355 = vmatprep.subr.bf16.mxu0 0
        %2356 = vmatpush2.bf16.msra.mxu0 0
        %2357 = vmatprep.subr.bf16.mxu0 0
        %2358 = vmatpush2.bf16.msra.mxu0 0
        %2359 = vmatprep.mubr.bf16.mxu0 0
        %2360 = vmatmul.mubr.bf16.gmra.mxu0 %v2254
        %v2361 = vpop.f32.mrf.mxu0
        %v2362 = vadd.f32 %v2277, %v2361
        %v2363 = vpop.f32.mrf.mxu0
        %v2364 = vpop.f32.mrf.mxu0
        %v2365 = vadd.f32 %v2277, %v2364
        %v2366 = vpop.f32.mrf.mxu0
        %2367 = vmatprep.mubr.bf16.mxu0 0
        %2368 = vmatmul.mubr.bf16.gmra.mxu0 %v2255
        %v2369 = vpop.f32.mrf.mxu0
        %v2370 = vadd.f32 %v2277, %v2369
        %v2371 = vpop.f32.mrf.mxu0
        %v2372 = vpop.f32.mrf.mxu0
        %v2373 = vadd.f32 %v2277, %v2372
        %v2374 = vpop.f32.mrf.mxu0
        %2375 = vdwg.mxu0
        %v2376 = vadd.f32 %v921, %v2362
        %v2377 = vadd.f32 %v922, %v2365
        %v2378 = vadd.f32 %v923, %v2370
        %v2379 = vadd.f32 %v924, %v2373
        %v2380 = vld [vmem:[%s708] sm:$0x1]
        %v2381 = vld [vmem:[%s716] sm:$0x1]
        %2382 = vadd.xlane.f32.xlu0 %v2376
        %v2383 = vpop.xlane.xlu0 %2382
        %2384 = vadd.xlane.f32.xlu0 %v2377
        %v2385 = vpop.xlane.xlu0 %2384
        %2386 = vadd.xlane.f32.xlu0 %v2378
        %v2387 = vpop.xlane.xlu0 %2386
        %2388 = vadd.xlane.f32.xlu0 %v2379
        %v2389 = vpop.xlane.xlu0 %2388
        %v2390 = vrcp.pop 128.0
        %v2391 = vmul.f32 %v2383, %v2390
        %v2392 = vmul.f32 %v2385, %v2390
        %v2393 = vmul.f32 %v2387, %v2390
        %v2394 = vmul.f32 %v2389, %v2390
        %v2395 = vsub.f32 %v2376, %v2391
        %v2396 = vsub.f32 %v2377, %v2392
        %v2397 = vsub.f32 %v2378, %v2393
        %v2398 = vsub.f32 %v2379, %v2394
        %v2399 = vmul.f32 %v2395, %v2395
        %v2400 = vmul.f32 %v2396, %v2396
        %v2401 = vmul.f32 %v2397, %v2397
        %v2402 = vmul.f32 %v2398, %v2398
        %2403 = vadd.xlane.f32.xlu0 %v2399
        %v2404 = vpop.xlane.xlu0 %2403
        %2405 = vadd.xlane.f32.xlu0 %v2400
        %v2406 = vpop.xlane.xlu0 %2405
        %2407 = vadd.xlane.f32.xlu0 %v2401
        %v2408 = vpop.xlane.xlu0 %2407
        %2409 = vadd.xlane.f32.xlu0 %v2402
        %v2410 = vpop.xlane.xlu0 %2409
        %v2411 = vmul.f32 %v2404, %v2390
        %v2412 = vmul.f32 %v2406, %v2390
        %v2413 = vmul.f32 %v2408, %v2390
        %v2414 = vmul.f32 %v2410, %v2390
        %v2415 = vadd.f32 %v2411, 1e-12
        %v2416 = vadd.f32 %v2412, 1e-12
        %v2417 = vadd.f32 %v2413, 1e-12
        %v2418 = vadd.f32 %v2414, 1e-12
        %v2419 = vrsqrt.pop %v2415
        %v2420 = vrsqrt.pop %v2416
        %v2421 = vrsqrt.pop %v2417
        %v2422 = vrsqrt.pop %v2418
        %v2423 = vmul.f32 %v2395, %v2419
        %v2424 = vmul.f32 %v2396, %v2420
        %v2425 = vmul.f32 %v2397, %v2421
        %v2426 = vmul.f32 %v2398, %v2422
        %v2428 = vlaneseq
        %v2429 = vshrl.u32 %v2428, 7
        %v2430 = vsub.s32 0, %v2429
        %v2431 = vrot.slane %v2380, %v2430
        %v2433 = vmul.f32 %v2423, %v2431
        %v2434 = vmul.f32 %v2424, %v2431
        %v2435 = vmul.f32 %v2425, %v2431
        %v2436 = vmul.f32 %v2426, %v2431
        %v2438 = vlaneseq
        %v2439 = vshrl.u32 %v2438, 7
        %v2440 = vsub.s32 0, %v2439
        %v2441 = vrot.slane %v2381, %v2440
        %v2443 = vadd.f32 %v2433, %v2441
        %v2444 = vadd.f32 %v2434, %v2441
        %v2445 = vadd.f32 %v2435, %v2441
        %v2446 = vadd.f32 %v2436, %v2441
        %v2447 = vpack.c.bf16 %v2444, %v2443
        %v2448 = vpack.c.bf16 %v2446, %v2445
        %v2449 = vld [vmem:[%s725] sm:$0xff]
        %v2450 = vld [vmem:[%s725 + $0x8] sm:$0xff]
        %v2451 = vld [vmem:[%s725 + $0x10] sm:$0xff]
        %v2452 = vld [vmem:[%s725 + $0x18] sm:$0xff]
        %v2453 = vld [vmem:[%s725 + $0x20] sm:$0xff]
        %v2454 = vld [vmem:[%s725 + $0x28] sm:$0xff]
        %v2455 = vld [vmem:[%s725 + $0x30] sm:$0xff]
        %v2456 = vld [vmem:[%s725 + $0x38] sm:$0xff]
        %v2457 = vld [vmem:[%s725 + $0x40] sm:$0xff]
        %v2458 = vld [vmem:[%s725 + $0x48] sm:$0xff]
        %v2459 = vld [vmem:[%s725 + $0x50] sm:$0xff]
        %v2460 = vld [vmem:[%s725 + $0x58] sm:$0xff]
        %v2461 = vld [vmem:[%s725 + $0x60] sm:$0xff]
        %v2462 = vld [vmem:[%s725 + $0x68] sm:$0xff]
        %v2463 = vld [vmem:[%s725 + $0x70] sm:$0xff]
        %v2464 = vld [vmem:[%s725 + $0x78] sm:$0xff]
        %v2465 = vld [vmem:[%s725 + $0x80] sm:$0xff]
        %v2466 = vld [vmem:[%s725 + $0x88] sm:$0xff]
        %v2467 = vld [vmem:[%s725 + $0x90] sm:$0xff]
        %v2468 = vld [vmem:[%s725 + $0x98] sm:$0xff]
        %v2469 = vld [vmem:[%s725 + $0xa0] sm:$0xff]
        %v2470 = vld [vmem:[%s725 + $0xa8] sm:$0xff]
        %v2471 = vld [vmem:[%s725 + $0xb0] sm:$0xff]
        %v2472 = vld [vmem:[%s725 + $0xb8] sm:$0xff]
        %v2473 = vld [vmem:[%s725 + $0xc0] sm:$0xff]
        %v2474 = vld [vmem:[%s725 + $0xc8] sm:$0xff]
        %v2475 = vld [vmem:[%s725 + $0xd0] sm:$0xff]
        %v2476 = vld [vmem:[%s725 + $0xd8] sm:$0xff]
        %v2477 = vld [vmem:[%s725 + $0xe0] sm:$0xff]
        %v2478 = vld [vmem:[%s725 + $0xe8] sm:$0xff]
        %v2479 = vld [vmem:[%s725 + $0xf0] sm:$0xff]
        %v2480 = vld [vmem:[%s725 + $0xf8] sm:$0xff]
        %v2481 = vld [vmem:[%s831] sm:$0xf]
        %v2483 = vlaneseq
        %v2484 = vshrl.u32 %v2483, 7
        %v2485 = vsub.s32 0, %v2484
        %v2486 = vrot.slane %v2481, %v2485
        %v2487 = vlaneseq
        %v2488 = vshrl.u32 %v2487, 7
        %v2489 = vsub.s32 1, %v2488
        %v2490 = vrot.slane %v2481, %v2489
        %v2491 = vlaneseq
        %v2492 = vshrl.u32 %v2491, 7
        %v2493 = vsub.s32 2, %v2492
        %v2494 = vrot.slane %v2481, %v2493
        %v2495 = vlaneseq
        %v2496 = vshrl.u32 %v2495, 7
        %v2497 = vsub.s32 3, %v2496
        %v2498 = vrot.slane %v2481, %v2497
        %v2535 = vunpack.c.l.b16 %v2449
        %v2536 = vunpack.c.h.b16 %v2449
        %v2537 = vunpack.c.l.b16 %v2450
        %v2538 = vunpack.c.h.b16 %v2450
        %v2539 = vunpack.c.l.b16 %v2451
        %v2540 = vunpack.c.h.b16 %v2451
        %v2541 = vunpack.c.l.b16 %v2452
        %v2542 = vunpack.c.h.b16 %v2452
        %v2543 = vunpack.c.l.b16 %v2453
        %v2544 = vunpack.c.h.b16 %v2453
        %v2545 = vunpack.c.l.b16 %v2454
        %v2546 = vunpack.c.h.b16 %v2454
        %v2547 = vunpack.c.l.b16 %v2455
        %v2548 = vunpack.c.h.b16 %v2455
        %v2549 = vunpack.c.l.b16 %v2456
        %v2550 = vunpack.c.h.b16 %v2456
        %v2551 = vunpack.c.l.b16 %v2457
        %v2552 = vunpack.c.h.b16 %v2457
        %v2553 = vunpack.c.l.b16 %v2458
        %v2554 = vunpack.c.h.b16 %v2458
        %v2555 = vunpack.c.l.b16 %v2459
        %v2556 = vunpack.c.h.b16 %v2459
        %v2557 = vunpack.c.l.b16 %v2460
        %v2558 = vunpack.c.h.b16 %v2460
        %v2559 = vunpack.c.l.b16 %v2461
        %v2560 = vunpack.c.h.b16 %v2461
        %v2561 = vunpack.c.l.b16 %v2462
        %v2562 = vunpack.c.h.b16 %v2462
        %v2563 = vunpack.c.l.b16 %v2463
        %v2564 = vunpack.c.h.b16 %v2463
        %v2565 = vunpack.c.l.b16 %v2464
        %v2566 = vunpack.c.h.b16 %v2464
        %v2567 = vunpack.c.l.b16 %v2465
        %v2568 = vunpack.c.h.b16 %v2465
        %v2569 = vunpack.c.l.b16 %v2466
        %v2570 = vunpack.c.h.b16 %v2466
        %v2571 = vunpack.c.l.b16 %v2467
        %v2572 = vunpack.c.h.b16 %v2467
        %v2573 = vunpack.c.l.b16 %v2468
        %v2574 = vunpack.c.h.b16 %v2468
        %v2575 = vunpack.c.l.b16 %v2469
        %v2576 = vunpack.c.h.b16 %v2469
        %v2577 = vunpack.c.l.b16 %v2470
        %v2578 = vunpack.c.h.b16 %v2470
        %v2579 = vunpack.c.l.b16 %v2471
        %v2580 = vunpack.c.h.b16 %v2471
        %v2581 = vunpack.c.l.b16 %v2472
        %v2582 = vunpack.c.h.b16 %v2472
        %v2583 = vunpack.c.l.b16 %v2473
        %v2584 = vunpack.c.h.b16 %v2473
        %v2585 = vunpack.c.l.b16 %v2474
        %v2586 = vunpack.c.h.b16 %v2474
        %v2587 = vunpack.c.l.b16 %v2475
        %v2588 = vunpack.c.h.b16 %v2475
        %v2589 = vunpack.c.l.b16 %v2476
        %v2590 = vunpack.c.h.b16 %v2476
        %v2591 = vunpack.c.l.b16 %v2477
        %v2592 = vunpack.c.h.b16 %v2477
        %v2593 = vunpack.c.l.b16 %v2478
        %v2594 = vunpack.c.h.b16 %v2478
        %v2595 = vunpack.c.l.b16 %v2479
        %v2596 = vunpack.c.h.b16 %v2479
        %v2597 = vunpack.c.l.b16 %v2480
        %v2598 = vunpack.c.h.b16 %v2480
        %v2599 = vpack.c.b16 %v2539, %v2535
        %v2600 = vpack.c.b16 %v2540, %v2536
        %v2601 = vpack.c.b16 %v2541, %v2537
        %v2602 = vpack.c.b16 %v2542, %v2538
        %v2603 = vpack.c.b16 %v2547, %v2543
        %v2604 = vpack.c.b16 %v2548, %v2544
        %v2605 = vpack.c.b16 %v2549, %v2545
        %v2606 = vpack.c.b16 %v2550, %v2546
        %v2607 = vpack.c.b16 %v2555, %v2551
        %v2608 = vpack.c.b16 %v2556, %v2552
        %v2609 = vpack.c.b16 %v2557, %v2553
        %v2610 = vpack.c.b16 %v2558, %v2554
        %v2611 = vpack.c.b16 %v2563, %v2559
        %v2612 = vpack.c.b16 %v2564, %v2560
        %v2613 = vpack.c.b16 %v2565, %v2561
        %v2614 = vpack.c.b16 %v2566, %v2562
        %v2615 = vpack.c.b16 %v2571, %v2567
        %v2616 = vpack.c.b16 %v2572, %v2568
        %v2617 = vpack.c.b16 %v2573, %v2569
        %v2618 = vpack.c.b16 %v2574, %v2570
        %v2619 = vpack.c.b16 %v2579, %v2575
        %v2620 = vpack.c.b16 %v2580, %v2576
        %v2621 = vpack.c.b16 %v2581, %v2577
        %v2622 = vpack.c.b16 %v2582, %v2578
        %v2623 = vpack.c.b16 %v2587, %v2583
        %v2624 = vpack.c.b16 %v2588, %v2584
        %v2625 = vpack.c.b16 %v2589, %v2585
        %v2626 = vpack.c.b16 %v2590, %v2586
        %v2627 = vpack.c.b16 %v2595, %v2591
        %v2628 = vpack.c.b16 %v2596, %v2592
        %v2629 = vpack.c.b16 %v2597, %v2593
        %v2630 = vpack.c.b16 %v2598, %v2594
        %2663 = vmatprep.subr.bf16.mxu0 %v2628
        %2664 = vmatpush1.bf16.msra.mxu0 %v2627
        %2665 = vmatprep.subr.bf16.mxu0 %v2624
        %2666 = vmatpush1.bf16.msra.mxu0 %v2623
        %2667 = vmatprep.subr.bf16.mxu0 %v2620
        %2668 = vmatpush1.bf16.msra.mxu0 %v2619
        %2669 = vmatprep.subr.bf16.mxu0 %v2616
        %2670 = vmatpush1.bf16.msra.mxu0 %v2615
        %2671 = vmatprep.subr.bf16.mxu0 %v2612
        %2672 = vmatpush1.bf16.msra.mxu0 %v2611
        %2673 = vmatprep.subr.bf16.mxu0 %v2608
        %2674 = vmatpush1.bf16.msra.mxu0 %v2607
        %2675 = vmatprep.subr.bf16.mxu0 %v2604
        %2676 = vmatpush1.bf16.msra.mxu0 %v2603
        %2677 = vmatprep.subr.bf16.mxu0 %v2600
        %2678 = vmatpush1.bf16.msra.mxu0 %v2599
        %2679 = vmatprep.subr.bf16.mxu0 0
        %2680 = vmatpush2.bf16.msra.mxu0 0
        %2681 = vmatprep.subr.bf16.mxu0 0
        %2682 = vmatpush2.bf16.msra.mxu0 0
        %2683 = vmatprep.subr.bf16.mxu0 0
        %2684 = vmatpush2.bf16.msra.mxu0 0
        %2685 = vmatprep.subr.bf16.mxu0 0
        %2686 = vmatpush2.bf16.msra.mxu0 0
        %2687 = vmatprep.subr.bf16.mxu0 0
        %2688 = vmatpush2.bf16.msra.mxu0 0
        %2689 = vmatprep.subr.bf16.mxu0 0
        %2690 = vmatpush2.bf16.msra.mxu0 0
        %2691 = vmatprep.subr.bf16.mxu0 0
        %2692 = vmatpush2.bf16.msra.mxu0 0
        %2693 = vmatprep.subr.bf16.mxu0 0
        %2694 = vmatpush2.bf16.msra.mxu0 0
        %2695 = vmatprep.mubr.bf16.mxu0 0
        %2696 = vmatmul.mubr.bf16.gmra.mxu0 %v2447
        %v2697 = vpop.f32.mrf.mxu0
        %v2698 = vadd.f32 %v2486, %v2697
        %v2699 = vpop.f32.mrf.mxu0
        %v2700 = vadd.f32 %v2490, %v2699
        %v2701 = vpop.f32.mrf.mxu0
        %v2702 = vadd.f32 %v2486, %v2701
        %v2703 = vpop.f32.mrf.mxu0
        %v2704 = vadd.f32 %v2490, %v2703
        %2705 = vmatprep.mubr.bf16.mxu0 0
        %2706 = vmatmul.mubr.bf16.gmra.mxu0 %v2448
        %v2707 = vpop.f32.mrf.mxu0
        %v2708 = vadd.f32 %v2486, %v2707
        %v2709 = vpop.f32.mrf.mxu0
        %v2710 = vadd.f32 %v2490, %v2709
        %v2711 = vpop.f32.mrf.mxu0
        %v2712 = vadd.f32 %v2486, %v2711
        %v2713 = vpop.f32.mrf.mxu0
        %v2714 = vadd.f32 %v2490, %v2713
        %2715 = vdwg.mxu0
        %2716 = vmatprep.subr.bf16.mxu0 %v2630
        %2717 = vmatpush1.bf16.msra.mxu0 %v2629
        %2718 = vmatprep.subr.bf16.mxu0 %v2626
        %2719 = vmatpush1.bf16.msra.mxu0 %v2625
        %2720 = vmatprep.subr.bf16.mxu0 %v2622
        %2721 = vmatpush1.bf16.msra.mxu0 %v2621
        %2722 = vmatprep.subr.bf16.mxu0 %v2618
        %2723 = vmatpush1.bf16.msra.mxu0 %v2617
        %2724 = vmatprep.subr.bf16.mxu0 %v2614
        %2725 = vmatpush1.bf16.msra.mxu0 %v2613
        %2726 = vmatprep.subr.bf16.mxu0 %v2610
        %2727 = vmatpush1.bf16.msra.mxu0 %v2609
        %2728 = vmatprep.subr.bf16.mxu0 %v2606
        %2729 = vmatpush1.bf16.msra.mxu0 %v2605
        %2730 = vmatprep.subr.bf16.mxu0 %v2602
        %2731 = vmatpush1.bf16.msra.mxu0 %v2601
        %2732 = vmatprep.subr.bf16.mxu0 0
        %2733 = vmatpush2.bf16.msra.mxu0 0
        %2734 = vmatprep.subr.bf16.mxu0 0
        %2735 = vmatpush2.bf16.msra.mxu0 0
        %2736 = vmatprep.subr.bf16.mxu0 0
        %2737 = vmatpush2.bf16.msra.mxu0 0
        %2738 = vmatprep.subr.bf16.mxu0 0
        %2739 = vmatpush2.bf16.msra.mxu0 0
        %2740 = vmatprep.subr.bf16.mxu0 0
        %2741 = vmatpush2.bf16.msra.mxu0 0
        %2742 = vmatprep.subr.bf16.mxu0 0
        %2743 = vmatpush2.bf16.msra.mxu0 0
        %2744 = vmatprep.subr.bf16.mxu0 0
        %2745 = vmatpush2.bf16.msra.mxu0 0
        %2746 = vmatprep.subr.bf16.mxu0 0
        %2747 = vmatpush2.bf16.msra.mxu0 0
        %2748 = vmatprep.mubr.bf16.mxu0 0
        %2749 = vmatmul.mubr.bf16.gmra.mxu0 %v2447
        %v2750 = vpop.f32.mrf.mxu0
        %v2751 = vadd.f32 %v2494, %v2750
        %v2752 = vpop.f32.mrf.mxu0
        %v2753 = vadd.f32 %v2498, %v2752
        %v2754 = vpop.f32.mrf.mxu0
        %v2755 = vadd.f32 %v2494, %v2754
        %v2756 = vpop.f32.mrf.mxu0
        %v2757 = vadd.f32 %v2498, %v2756
        %2758 = vmatprep.mubr.bf16.mxu0 0
        %2759 = vmatmul.mubr.bf16.gmra.mxu0 %v2448
        %v2760 = vpop.f32.mrf.mxu0
        %v2761 = vadd.f32 %v2494, %v2760
        %v2762 = vpop.f32.mrf.mxu0
        %v2763 = vadd.f32 %v2498, %v2762
        %v2764 = vpop.f32.mrf.mxu0
        %v2765 = vadd.f32 %v2494, %v2764
        %v2766 = vpop.f32.mrf.mxu0
        %v2767 = vadd.f32 %v2498, %v2766
        %2768 = vdwg.mxu0
        %v2769 = vmul.f32 %v2698, 0.5
        %v2770 = vmul.f32 %v2700, 0.5
        %v2771 = vmul.f32 %v2751, 0.5
        %v2772 = vmul.f32 %v2753, 0.5
        %v2773 = vmul.f32 %v2702, 0.5
        %v2774 = vmul.f32 %v2704, 0.5
        %v2775 = vmul.f32 %v2755, 0.5
        %v2776 = vmul.f32 %v2757, 0.5
        %v2777 = vmul.f32 %v2708, 0.5
        %v2778 = vmul.f32 %v2710, 0.5
        %v2779 = vmul.f32 %v2761, 0.5
        %v2780 = vmul.f32 %v2763, 0.5
        %v2781 = vmul.f32 %v2712, 0.5
        %v2782 = vmul.f32 %v2714, 0.5
        %v2783 = vmul.f32 %v2765, 0.5
        %v2784 = vmul.f32 %v2767, 0.5
        %v2785 = vmul.f32 %v2698, 0.044715
        %v2786 = vmul.f32 %v2700, 0.044715
        %v2787 = vmul.f32 %v2751, 0.044715
        %v2788 = vmul.f32 %v2753, 0.044715
        %v2789 = vmul.f32 %v2702, 0.044715
        %v2790 = vmul.f32 %v2704, 0.044715
        %v2791 = vmul.f32 %v2755, 0.044715
        %v2792 = vmul.f32 %v2757, 0.044715
        %v2793 = vmul.f32 %v2708, 0.044715
        %v2794 = vmul.f32 %v2710, 0.044715
        %v2795 = vmul.f32 %v2761, 0.044715
        %v2796 = vmul.f32 %v2763, 0.044715
        %v2797 = vmul.f32 %v2712, 0.044715
        %v2798 = vmul.f32 %v2714, 0.044715
        %v2799 = vmul.f32 %v2765, 0.044715
        %v2800 = vmul.f32 %v2767, 0.044715
        %v2801 = vmul.f32 %v2785, %v2698
        %v2802 = vmul.f32 %v2786, %v2700
        %v2803 = vmul.f32 %v2787, %v2751
        %v2804 = vmul.f32 %v2788, %v2753
        %v2805 = vmul.f32 %v2789, %v2702
        %v2806 = vmul.f32 %v2790, %v2704
        %v2807 = vmul.f32 %v2791, %v2755
        %v2808 = vmul.f32 %v2792, %v2757
        %v2809 = vmul.f32 %v2793, %v2708
        %v2810 = vmul.f32 %v2794, %v2710
        %v2811 = vmul.f32 %v2795, %v2761
        %v2812 = vmul.f32 %v2796, %v2763
        %v2813 = vmul.f32 %v2797, %v2712
        %v2814 = vmul.f32 %v2798, %v2714
        %v2815 = vmul.f32 %v2799, %v2765
        %v2816 = vmul.f32 %v2800, %v2767
        %v2817 = vmul.f32 %v2801, %v2698
        %v2818 = vmul.f32 %v2802, %v2700
        %v2819 = vmul.f32 %v2803, %v2751
        %v2820 = vmul.f32 %v2804, %v2753
        %v2821 = vmul.f32 %v2805, %v2702
        %v2822 = vmul.f32 %v2806, %v2704
        %v2823 = vmul.f32 %v2807, %v2755
        %v2824 = vmul.f32 %v2808, %v2757
        %v2825 = vmul.f32 %v2809, %v2708
        %v2826 = vmul.f32 %v2810, %v2710
        %v2827 = vmul.f32 %v2811, %v2761
        %v2828 = vmul.f32 %v2812, %v2763
        %v2829 = vmul.f32 %v2813, %v2712
        %v2830 = vmul.f32 %v2814, %v2714
        %v2831 = vmul.f32 %v2815, %v2765
        %v2832 = vmul.f32 %v2816, %v2767
        %v2833 = vadd.f32 %v2698, %v2817
        %v2834 = vadd.f32 %v2700, %v2818
        %v2835 = vadd.f32 %v2751, %v2819
        %v2836 = vadd.f32 %v2753, %v2820
        %v2837 = vadd.f32 %v2702, %v2821
        %v2838 = vadd.f32 %v2704, %v2822
        %v2839 = vadd.f32 %v2755, %v2823
        %v2840 = vadd.f32 %v2757, %v2824
        %v2841 = vadd.f32 %v2708, %v2825
        %v2842 = vadd.f32 %v2710, %v2826
        %v2843 = vadd.f32 %v2761, %v2827
        %v2844 = vadd.f32 %v2763, %v2828
        %v2845 = vadd.f32 %v2712, %v2829
        %v2846 = vadd.f32 %v2714, %v2830
        %v2847 = vadd.f32 %v2765, %v2831
        %v2848 = vadd.f32 %v2767, %v2832
        %v2849 = vmul.f32 %v2833, 0.7978846
        %v2850 = vmul.f32 %v2834, 0.7978846
        %v2851 = vmul.f32 %v2835, 0.7978846
        %v2852 = vmul.f32 %v2836, 0.7978846
        %v2853 = vmul.f32 %v2837, 0.7978846
        %v2854 = vmul.f32 %v2838, 0.7978846
        %v2855 = vmul.f32 %v2839, 0.7978846
        %v2856 = vmul.f32 %v2840, 0.7978846
        %v2857 = vmul.f32 %v2841, 0.7978846
        %v2858 = vmul.f32 %v2842, 0.7978846
        %v2859 = vmul.f32 %v2843, 0.7978846
        %v2860 = vmul.f32 %v2844, 0.7978846
        %v2861 = vmul.f32 %v2845, 0.7978846
        %v2862 = vmul.f32 %v2846, 0.7978846
        %v2863 = vmul.f32 %v2847, 0.7978846
        %v2864 = vmul.f32 %v2848, 0.7978846
        %v2865 = vtanh.pop %v2849
        %v2866 = vtanh.pop %v2850
        %v2867 = vtanh.pop %v2851
        %v2868 = vtanh.pop %v2852
        %v2869 = vtanh.pop %v2853
        %v2870 = vtanh.pop %v2854
        %v2871 = vtanh.pop %v2855
        %v2872 = vtanh.pop %v2856
        %v2873 = vtanh.pop %v2857
        %v2874 = vtanh.pop %v2858
        %v2875 = vtanh.pop %v2859
        %v2876 = vtanh.pop %v2860
        %v2877 = vtanh.pop %v2861
        %v2878 = vtanh.pop %v2862
        %v2879 = vtanh.pop %v2863
        %v2880 = vtanh.pop %v2864
        %v2881 = vadd.f32 %v2865, 1.0
        %v2882 = vadd.f32 %v2866, 1.0
        %v2883 = vadd.f32 %v2867, 1.0
        %v2884 = vadd.f32 %v2868, 1.0
        %v2885 = vadd.f32 %v2869, 1.0
        %v2886 = vadd.f32 %v2870, 1.0
        %v2887 = vadd.f32 %v2871, 1.0
        %v2888 = vadd.f32 %v2872, 1.0
        %v2889 = vadd.f32 %v2873, 1.0
        %v2890 = vadd.f32 %v2874, 1.0
        %v2891 = vadd.f32 %v2875, 1.0
        %v2892 = vadd.f32 %v2876, 1.0
        %v2893 = vadd.f32 %v2877, 1.0
        %v2894 = vadd.f32 %v2878, 1.0
        %v2895 = vadd.f32 %v2879, 1.0
        %v2896 = vadd.f32 %v2880, 1.0
        %v2897 = vmul.f32 %v2769, %v2881
        %v2898 = vmul.f32 %v2770, %v2882
        %v2899 = vmul.f32 %v2771, %v2883
        %v2900 = vmul.f32 %v2772, %v2884
        %v2901 = vmul.f32 %v2773, %v2885
        %v2902 = vmul.f32 %v2774, %v2886
        %v2903 = vmul.f32 %v2775, %v2887
        %v2904 = vmul.f32 %v2776, %v2888
        %v2905 = vmul.f32 %v2777, %v2889
        %v2906 = vmul.f32 %v2778, %v2890
        %v2907 = vmul.f32 %v2779, %v2891
        %v2908 = vmul.f32 %v2780, %v2892
        %v2909 = vmul.f32 %v2781, %v2893
        %v2910 = vmul.f32 %v2782, %v2894
        %v2911 = vmul.f32 %v2783, %v2895
        %v2912 = vmul.f32 %v2784, %v2896
        %v2913 = vpack.c.bf16 %v2901, %v2897
        %v2914 = vpack.c.bf16 %v2902, %v2898
        %v2915 = vpack.c.bf16 %v2903, %v2899
        %v2916 = vpack.c.bf16 %v2904, %v2900
        %v2917 = vpack.c.bf16 %v2909, %v2905
        %v2918 = vpack.c.bf16 %v2910, %v2906
        %v2919 = vpack.c.bf16 %v2911, %v2907
        %v2920 = vpack.c.bf16 %v2912, %v2908
        %v2921 = vld [vmem:[%s734] sm:$0xf]
        %v2922 = vld [vmem:[%s734 + $0x4] sm:$0xf]
        %v2923 = vld [vmem:[%s734 + $0x8] sm:$0xf]
        %v2924 = vld [vmem:[%s734 + $0xc] sm:$0xf]
        %v2925 = vld [vmem:[%s734 + $0x10] sm:$0xf]
        %v2926 = vld [vmem:[%s734 + $0x14] sm:$0xf]
        %v2927 = vld [vmem:[%s734 + $0x18] sm:$0xf]
        %v2928 = vld [vmem:[%s734 + $0x1c] sm:$0xf]
        %v2929 = vld [vmem:[%s734 + $0x20] sm:$0xf]
        %v2930 = vld [vmem:[%s734 + $0x24] sm:$0xf]
        %v2931 = vld [vmem:[%s734 + $0x28] sm:$0xf]
        %v2932 = vld [vmem:[%s734 + $0x2c] sm:$0xf]
        %v2933 = vld [vmem:[%s734 + $0x30] sm:$0xf]
        %v2934 = vld [vmem:[%s734 + $0x34] sm:$0xf]
        %v2935 = vld [vmem:[%s734 + $0x38] sm:$0xf]
        %v2936 = vld [vmem:[%s734 + $0x3c] sm:$0xf]
        %v2937 = vld [vmem:[%s734 + $0x40] sm:$0xf]
        %v2938 = vld [vmem:[%s734 + $0x44] sm:$0xf]
        %v2939 = vld [vmem:[%s734 + $0x48] sm:$0xf]
        %v2940 = vld [vmem:[%s734 + $0x4c] sm:$0xf]
        %v2941 = vld [vmem:[%s734 + $0x50] sm:$0xf]
        %v2942 = vld [vmem:[%s734 + $0x54] sm:$0xf]
        %v2943 = vld [vmem:[%s734 + $0x58] sm:$0xf]
        %v2944 = vld [vmem:[%s734 + $0x5c] sm:$0xf]
        %v2945 = vld [vmem:[%s734 + $0x60] sm:$0xf]
        %v2946 = vld [vmem:[%s734 + $0x64] sm:$0xf]
        %v2947 = vld [vmem:[%s734 + $0x68] sm:$0xf]
        %v2948 = vld [vmem:[%s734 + $0x6c] sm:$0xf]
        %v2949 = vld [vmem:[%s734 + $0x70] sm:$0xf]
        %v2950 = vld [vmem:[%s734 + $0x74] sm:$0xf]
        %v2951 = vld [vmem:[%s734 + $0x78] sm:$0xf]
        %v2952 = vld [vmem:[%s734 + $0x7c] sm:$0xf]
        %v2953 = vld [vmem:[%s734 + $0x80] sm:$0xf]
        %v2954 = vld [vmem:[%s734 + $0x84] sm:$0xf]
        %v2955 = vld [vmem:[%s734 + $0x88] sm:$0xf]
        %v2956 = vld [vmem:[%s734 + $0x8c] sm:$0xf]
        %v2957 = vld [vmem:[%s734 + $0x90] sm:$0xf]
        %v2958 = vld [vmem:[%s734 + $0x94] sm:$0xf]
        %v2959 = vld [vmem:[%s734 + $0x98] sm:$0xf]
        %v2960 = vld [vmem:[%s734 + $0x9c] sm:$0xf]
        %v2961 = vld [vmem:[%s734 + $0xa0] sm:$0xf]
        %v2962 = vld [vmem:[%s734 + $0xa4] sm:$0xf]
        %v2963 = vld [vmem:[%s734 + $0xa8] sm:$0xf]
        %v2964 = vld [vmem:[%s734 + $0xac] sm:$0xf]
        %v2965 = vld [vmem:[%s734 + $0xb0] sm:$0xf]
        %v2966 = vld [vmem:[%s734 + $0xb4] sm:$0xf]
        %v2967 = vld [vmem:[%s734 + $0xb8] sm:$0xf]
        %v2968 = vld [vmem:[%s734 + $0xbc] sm:$0xf]
        %v2969 = vld [vmem:[%s734 + $0xc0] sm:$0xf]
        %v2970 = vld [vmem:[%s734 + $0xc4] sm:$0xf]
        %v2971 = vld [vmem:[%s734 + $0xc8] sm:$0xf]
        %v2972 = vld [vmem:[%s734 + $0xcc] sm:$0xf]
        %v2973 = vld [vmem:[%s734 + $0xd0] sm:$0xf]
        %v2974 = vld [vmem:[%s734 + $0xd4] sm:$0xf]
        %v2975 = vld [vmem:[%s734 + $0xd8] sm:$0xf]
        %v2976 = vld [vmem:[%s734 + $0xdc] sm:$0xf]
        %v2977 = vld [vmem:[%s734 + $0xe0] sm:$0xf]
        %v2978 = vld [vmem:[%s734 + $0xe4] sm:$0xf]
        %v2979 = vld [vmem:[%s734 + $0xe8] sm:$0xf]
        %v2980 = vld [vmem:[%s734 + $0xec] sm:$0xf]
        %v2981 = vld [vmem:[%s734 + $0xf0] sm:$0xf]
        %v2982 = vld [vmem:[%s734 + $0xf4] sm:$0xf]
        %v2983 = vld [vmem:[%s734 + $0xf8] sm:$0xf]
        %v2984 = vld [vmem:[%s734 + $0xfc] sm:$0xf]
        %v2985 = vld [vmem:[%s834] sm:$0x1]
        %v2987 = vlaneseq
        %v2988 = vshrl.u32 %v2987, 7
        %v2989 = vsub.s32 0, %v2988
        %v2990 = vrot.slane %v2985, %v2989
        %v3056 = vunpack.c.l.b16 %v2921
        %v3057 = vunpack.c.l.b16 %v2922
        %v3058 = vunpack.c.l.b16 %v2923
        %v3059 = vunpack.c.l.b16 %v2924
        %v3060 = vunpack.c.l.b16 %v2925
        %v3061 = vunpack.c.l.b16 %v2926
        %v3062 = vunpack.c.l.b16 %v2927
        %v3063 = vunpack.c.l.b16 %v2928
        %v3064 = vunpack.c.l.b16 %v2929
        %v3065 = vunpack.c.l.b16 %v2930
        %v3066 = vunpack.c.l.b16 %v2931
        %v3067 = vunpack.c.l.b16 %v2932
        %v3068 = vunpack.c.l.b16 %v2933
        %v3069 = vunpack.c.l.b16 %v2934
        %v3070 = vunpack.c.l.b16 %v2935
        %v3071 = vunpack.c.l.b16 %v2936
        %v3072 = vunpack.c.l.b16 %v2937
        %v3073 = vunpack.c.l.b16 %v2938
        %v3074 = vunpack.c.l.b16 %v2939
        %v3075 = vunpack.c.l.b16 %v2940
        %v3076 = vunpack.c.l.b16 %v2941
        %v3077 = vunpack.c.l.b16 %v2942
        %v3078 = vunpack.c.l.b16 %v2943
        %v3079 = vunpack.c.l.b16 %v2944
        %v3080 = vunpack.c.l.b16 %v2945
        %v3081 = vunpack.c.l.b16 %v2946
        %v3082 = vunpack.c.l.b16 %v2947
        %v3083 = vunpack.c.l.b16 %v2948
        %v3084 = vunpack.c.l.b16 %v2949
        %v3085 = vunpack.c.l.b16 %v2950
        %v3086 = vunpack.c.l.b16 %v2951
        %v3087 = vunpack.c.l.b16 %v2952
        %v3088 = vunpack.c.l.b16 %v2953
        %v3089 = vunpack.c.l.b16 %v2954
        %v3090 = vunpack.c.l.b16 %v2955
        %v3091 = vunpack.c.l.b16 %v2956
        %v3092 = vunpack.c.l.b16 %v2957
        %v3093 = vunpack.c.l.b16 %v2958
        %v3094 = vunpack.c.l.b16 %v2959
        %v3095 = vunpack.c.l.b16 %v2960
        %v3096 = vunpack.c.l.b16 %v2961
        %v3097 = vunpack.c.l.b16 %v2962
        %v3098 = vunpack.c.l.b16 %v2963
        %v3099 = vunpack.c.l.b16 %v2964
        %v3100 = vunpack.c.l.b16 %v2965
        %v3101 = vunpack.c.l.b16 %v2966
        %v3102 = vunpack.c.l.b16 %v2967
        %v3103 = vunpack.c.l.b16 %v2968
        %v3104 = vunpack.c.l.b16 %v2969
        %v3105 = vunpack.c.l.b16 %v2970
        %v3106 = vunpack.c.l.b16 %v2971
        %v3107 = vunpack.c.l.b16 %v2972
        %v3108 = vunpack.c.l.b16 %v2973
        %v3109 = vunpack.c.l.b16 %v2974
        %v3110 = vunpack.c.l.b16 %v2975
        %v3111 = vunpack.c.l.b16 %v2976
        %v3112 = vunpack.c.l.b16 %v2977
        %v3113 = vunpack.c.l.b16 %v2978
        %v3114 = vunpack.c.l.b16 %v2979
        %v3115 = vunpack.c.l.b16 %v2980
        %v3116 = vunpack.c.l.b16 %v2981
        %v3117 = vunpack.c.l.b16 %v2982
        %v3118 = vunpack.c.l.b16 %v2983
        %v3119 = vunpack.c.l.b16 %v2984
        %v3120 = vpack.c.b16 %v3057, %v3056
        %v3121 = vpack.c.b16 %v3059, %v3058
        %v3122 = vpack.c.b16 %v3061, %v3060
        %v3123 = vpack.c.b16 %v3063, %v3062
        %v3124 = vpack.c.b16 %v3065, %v3064
        %v3125 = vpack.c.b16 %v3067, %v3066
        %v3126 = vpack.c.b16 %v3069, %v3068
        %v3127 = vpack.c.b16 %v3071, %v3070
        %v3128 = vpack.c.b16 %v3073, %v3072
        %v3129 = vpack.c.b16 %v3075, %v3074
        %v3130 = vpack.c.b16 %v3077, %v3076
        %v3131 = vpack.c.b16 %v3079, %v3078
        %v3132 = vpack.c.b16 %v3081, %v3080
        %v3133 = vpack.c.b16 %v3083, %v3082
        %v3134 = vpack.c.b16 %v3085, %v3084
        %v3135 = vpack.c.b16 %v3087, %v3086
        %v3136 = vpack.c.b16 %v3089, %v3088
        %v3137 = vpack.c.b16 %v3091, %v3090
        %v3138 = vpack.c.b16 %v3093, %v3092
        %v3139 = vpack.c.b16 %v3095, %v3094
        %v3140 = vpack.c.b16 %v3097, %v3096
        %v3141 = vpack.c.b16 %v3099, %v3098
        %v3142 = vpack.c.b16 %v3101, %v3100
        %v3143 = vpack.c.b16 %v3103, %v3102
        %v3144 = vpack.c.b16 %v3105, %v3104
        %v3145 = vpack.c.b16 %v3107, %v3106
        %v3146 = vpack.c.b16 %v3109, %v3108
        %v3147 = vpack.c.b16 %v3111, %v3110
        %v3148 = vpack.c.b16 %v3113, %v3112
        %v3149 = vpack.c.b16 %v3115, %v3114
        %v3150 = vpack.c.b16 %v3117, %v3116
        %v3151 = vpack.c.b16 %v3119, %v3118
        %3184 = vmatprep.subr.bf16.mxu0 0
        %3185 = vmatpush1.bf16.msra.mxu0 %v3127
        %3186 = vmatprep.subr.bf16.mxu0 0
        %3187 = vmatpush1.bf16.msra.mxu0 %v3126
        %3188 = vmatprep.subr.bf16.mxu0 0
        %3189 = vmatpush1.bf16.msra.mxu0 %v3125
        %3190 = vmatprep.subr.bf16.mxu0 0
        %3191 = vmatpush1.bf16.msra.mxu0 %v3124
        %3192 = vmatprep.subr.bf16.mxu0 0
        %3193 = vmatpush1.bf16.msra.mxu0 %v3123
        %3194 = vmatprep.subr.bf16.mxu0 0
        %3195 = vmatpush1.bf16.msra.mxu0 %v3122
        %3196 = vmatprep.subr.bf16.mxu0 0
        %3197 = vmatpush1.bf16.msra.mxu0 %v3121
        %3198 = vmatprep.subr.bf16.mxu0 0
        %3199 = vmatpush1.bf16.msra.mxu0 %v3120
        %3200 = vmatprep.subr.bf16.mxu0 0
        %3201 = vmatpush2.bf16.msra.mxu0 %v3135
        %3202 = vmatprep.subr.bf16.mxu0 0
        %3203 = vmatpush2.bf16.msra.mxu0 %v3134
        %3204 = vmatprep.subr.bf16.mxu0 0
        %3205 = vmatpush2.bf16.msra.mxu0 %v3133
        %3206 = vmatprep.subr.bf16.mxu0 0
        %3207 = vmatpush2.bf16.msra.mxu0 %v3132
        %3208 = vmatprep.subr.bf16.mxu0 0
        %3209 = vmatpush2.bf16.msra.mxu0 %v3131
        %3210 = vmatprep.subr.bf16.mxu0 0
        %3211 = vmatpush2.bf16.msra.mxu0 %v3130
        %3212 = vmatprep.subr.bf16.mxu0 0
        %3213 = vmatpush2.bf16.msra.mxu0 %v3129
        %3214 = vmatprep.subr.bf16.mxu0 0
        %3215 = vmatpush2.bf16.msra.mxu0 %v3128
        %3216 = vmatprep.mubr.bf16.mxu0 %v2914
        %3217 = vmatmul.mubr.bf16.gmra.mxu0 %v2913
        %v3218 = vpop.f32.mrf.mxu0
        %v3219 = vadd.f32 %v2990, %v3218
        %v3220 = vpop.f32.mrf.mxu0
        %v3221 = vpop.f32.mrf.mxu0
        %v3222 = vadd.f32 %v2990, %v3221
        %v3223 = vpop.f32.mrf.mxu0
        %3224 = vmatprep.mubr.bf16.mxu0 %v2918
        %3225 = vmatmul.mubr.bf16.gmra.mxu0 %v2917
        %v3226 = vpop.f32.mrf.mxu0
        %v3227 = vadd.f32 %v2990, %v3226
        %v3228 = vpop.f32.mrf.mxu0
        %v3229 = vpop.f32.mrf.mxu0
        %v3230 = vadd.f32 %v2990, %v3229
        %v3231 = vpop.f32.mrf.mxu0
        %3232 = vdwg.mxu0
        %3233 = vmatprep.subr.bf16.mxu0 0
        %3234 = vmatpush1.bf16.msra.mxu0 %v3143
        %3235 = vmatprep.subr.bf16.mxu0 0
        %3236 = vmatpush1.bf16.msra.mxu0 %v3142
        %3237 = vmatprep.subr.bf16.mxu0 0
        %3238 = vmatpush1.bf16.msra.mxu0 %v3141
        %3239 = vmatprep.subr.bf16.mxu0 0
        %3240 = vmatpush1.bf16.msra.mxu0 %v3140
        %3241 = vmatprep.subr.bf16.mxu0 0
        %3242 = vmatpush1.bf16.msra.mxu0 %v3139
        %3243 = vmatprep.subr.bf16.mxu0 0
        %3244 = vmatpush1.bf16.msra.mxu0 %v3138
        %3245 = vmatprep.subr.bf16.mxu0 0
        %3246 = vmatpush1.bf16.msra.mxu0 %v3137
        %3247 = vmatprep.subr.bf16.mxu0 0
        %3248 = vmatpush1.bf16.msra.mxu0 %v3136
        %3249 = vmatprep.subr.bf16.mxu0 0
        %3250 = vmatpush2.bf16.msra.mxu0 %v3151
        %3251 = vmatprep.subr.bf16.mxu0 0
        %3252 = vmatpush2.bf16.msra.mxu0 %v3150
        %3253 = vmatprep.subr.bf16.mxu0 0
        %3254 = vmatpush2.bf16.msra.mxu0 %v3149
        %3255 = vmatprep.subr.bf16.mxu0 0
        %3256 = vmatpush2.bf16.msra.mxu0 %v3148
        %3257 = vmatprep.subr.bf16.mxu0 0
        %3258 = vmatpush2.bf16.msra.mxu0 %v3147
        %3259 = vmatprep.subr.bf16.mxu0 0
        %3260 = vmatpush2.bf16.msra.mxu0 %v3146
        %3261 = vmatprep.subr.bf16.mxu0 0
        %3262 = vmatpush2.bf16.msra.mxu0 %v3145
        %3263 = vmatprep.subr.bf16.mxu0 0
        %3264 = vmatpush2.bf16.msra.mxu0 %v3144
        %3265 = vmatprep.mubr.bf16.mxu0 %v2916
        %3266 = vmatmul.mubr.bf16.gmra.mxu0 %v2915
        %v3267 = vpop.f32.mrf.mxu0
        %v3268 = vadd.f32 %v3219, %v3267
        %v3269 = vpop.f32.mrf.mxu0
        %v3270 = vpop.f32.mrf.mxu0
        %v3271 = vadd.f32 %v3222, %v3270
        %v3272 = vpop.f32.mrf.mxu0
        %3273 = vmatprep.mubr.bf16.mxu0 %v2920
        %3274 = vmatmul.mubr.bf16.gmra.mxu0 %v2919
        %v3275 = vpop.f32.mrf.mxu0
        %v3276 = vadd.f32 %v3227, %v3275
        %v3277 = vpop.f32.mrf.mxu0
        %v3278 = vpop.f32.mrf.mxu0
        %v3279 = vadd.f32 %v3230, %v3278
        %v3280 = vpop.f32.mrf.mxu0
        %3281 = vdwg.mxu0
        %v3282 = vadd.f32 %v2443, %v3268
        %v3283 = vadd.f32 %v2444, %v3271
        %v3284 = vadd.f32 %v2445, %v3276
        %v3285 = vadd.f32 %v2446, %v3279
        %v3286 = vld [vmem:[%s837] sm:$0x1]
        %v3287 = vld [vmem:[%s840] sm:$0x1]
        %3288 = vadd.xlane.f32.xlu0 %v3282
        %v3289 = vpop.xlane.xlu0 %3288
        %3290 = vadd.xlane.f32.xlu0 %v3283
        %v3291 = vpop.xlane.xlu0 %3290
        %3292 = vadd.xlane.f32.xlu0 %v3284
        %v3293 = vpop.xlane.xlu0 %3292
        %3294 = vadd.xlane.f32.xlu0 %v3285
        %v3295 = vpop.xlane.xlu0 %3294
        %v3296 = vmul.f32 %v3289, %v2390
        %v3297 = vmul.f32 %v3291, %v2390
        %v3298 = vmul.f32 %v3293, %v2390
        %v3299 = vmul.f32 %v3295, %v2390
        %v3300 = vsub.f32 %v3282, %v3296
        %v3301 = vsub.f32 %v3283, %v3297
        %v3302 = vsub.f32 %v3284, %v3298
        %v3303 = vsub.f32 %v3285, %v3299
        %v3304 = vmul.f32 %v3300, %v3300
        %v3305 = vmul.f32 %v3301, %v3301
        %v3306 = vmul.f32 %v3302, %v3302
        %v3307 = vmul.f32 %v3303, %v3303
        %3308 = vadd.xlane.f32.xlu0 %v3304
        %v3309 = vpop.xlane.xlu0 %3308
        %3310 = vadd.xlane.f32.xlu0 %v3305
        %v3311 = vpop.xlane.xlu0 %3310
        %3312 = vadd.xlane.f32.xlu0 %v3306
        %v3313 = vpop.xlane.xlu0 %3312
        %3314 = vadd.xlane.f32.xlu0 %v3307
        %v3315 = vpop.xlane.xlu0 %3314
        %v3316 = vmul.f32 %v3309, %v2390
        %v3317 = vmul.f32 %v3311, %v2390
        %v3318 = vmul.f32 %v3313, %v2390
        %v3319 = vmul.f32 %v3315, %v2390
        %v3320 = vadd.f32 %v3316, 1e-12
        %v3321 = vadd.f32 %v3317, 1e-12
        %v3322 = vadd.f32 %v3318, 1e-12
        %v3323 = vadd.f32 %v3319, 1e-12
        %v3324 = vrsqrt.pop %v3320
        %v3325 = vrsqrt.pop %v3321
        %v3326 = vrsqrt.pop %v3322
        %v3327 = vrsqrt.pop %v3323
        %v3328 = vmul.f32 %v3300, %v3324
        %v3329 = vmul.f32 %v3301, %v3325
        %v3330 = vmul.f32 %v3302, %v3326
        %v3331 = vmul.f32 %v3303, %v3327
        %v3333 = vlaneseq
        %v3334 = vshrl.u32 %v3333, 7
        %v3335 = vsub.s32 0, %v3334
        %v3336 = vrot.slane %v3286, %v3335
        %v3338 = vmul.f32 %v3328, %v3336
        %v3339 = vmul.f32 %v3329, %v3336
        %v3340 = vmul.f32 %v3330, %v3336
        %v3341 = vmul.f32 %v3331, %v3336
        %v3343 = vlaneseq
        %v3344 = vshrl.u32 %v3343, 7
        %v3345 = vsub.s32 0, %v3344
        %v3346 = vrot.slane %v3287, %v3345
        %v3348 = vadd.f32 %v3338, %v3346
        %v3349 = vadd.f32 %v3339, %v3346
        %v3350 = vadd.f32 %v3340, %v3346
        %v3351 = vadd.f32 %v3341, %v3346
        %3352 = vst [vmem:[#allocation2] sm:$0xff] %v3348
        %3353 = vst [vmem:[#allocation2 + $0x8] sm:$0xff] %v3349
        %3354 = vst [vmem:[#allocation2 + $0x10] sm:$0xff] %v3350
        %3355 = vst [vmem:[#allocation2 + $0x18] sm:$0xff] %v3351
        %p3356 = scmp.eq.s32.totalorder %s31, 1
        // Predicated region
        $region129: #{tpu_custom_call.1} parent=83 // pred_check
          %p3357 = pneg %p3356
        $region130: #{tpu_custom_call.1} parent=83 // pred_check_branch
          %3359 = sbr.rel (%p3357) target = $region132
        $region131: #{tpu_custom_call.1} parent=83 // pred_region
          %3360 = vst [vmem:[#allocation18] sm:$0xff] %v3348
          %3361 = vst [vmem:[#allocation18 + $0x8] sm:$0xff] %v3349
          %3362 = vst [vmem:[#allocation18 + $0x10] sm:$0xff] %v3350
          %3363 = vst [vmem:[#allocation18 + $0x18] sm:$0xff] %v3351
        $region132: #{tpu_custom_call.1} parent=83 // pred_fallthru
          _
        // Predicated region
        $region133: #{tpu_custom_call.1} parent=83 // pred_check
          %p3364 = pneg %p440
        $region134: #{tpu_custom_call.1} parent=83 // pred_check_branch
          %3366 = sbr.rel (%p3364) target = $region136
        $region135: #{tpu_custom_call.1} parent=83 // pred_region
          %s3368 = ssub.s32 512, 512
          %3369 = vsyncadd [#allocation6], %s3368
          %s3370 = sshll.u32 [#allocation18], 4
          %s3371 = int_to_ptr.vmem [resolvable:$true] %s3370
          %3376 = dma.vmem_to_hbm [thread:$0]  %s3371, 512, %s16, [#allocation6], 128, 128, 8
        $region136: #{tpu_custom_call.1} parent=83 // pred_fallthru
          _
        // Predicated region
        $region137: #{tpu_custom_call.1} parent=83 // pred_check
          %p3377 = pneg %p440
        $region138: #{tpu_custom_call.1} parent=83 // pred_check_branch
          %3379 = sbr.rel (%p3377) target = $region140
        $region139: #{tpu_custom_call.1} parent=83 // pred_region
          %3380 = dma.done [#allocation6], 512
        $region140: #{tpu_custom_call.1} parent=83 // pred_fallthru
          _
      $region84: #{tpu_custom_call.1} parent=5 // pred_fallthru
        _
      %p3381 = scmp.le.s32.totalorder 2, %s26
      // Predicated region
      $region141: #{tpu_custom_call.1} parent=5 // pred_check
        %p3382 = pneg %p3381
      $region142: #{tpu_custom_call.1} parent=5 // pred_check_branch
        %3384 = sbr.rel (%p3382) target = $region144
      $region143: #{tpu_custom_call.1} parent=5 // pred_region
        %s3385 = ssub.s32 %s26, 2
      $region144: #{tpu_custom_call.1} parent=5 // pred_fallthru
        _
    $region6: #{tpu_custom_call.1} parent=1 // loop_footer
      %s30 = sadd.s32 1, %s26
    $region7: #{tpu_custom_call.1} parent=1 // loop_footer_branch
      %25 = sbr.rel target = $region3
    $region8: #{tpu_custom_call.1} parent=1 // loop_exit
      _
    %3386 = vsyncpa [#allocation5], 1
    %s3387 = scalar_lea.sflag [#allocation5], 1
    %3388 = vsyncpa %s3387, 1
    %3389 = vsyncpa [#allocation8], 1
    %3390 = vsyncpa [#allocation11], 1
    %3391 = vsyncpa [#allocation6], 1
    %s3392 = scalar_lea.sflag [#allocation6], 1
    %3393 = vsyncpa %s3392, 1

</llo_original>
